<compile_context>
chip_gen: v7x
topology: tpu7x:2x2x1
jax: 0.10.0
libtpu: 0.0.40
codegen_flags: <defaults>
</compile_context>

<pallas_src>
import functools
import math
from collections import namedtuple

import jax
import jax.numpy as jnp
from jax import lax
from jax.experimental import pallas as pl
from jax.experimental.pallas import tpu as pltpu


LN_EPS = 1e-5

_Config = namedtuple(
    "_Config",
    ["img_size", "patch_size", "in_channels", "embed_dim",
     "num_heads", "depth", "mlp_hidden", "num_classes"],
)


# ----------------------------- shared math ------------------------------- #
def _erf(x):
    # Abramowitz & Stegun 7.1.26 (|err| < 1.5e-7); built only from ops with
    # guaranteed Mosaic lowerings.  Matches torch's exact (erf) GELU closely.
    a1, a2, a3, a4, a5 = 0.254829592, -0.284496736, 1.421413741, -1.453152027, 1.061405429
    p = 0.3275911
    ax = jnp.abs(x)
    t = 1.0 / (1.0 + p * ax)
    poly = ((((a5 * t + a4) * t + a3) * t + a2) * t + a1) * t
    y = 1.0 - poly * jnp.exp(-ax * ax)
    return jnp.where(x >= 0, y, -y)


def _gelu(x):
    return 0.5 * x * (1.0 + _erf(x * (1.0 / math.sqrt(2.0))))


def _layernorm(x, gamma, beta):
    mu = jnp.mean(x, axis=-1, keepdims=True)
    xc = x - mu
    var = jnp.mean(xc * xc, axis=-1, keepdims=True)
    return xc * lax.rsqrt(var + LN_EPS) * gamma + beta


# ----------------------------- Pallas kernels ----------------------------- #
def _patch_embed_kernel(x_ref, w_ref, b_ref, pos_ref, o_ref, *, C, pH):
    # x_ref : (1, C, pH, nW, pW) bf16  - one row-of-patches slab (contiguous DMA)
    # w_ref : (C, pH, pW, E)     bf16  - conv weight pre-arranged (c, i, j, e)
    # b_ref : (1, E)             f32
    # pos_ref:(1, nW, E)         f32   - pos-embed rows for this patch row (fused add)
    # o_ref : (1, 1, nW, E)      f32
    acc = pos_ref[0] + b_ref[...]                          # (nW, E) f32
    for c in range(C):
        for i in range(pH):
            acc += jnp.dot(x_ref[0, c, i], w_ref[c, i],
                           preferred_element_type=jnp.float32)
    o_ref[0, 0] = acc


def _blocks_kernel(x_ref, ln1g_ref, ln1b_ref, wqkv_ref, bqkv_ref,
                   wp_ref, bp_ref, ln2g_ref, ln2b_ref,
                   w1_ref, b1_ref, w2_ref, b2_ref, o_ref,
                   x_sc, qkv_sc, ctx_sc, *, num_heads, head_dim, hid_chunk):
    """One transformer block per grid step; depth is the inner grid axis.

    The (N, C) activation lives in the f32 scratch `x_sc` across depth steps.
    """
    f32, bf16 = jnp.float32, jnp.bfloat16
    d = pl.program_id(1)

    @pl.when(d == 0)
    def _():
        x_sc[...] = x_ref[0].astype(f32)

    x = x_sc[...]                                          # (N, C) f32
    C = x.shape[-1]
    H, hd = num_heads, head_dim

    # ---- attention: LN1 -> fused QKV -> per-head softmax(QK^T)V -> fused proj
    h1 = _layernorm(x, ln1g_ref[0], ln1b_ref[0]).astype(bf16)
    # attention scale is pre-folded into Wq/bq (init time); one full-width matmul.
    qkv_sc[...] = (jnp.dot(h1, wqkv_ref[0], preferred_element_type=f32)
                   + bqkv_ref[0]).astype(bf16)             # (N, 3C)
    for h in range(H):                                     # only scores/softmax/PV per head
        lo = h * hd
        q = qkv_sc[:, lo:lo + hd]                          # (N, hd) bf16
        k = qkv_sc[:, C + lo:C + lo + hd]
        v = qkv_sc[:, 2 * C + lo:2 * C + lo + hd]
        s = lax.dot_general(q, k, (((1,), (1,)), ((), ())),
                            preferred_element_type=f32)    # (N, N)
        s = s - jnp.max(s, axis=-1, keepdims=True)
        p = jnp.exp(s)
        p = p * pl.reciprocal(jnp.sum(p, axis=-1, keepdims=True), approx=True)
        ctx_sc[:, lo:lo + hd] = jnp.dot(p.astype(bf16), v,
                                        preferred_element_type=f32).astype(bf16)
    x = x + jnp.dot(ctx_sc[...], wp_ref[0],
                    preferred_element_type=f32) + bp_ref[0]

    # ---- MLP: LN2 -> fc1 / GELU / fc2, tiled over the hidden dimension ----
    h2 = _layernorm(x, ln2g_ref[0], ln2b_ref[0]).astype(bf16)
    hid = w1_ref.shape[-1]
    acc = jnp.zeros_like(x)
    c0 = 0
    while c0 < hid:
        c1 = min(c0 + hid_chunk, hid)
        z = (jnp.dot(h2, w1_ref[0, :, c0:c1], preferred_element_type=f32)
             + b1_ref[0, :, c0:c1])
        acc += jnp.dot(_gelu(z).astype(bf16), w2_ref[0, c0:c1, :],
                       preferred_element_type=f32)
        c0 = c1
    x = x + acc + b2_ref[0]
    x_sc[...] = x

    @pl.when(d == pl.num_programs(1) - 1)
    def _():
        o_ref[0] = x.astype(o_ref.dtype)


def _head_kernel(x_ref, g_ref, b_ref, w_ref, hb_ref, o_ref):
    # x_ref: (B, C) cls tokens; final LayerNorm + classification head.
    x = x_ref[...].astype(jnp.float32)
    xn = _layernorm(x, g_ref[...], b_ref[...])
    o_ref[...] = jnp.dot(xn.astype(w_ref.dtype), w_ref[...],
                         preferred_element_type=jnp.float32) + hb_ref[...]


# ------------------------------ kernel wrappers ---------------------------- #
def _patch_embed(x, params, cfg):
    B = x.shape[0]
    C, (pH, pW), (imgF, imgT), E = (cfg.in_channels, cfg.patch_size,
                                    cfg.img_size, cfg.embed_dim)
    nH, nW = imgF // pH, imgT // pW
    # Free, contiguous reshape (no transpose pass); cast activations to bf16.
    x5 = x.reshape(B, C, imgF, nW, pW).astype(jnp.bfloat16)
    kernel = functools.partial(_patch_embed_kernel, C=C, pH=pH)
    out = pl.pallas_call(
        kernel,
        out_shape=jax.ShapeDtypeStruct((B, nH, nW, E), jnp.float32),
        grid=(B, nH),
        in_specs=[
            pl.BlockSpec((1, C, pH, nW, pW), lambda b, h: (b, 0, h, 0, 0)),
            pl.BlockSpec((C, pH, pW, E), lambda b, h: (0, 0, 0, 0)),
            pl.BlockSpec((1, E), lambda b, h: (0, 0)),
            pl.BlockSpec((1, nW, E), lambda b, h: (h, 0, 0)),
        ],
        out_specs=pl.BlockSpec((1, 1, nW, E), lambda b, h: (b, h, 0, 0)),
        compiler_params=pltpu.CompilerParams(
            dimension_semantics=("parallel", "parallel")),
    )(x5, params["patch_w"], params["patch_b"], params["pos_patch"])
    return out.reshape(B, nH * nW, E)


def _transformer_blocks(x, params, cfg):
    B, N, C = x.shape
    D, H, Hid = cfg.depth, cfg.num_heads, cfg.mlp_hidden
    hd = C // H
    hid_chunk = min(Hid, 1024)
    blk = params["blocks"]
    kernel = functools.partial(_blocks_kernel, num_heads=H, head_dim=hd,
                               hid_chunk=hid_chunk)

    def wspec(shape):
        nd = len(shape)
        return pl.BlockSpec((1,) + tuple(shape[1:]),
                            lambda b, d, _nd=nd: (d,) + (0,) * (_nd - 1))

    # Explicit VMEM budget (feedback): double-buffered per-layer weight stream
    # + activation I/O buffers + carried scratch + softmax/MLP intermediates.
    w_bytes = 2 * 2 * (C * 3 * C + C * C + 2 * C * Hid)         # bf16, 2 bufs
    small_bytes = 2 * 4 * (7 * C + 3 * C + Hid)                 # LN params + biases
    act_bytes = 2 * 2 * N * C * 4                               # in + out, 2 bufs
    scratch_bytes = N * C * 4 + N * 3 * C * 2 + N * C * 2
    inter_bytes = 2 * N * N * 4 + 4 * N * max(C, hid_chunk) * 4
    est = w_bytes + small_bytes + act_bytes + scratch_bytes + inter_bytes
    vmem_limit = int(min(max(est * 3 // 2, 32 << 20), 100 << 20))

    return pl.pallas_call(
        kernel,
        out_shape=jax.ShapeDtypeStruct((B, N, C), jnp.float32),
        grid=(B, D),
        in_specs=[
            pl.BlockSpec((1, N, C), lambda b, d: (b, 0, 0)),
            wspec(blk["ln1_g"].shape), wspec(blk["ln1_b"].shape),
            wspec(blk["wqkv"].shape), wspec(blk["bqkv"].shape),
            wspec(blk["wp"].shape), wspec(blk["bp"].shape),
            wspec(blk["ln2_g"].shape), wspec(blk["ln2_b"].shape),
            wspec(blk["w1"].shape), wspec(blk["b1"].shape),
            wspec(blk["w2"].shape), wspec(blk["b2"].shape),
        ],
        out_specs=pl.BlockSpec((1, N, C), lambda b, d: (b, 0, 0)),
        scratch_shapes=[
            pltpu.VMEM((N, C), jnp.float32),        # activation carry across depth
            pltpu.VMEM((N, 3 * C), jnp.bfloat16),   # fused QKV
            pltpu.VMEM((N, C), jnp.bfloat16),       # concatenated per-head context
        ],
        compiler_params=pltpu.CompilerParams(
            dimension_semantics=("parallel", "arbitrary"),
            vmem_limit_bytes=vmem_limit),
    )(x, blk["ln1_g"], blk["ln1_b"], blk["wqkv"], blk["bqkv"], blk["wp"],
      blk["bp"], blk["ln2_g"], blk["ln2_b"], blk["w1"], blk["b1"],
      blk["w2"], blk["b2"])


def _head(x_cls, params):
    B = x_cls.shape[0]
    n_cls = params["head_b"].shape[-1]
    return pl.pallas_call(
        _head_kernel,
        out_shape=jax.ShapeDtypeStruct((B, n_cls), jnp.float32),
    )(x_cls, params["norm_g"], params["norm_b"],
      params["head_w"], params["head_b"])


def ast_forward(params, x, cfg):
    B, C, F, T = x.shape
    imgF, imgT = cfg.img_size
    assert F <= imgF and T <= imgT, (
        f"Input size ({F}, {T}) doesn't match model expected size {cfg.img_size}")
    if F < imgF or T < imgT:
        x = jnp.pad(x, ((0, 0), (0, 0), (0, imgF - F), (0, imgT - T)))

    patches = _patch_embed(x, params, cfg)                       # (B, P, E), pos added
    cls_row = jnp.broadcast_to(params["cls_token"] + params["pos_cls"],
                               (B, 1, cfg.embed_dim))
    h = jnp.concatenate([cls_row, patches], axis=1)              # (B, N, E) f32
    h = _transformer_blocks(h, params, cfg)                      # all blocks, one call
    # representation = Identity (representation_size=None)
    return _head(h[:, 0, :], params)


# ------------------------------ reference (pure JAX) ----------------------- #
def ast_reference(params, x, cfg):
    f32 = jnp.float32
    B, C, F, T = x.shape
    imgF, imgT = cfg.img_size
    pH, pW = cfg.patch_size
    nH, nW = imgF // pH, imgT // pW
    E, H = cfg.embed_dim, cfg.num_heads
    hd = E // H
    if F < imgF or T < imgT:
        x = jnp.pad(x, ((0, 0), (0, 0), (0, imgF - F), (0, imgT - T)))
    xp = x.reshape(B, C, nH, pH, nW, pW).astype(f32)
    pe = jnp.einsum("bchiwj,cije->bhwe", xp, params["patch_w"].astype(f32))
    pe = pe.reshape(B, nH * nW, E) + params["patch_b"] \
        + params["pos_patch"].reshape(1, -1, E)
    cls_row = jnp.broadcast_to(params["cls_token"] + params["pos_cls"], (B, 1, E))
    h = jnp.concatenate([cls_row, pe], axis=1)
    N = h.shape[1]
    blk = params["blocks"]
    for d in range(cfg.depth):
        h1 = _layernorm(h, blk["ln1_g"][d], blk["ln1_b"][d])
        qkv = jnp.einsum("bnc,ck->bnk", h1, blk["wqkv"][d].astype(f32)) + blk["bqkv"][d]
        q, k, v = jnp.split(qkv, 3, axis=-1)
        q = q.reshape(B, N, H, hd).transpose(0, 2, 1, 3)
        k = k.reshape(B, N, H, hd).transpose(0, 2, 1, 3)
        v = v.reshape(B, N, H, hd).transpose(0, 2, 1, 3)
        # NOTE: attention scale is pre-folded into wqkv/bqkv (q portion) at init.
        s = jnp.einsum("bhnd,bhmd->bhnm", q, k)
        a = jax.nn.softmax(s, axis=-1)
        o = jnp.einsum("bhnm,bhmd->bhnd", a, v)
        o = o.transpose(0, 2, 1, 3).reshape(B, N, E)
        h = h + o @ blk["wp"][d].astype(f32) + blk["bp"][d]
        h2 = _layernorm(h, blk["ln2_g"][d], blk["ln2_b"][d])
        z = _gelu(h2 @ blk["w1"][d].astype(f32) + blk["b1"][d])
        h = h + z @ blk["w2"][d].astype(f32) + blk["b2"][d]
    hn = _layernorm(h, params["norm_g"], params["norm_b"])
    return hn[:, 0, :] @ params["head_w"].astype(f32) + params["head_b"]


# ------------------------------ model container ---------------------------- #
def _trunc_normal(key, shape, std=0.02, dtype=jnp.float32):
    return (jax.random.truncated_normal(key, -2.0, 2.0, shape, jnp.float32)
            * std).astype(dtype)


class ASTPallas:
    """JAX/Pallas equivalent of the PyTorch AudioSpectrogramTransformer."""

    def __init__(self, img_size=(128, 1024), patch_size=(16, 16), in_channels=1,
                 num_classes=5, embed_dim=768, depth=12, num_heads=12,
                 mlp_ratio=4.0, key=None):
        assert embed_dim % num_heads == 0
        assert img_size[0] % patch_size[0] == 0 and img_size[1] % patch_size[1] == 0
        self.cfg = _Config(img_size=img_size, patch_size=patch_size,
                           in_channels=in_channels, embed_dim=embed_dim,
                           num_heads=num_heads, depth=depth,
                           mlp_hidden=int(embed_dim * mlp_ratio),
                           num_classes=num_classes)
        nH = img_size[0] // patch_size[0]
        nW = img_size[1] // patch_size[1]
        self.num_patches = nH * nW

        if key is None:
            key = jax.random.PRNGKey(42)
        keys = list(jax.random.split(key, 4 + depth))
        E, H, hd, Hid = embed_dim, num_heads, embed_dim // num_heads, self.cfg.mlp_hidden
        pH, pW = patch_size
        scale = hd ** -0.5
        bf16 = jnp.bfloat16

        p = {}
        # All weight re-layouts / casts / scale folding are hoisted here.
        p["patch_w"] = _trunc_normal(keys[0], (in_channels, pH, pW, E), dtype=bf16)
        p["patch_b"] = jnp.zeros((1, E), jnp.float32)
        p["cls_token"] = _trunc_normal(keys[1], (1, 1, E))
        pos = _trunc_normal(keys[2], (1, self.num_patches + 1, E))
        p["pos_cls"] = pos[:, :1]
        p["pos_patch"] = pos[0, 1:].reshape(nH, nW, E)
        p["norm_g"] = jnp.ones((1, E), jnp.float32)
        p["norm_b"] = jnp.zeros((1, E), jnp.float32)
        p["head_w"] = _trunc_normal(keys[3], (E, num_classes), dtype=bf16)
        p["head_b"] = jnp.zeros((1, num_classes), jnp.float32)

        per_layer = []
        for d in range(depth):
            bk = jax.random.split(keys[4 + d], 4)
            # Fused QKV weight (C, 3C), heads concatenated along lanes; attention
            # scale hd^-0.5 folded into the Q columns (and q-bias) at init.
            wqkv = _trunc_normal(bk[0], (E, 3 * E))
            wqkv = wqkv.at[:, :E].multiply(scale)
            bqkv = jnp.zeros((1, 3 * E), jnp.float32)
            bqkv = bqkv.at[:, :E].multiply(scale)
            per_layer.append({
                "ln1_g": jnp.ones((1, E), jnp.float32),
                "ln1_b": jnp.zeros((1, E), jnp.float32),
                "wqkv": wqkv.astype(bf16),
                "bqkv": bqkv,
                "wp": _trunc_normal(bk[1], (E, E), dtype=bf16),
                "bp": jnp.zeros((1, E), jnp.float32),
                "ln2_g": jnp.ones((1, E), jnp.float32),
                "ln2_b": jnp.zeros((1, E), jnp.float32),
                "w1": _trunc_normal(bk[2], (E, Hid), dtype=bf16),
                "b1": jnp.zeros((1, Hid), jnp.float32),
                "w2": _trunc_normal(bk[3], (Hid, E), dtype=bf16),
                "b2": jnp.zeros((1, E), jnp.float32),
            })
        # Stack per-layer weights with a leading depth axis (depth-streamed grid).
        p["blocks"] = {k: jnp.stack([lyr[k] for lyr in per_layer], axis=0)
                       for k in per_layer[0]}
        self.params = p

        cfg = self.cfg
        self._fwd = jax.jit(lambda params, x: ast_forward(params, x, cfg))

    def __call__(self, x):
        return self._fwd(self.params, x)


# --------------------------------- main ------------------------------------ #
if __name__ == "__main__":
    key = jax.random.PRNGKey(0)
    k_x, k_params = jax.random.split(key)

    # Small shapes consistent with the module (lane-dense embed_dim = 128).
    B, Cin = 2, 1
    img_size = (32, 64)
    patch_size = (8, 8)
    model = ASTPallas(img_size=img_size, patch_size=patch_size, in_channels=Cin,
                      num_classes=5, embed_dim=128, depth=2, num_heads=4,
                      mlp_ratio=4.0, key=k_params)

    x = jax.random.normal(k_x, (B, Cin, img_size[0], img_size[1]), dtype=jnp.float32)

    logits = model(x)
    logits = jax.block_until_ready(logits)

    # Pure-JAX f32 reference (same parameters); kernels use bf16 matmul operands,
    # so use a bf16-appropriate tolerance.
    ref = jax.block_until_ready(ast_reference(model.params, x, model.cfg))

    assert logits.shape == (B, 5), logits.shape
    assert bool(jnp.all(jnp.isfinite(logits))), "non-finite output"
    max_diff = float(jnp.max(jnp.abs(logits - ref)))
    assert max_diff < 5e-2, f"mismatch vs reference: max|diff|={max_diff}"

    print("KERNEL_OK")
</pallas_src>

<mosaic_0001>
module attributes {stable_mosaic.version = 11 : i64} {
  func.func @_patch_embed_kernel(%arg0: i32, %arg1: i32, %arg2: memref<1x1x8x8x8xbf16, #tpu.memory_space<vmem>>, %arg3: memref<1x8x8x128xbf16, #tpu.memory_space<vmem>>, %arg4: memref<1x128xf32, #tpu.memory_space<vmem>>, %arg5: memref<1x8x128xf32, #tpu.memory_space<vmem>>, %arg6: memref<1x1x8x128xf32, #tpu.memory_space<vmem>>) attributes {dimension_semantics = [#tpu.dimension_semantics<parallel>, #tpu.dimension_semantics<parallel>], iteration_bounds = array<i64: 2, 4>, scalar_prefetch = 0 : i64, scratch_operands = 0 : i64, tpu.core_type = #tpu.core_type<tc>, window_params = [{transform_indices = @transform_0, window_bounds = array<i64: 1, 1, 8, 8, 8>}, {pipeline_mode = #tpu.pipeline_mode<synchronous>, transform_indices = @transform_1, window_bounds = array<i64: 1, 8, 8, 128>}, {pipeline_mode = #tpu.pipeline_mode<synchronous>, transform_indices = @transform_2, window_bounds = array<i64: 1, 128>}, {transform_indices = @transform_3, window_bounds = array<i64: 1, 8, 128>}, {transform_indices = @transform_4, window_bounds = array<i64: 1, 1, 8, 128>}]} {
    %c0 = arith.constant 0 : index
    %c0_0 = arith.constant 0 : index
    %c0_1 = arith.constant 0 : index
    %0 = vector.load %arg5[%c0, %c0_0, %c0_1] : memref<1x8x128xf32, #tpu.memory_space<vmem>>, vector<1x8x128xf32>
    %1 = vector.shape_cast %0 : vector<1x8x128xf32> to vector<8x128xf32>
    %c0_2 = arith.constant 0 : index
    %c0_3 = arith.constant 0 : index
    %2 = vector.load %arg4[%c0_2, %c0_3] : memref<1x128xf32, #tpu.memory_space<vmem>>, vector<1x128xf32>
    %3 = vector.broadcast %2 : vector<1x128xf32> to vector<8x128xf32>
    %4 = arith.addf %1, %3 : vector<8x128xf32>
    %c0_4 = arith.constant 0 : index
    %c0_5 = arith.constant 0 : index
    %c0_6 = arith.constant 0 : index
    %c0_7 = arith.constant 0 : index
    %c0_8 = arith.constant 0 : index
    %5 = vector.load %arg2[%c0_4, %c0_5, %c0_6, %c0_7, %c0_8] : memref<1x1x8x8x8xbf16, #tpu.memory_space<vmem>>, vector<1x1x1x8x8xbf16>
    %6 = vector.shape_cast %5 : vector<1x1x1x8x8xbf16> to vector<8x8xbf16>
    %c0_9 = arith.constant 0 : index
    %c0_10 = arith.constant 0 : index
    %c0_11 = arith.constant 0 : index
    %c0_12 = arith.constant 0 : index
    %7 = vector.load %arg3[%c0_9, %c0_10, %c0_11, %c0_12] : memref<1x8x8x128xbf16, #tpu.memory_space<vmem>>, vector<1x1x8x128xbf16>
    %8 = vector.shape_cast %7 : vector<1x1x8x128xbf16> to vector<8x128xbf16>
    %cst = arith.constant dense<0.000000e+00> : vector<8x128xf32>
    %9 = tpu.matmul %6, %8, %cst {dimension_numbers = #tpu.dot_dimension_numbers<[1], [0], [0], [1], [0, 0, 1, 1], [], []>} : vector<8x8xbf16>, vector<8x128xbf16>, vector<8x128xf32> -> vector<8x128xf32>
    %10 = arith.addf %4, %9 : vector<8x128xf32>
    %c0_13 = arith.constant 0 : index
    %c0_14 = arith.constant 0 : index
    %c1 = arith.constant 1 : index
    %c0_15 = arith.constant 0 : index
    %c0_16 = arith.constant 0 : index
    %11 = vector.load %arg2[%c0_13, %c0_14, %c1, %c0_15, %c0_16] : memref<1x1x8x8x8xbf16, #tpu.memory_space<vmem>>, vector<1x1x1x8x8xbf16>
    %12 = vector.shape_cast %11 : vector<1x1x1x8x8xbf16> to vector<8x8xbf16>
    %c0_17 = arith.constant 0 : index
    %c1_18 = arith.constant 1 : index
    %c0_19 = arith.constant 0 : index
    %c0_20 = arith.constant 0 : index
    %13 = vector.load %arg3[%c0_17, %c1_18, %c0_19, %c0_20] : memref<1x8x8x128xbf16, #tpu.memory_space<vmem>>, vector<1x1x8x128xbf16>
    %14 = vector.shape_cast %13 : vector<1x1x8x128xbf16> to vector<8x128xbf16>
    %cst_21 = arith.constant dense<0.000000e+00> : vector<8x128xf32>
    %15 = tpu.matmul %12, %14, %cst_21 {dimension_numbers = #tpu.dot_dimension_numbers<[1], [0], [0], [1], [0, 0, 1, 1], [], []>} : vector<8x8xbf16>, vector<8x128xbf16>, vector<8x128xf32> -> vector<8x128xf32>
    %16 = arith.addf %10, %15 : vector<8x128xf32>
    %c0_22 = arith.constant 0 : index
    %c0_23 = arith.constant 0 : index
    %c2 = arith.constant 2 : index
    %c0_24 = arith.constant 0 : index
    %c0_25 = arith.constant 0 : index
    %17 = vector.load %arg2[%c0_22, %c0_23, %c2, %c0_24, %c0_25] : memref<1x1x8x8x8xbf16, #tpu.memory_space<vmem>>, vector<1x1x1x8x8xbf16>
    %18 = vector.shape_cast %17 : vector<1x1x1x8x8xbf16> to vector<8x8xbf16>
    %c0_26 = arith.constant 0 : index
    %c2_27 = arith.constant 2 : index
    %c0_28 = arith.constant 0 : index
    %c0_29 = arith.constant 0 : index
    %19 = vector.load %arg3[%c0_26, %c2_27, %c0_28, %c0_29] : memref<1x8x8x128xbf16, #tpu.memory_space<vmem>>, vector<1x1x8x128xbf16>
    %20 = vector.shape_cast %19 : vector<1x1x8x128xbf16> to vector<8x128xbf16>
    %cst_30 = arith.constant dense<0.000000e+00> : vector<8x128xf32>
    %21 = tpu.matmul %18, %20, %cst_30 {dimension_numbers = #tpu.dot_dimension_numbers<[1], [0], [0], [1], [0, 0, 1, 1], [], []>} : vector<8x8xbf16>, vector<8x128xbf16>, vector<8x128xf32> -> vector<8x128xf32>
    %22 = arith.addf %16, %21 : vector<8x128xf32>
    %c0_31 = arith.constant 0 : index
    %c0_32 = arith.constant 0 : index
    %c3 = arith.constant 3 : index
    %c0_33 = arith.constant 0 : index
    %c0_34 = arith.constant 0 : index
    %23 = vector.load %arg2[%c0_31, %c0_32, %c3, %c0_33, %c0_34] : memref<1x1x8x8x8xbf16, #tpu.memory_space<vmem>>, vector<1x1x1x8x8xbf16>
    %24 = vector.shape_cast %23 : vector<1x1x1x8x8xbf16> to vector<8x8xbf16>
    %c0_35 = arith.constant 0 : index
    %c3_36 = arith.constant 3 : index
    %c0_37 = arith.constant 0 : index
    %c0_38 = arith.constant 0 : index
    %25 = vector.load %arg3[%c0_35, %c3_36, %c0_37, %c0_38] : memref<1x8x8x128xbf16, #tpu.memory_space<vmem>>, vector<1x1x8x128xbf16>
    %26 = vector.shape_cast %25 : vector<1x1x8x128xbf16> to vector<8x128xbf16>
    %cst_39 = arith.constant dense<0.000000e+00> : vector<8x128xf32>
    %27 = tpu.matmul %24, %26, %cst_39 {dimension_numbers = #tpu.dot_dimension_numbers<[1], [0], [0], [1], [0, 0, 1, 1], [], []>} : vector<8x8xbf16>, vector<8x128xbf16>, vector<8x128xf32> -> vector<8x128xf32>
    %28 = arith.addf %22, %27 : vector<8x128xf32>
    %c0_40 = arith.constant 0 : index
    %c0_41 = arith.constant 0 : index
    %c4 = arith.constant 4 : index
    %c0_42 = arith.constant 0 : index
    %c0_43 = arith.constant 0 : index
    %29 = vector.load %arg2[%c0_40, %c0_41, %c4, %c0_42, %c0_43] : memref<1x1x8x8x8xbf16, #tpu.memory_space<vmem>>, vector<1x1x1x8x8xbf16>
    %30 = vector.shape_cast %29 : vector<1x1x1x8x8xbf16> to vector<8x8xbf16>
    %c0_44 = arith.constant 0 : index
    %c4_45 = arith.constant 4 : index
    %c0_46 = arith.constant 0 : index
    %c0_47 = arith.constant 0 : index
    %31 = vector.load %arg3[%c0_44, %c4_45, %c0_46, %c0_47] : memref<1x8x8x128xbf16, #tpu.memory_space<vmem>>, vector<1x1x8x128xbf16>
    %32 = vector.shape_cast %31 : vector<1x1x8x128xbf16> to vector<8x128xbf16>
    %cst_48 = arith.constant dense<0.000000e+00> : vector<8x128xf32>
    %33 = tpu.matmul %30, %32, %cst_48 {dimension_numbers = #tpu.dot_dimension_numbers<[1], [0], [0], [1], [0, 0, 1, 1], [], []>} : vector<8x8xbf16>, vector<8x128xbf16>, vector<8x128xf32> -> vector<8x128xf32>
    %34 = arith.addf %28, %33 : vector<8x128xf32>
    %c0_49 = arith.constant 0 : index
    %c0_50 = arith.constant 0 : index
    %c5 = arith.constant 5 : index
    %c0_51 = arith.constant 0 : index
    %c0_52 = arith.constant 0 : index
    %35 = vector.load %arg2[%c0_49, %c0_50, %c5, %c0_51, %c0_52] : memref<1x1x8x8x8xbf16, #tpu.memory_space<vmem>>, vector<1x1x1x8x8xbf16>
    %36 = vector.shape_cast %35 : vector<1x1x1x8x8xbf16> to vector<8x8xbf16>
    %c0_53 = arith.constant 0 : index
    %c5_54 = arith.constant 5 : index
    %c0_55 = arith.constant 0 : index
    %c0_56 = arith.constant 0 : index
    %37 = vector.load %arg3[%c0_53, %c5_54, %c0_55, %c0_56] : memref<1x8x8x128xbf16, #tpu.memory_space<vmem>>, vector<1x1x8x128xbf16>
    %38 = vector.shape_cast %37 : vector<1x1x8x128xbf16> to vector<8x128xbf16>
    %cst_57 = arith.constant dense<0.000000e+00> : vector<8x128xf32>
    %39 = tpu.matmul %36, %38, %cst_57 {dimension_numbers = #tpu.dot_dimension_numbers<[1], [0], [0], [1], [0, 0, 1, 1], [], []>} : vector<8x8xbf16>, vector<8x128xbf16>, vector<8x128xf32> -> vector<8x128xf32>
    %40 = arith.addf %34, %39 : vector<8x128xf32>
    %c0_58 = arith.constant 0 : index
    %c0_59 = arith.constant 0 : index
    %c6 = arith.constant 6 : index
    %c0_60 = arith.constant 0 : index
    %c0_61 = arith.constant 0 : index
    %41 = vector.load %arg2[%c0_58, %c0_59, %c6, %c0_60, %c0_61] : memref<1x1x8x8x8xbf16, #tpu.memory_space<vmem>>, vector<1x1x1x8x8xbf16>
    %42 = vector.shape_cast %41 : vector<1x1x1x8x8xbf16> to vector<8x8xbf16>
    %c0_62 = arith.constant 0 : index
    %c6_63 = arith.constant 6 : index
    %c0_64 = arith.constant 0 : index
    %c0_65 = arith.constant 0 : index
    %43 = vector.load %arg3[%c0_62, %c6_63, %c0_64, %c0_65] : memref<1x8x8x128xbf16, #tpu.memory_space<vmem>>, vector<1x1x8x128xbf16>
    %44 = vector.shape_cast %43 : vector<1x1x8x128xbf16> to vector<8x128xbf16>
    %cst_66 = arith.constant dense<0.000000e+00> : vector<8x128xf32>
    %45 = tpu.matmul %42, %44, %cst_66 {dimension_numbers = #tpu.dot_dimension_numbers<[1], [0], [0], [1], [0, 0, 1, 1], [], []>} : vector<8x8xbf16>, vector<8x128xbf16>, vector<8x128xf32> -> vector<8x128xf32>
    %46 = arith.addf %40, %45 : vector<8x128xf32>
    %c0_67 = arith.constant 0 : index
    %c0_68 = arith.constant 0 : index
    %c7 = arith.constant 7 : index
    %c0_69 = arith.constant 0 : index
    %c0_70 = arith.constant 0 : index
    %47 = vector.load %arg2[%c0_67, %c0_68, %c7, %c0_69, %c0_70] : memref<1x1x8x8x8xbf16, #tpu.memory_space<vmem>>, vector<1x1x1x8x8xbf16>
    %48 = vector.shape_cast %47 : vector<1x1x1x8x8xbf16> to vector<8x8xbf16>
    %c0_71 = arith.constant 0 : index
    %c7_72 = arith.constant 7 : index
    %c0_73 = arith.constant 0 : index
    %c0_74 = arith.constant 0 : index
    %49 = vector.load %arg3[%c0_71, %c7_72, %c0_73, %c0_74] : memref<1x8x8x128xbf16, #tpu.memory_space<vmem>>, vector<1x1x8x128xbf16>
    %50 = vector.shape_cast %49 : vector<1x1x8x128xbf16> to vector<8x128xbf16>
    %cst_75 = arith.constant dense<0.000000e+00> : vector<8x128xf32>
    %51 = tpu.matmul %48, %50, %cst_75 {dimension_numbers = #tpu.dot_dimension_numbers<[1], [0], [0], [1], [0, 0, 1, 1], [], []>} : vector<8x8xbf16>, vector<8x128xbf16>, vector<8x128xf32> -> vector<8x128xf32>
    %52 = arith.addf %46, %51 : vector<8x128xf32>
    %c0_76 = arith.constant 0 : index
    %c0_77 = arith.constant 0 : index
    %c0_78 = arith.constant 0 : index
    %c0_79 = arith.constant 0 : index
    %53 = vector.load %arg6[%c0_76, %c0_77, %c0_78, %c0_79] : memref<1x1x8x128xf32, #tpu.memory_space<vmem>>, vector<1x1x8x128xf32>
    %54 = vector.shape_cast %53 : vector<1x1x8x128xf32> to vector<8x128xf32>
    %55 = vector.shape_cast %52 : vector<8x128xf32> to vector<1x1x8x128xf32>
    tpu.vector_store %arg6[%c0_76, %c0_77, %c0_78, %c0_79], %55 {strides = array<i32>} : memref<1x1x8x128xf32, #tpu.memory_space<vmem>>, vector<1x1x8x128xf32>,
    return
  }
  func.func @transform_0(%arg0: i32, %arg1: i32) -> (i32, i32, i32, i32, i32) {
    %c0_i32 = arith.constant 0 : i32
    %c0_i32_0 = arith.constant 0 : i32
    %c0_i32_1 = arith.constant 0 : i32
    %c0_i32_2 = arith.constant 0 : i32
    return %arg0, %c0_i32, %arg1, %c0_i32_0, %c0_i32_1 : i32, i32, i32, i32, i32
  }
  func.func @transform_1(%arg0: i32, %arg1: i32) -> (i32, i32, i32, i32) {
    %c0_i32 = arith.constant 0 : i32
    %c0_i32_0 = arith.constant 0 : i32
    %c0_i32_1 = arith.constant 0 : i32
    %c0_i32_2 = arith.constant 0 : i32
    %c0_i32_3 = arith.constant 0 : i32
    return %c0_i32, %c0_i32_0, %c0_i32_1, %c0_i32_2 : i32, i32, i32, i32
  }
  func.func @transform_2(%arg0: i32, %arg1: i32) -> (i32, i32) {
    %c0_i32 = arith.constant 0 : i32
    %c0_i32_0 = arith.constant 0 : i32
    %c0_i32_1 = arith.constant 0 : i32
    return %c0_i32, %c0_i32_0 : i32, i32
  }
  func.func @transform_3(%arg0: i32, %arg1: i32) -> (i32, i32, i32) {
    %c0_i32 = arith.constant 0 : i32
    %c0_i32_0 = arith.constant 0 : i32
    %c0_i32_1 = arith.constant 0 : i32
    return %arg1, %c0_i32, %c0_i32_0 : i32, i32, i32
  }
  func.func @transform_4(%arg0: i32, %arg1: i32) -> (i32, i32, i32, i32) {
    %c0_i32 = arith.constant 0 : i32
    %c0_i32_0 = arith.constant 0 : i32
    %c0_i32_1 = arith.constant 0 : i32
    return %arg0, %arg1, %c0_i32, %c0_i32_0 : i32, i32, i32, i32
  }
}

module attributes {stable_mosaic.version = 11 : i64} {
  func.func @_blocks_kernel(%arg0: i32, %arg1: i32, %arg2: memref<1x33x128xf32, #tpu.memory_space<vmem>>, %arg3: memref<1x1x128xf32, #tpu.memory_space<vmem>>, %arg4: memref<1x1x128xf32, #tpu.memory_space<vmem>>, %arg5: memref<1x128x384xbf16, #tpu.memory_space<vmem>>, %arg6: memref<1x1x384xf32, #tpu.memory_space<vmem>>, %arg7: memref<1x128x128xbf16, #tpu.memory_space<vmem>>, %arg8: memref<1x1x128xf32, #tpu.memory_space<vmem>>, %arg9: memref<1x1x128xf32, #tpu.memory_space<vmem>>, %arg10: memref<1x1x128xf32, #tpu.memory_space<vmem>>, %arg11: memref<1x128x512xbf16, #tpu.memory_space<vmem>>, %arg12: memref<1x1x512xf32, #tpu.memory_space<vmem>>, %arg13: memref<1x512x128xbf16, #tpu.memory_space<vmem>>, %arg14: memref<1x1x128xf32, #tpu.memory_space<vmem>>, %arg15: memref<1x33x128xf32, #tpu.memory_space<vmem>>, %arg16: memref<33x128xf32, #tpu.memory_space<vmem>>, %arg17: memref<33x384xbf16, #tpu.memory_space<vmem>>, %arg18: memref<33x128xbf16, #tpu.memory_space<vmem>>) attributes {dimension_semantics = [#tpu.dimension_semantics<parallel>, #tpu.dimension_semantics<arbitrary>], iteration_bounds = array<i64: 2, 2>, scalar_prefetch = 0 : i64, scratch_operands = 3 : i64, tpu.core_type = #tpu.core_type<tc>, window_params = [{transform_indices = @transform_0, window_bounds = array<i64: 1, 33, 128>}, {transform_indices = @transform_1, window_bounds = array<i64: 1, 1, 128>}, {transform_indices = @transform_2, window_bounds = array<i64: 1, 1, 128>}, {transform_indices = @transform_3, window_bounds = array<i64: 1, 128, 384>}, {transform_indices = @transform_4, window_bounds = array<i64: 1, 1, 384>}, {transform_indices = @transform_5, window_bounds = array<i64: 1, 128, 128>}, {transform_indices = @transform_6, window_bounds = array<i64: 1, 1, 128>}, {transform_indices = @transform_7, window_bounds = array<i64: 1, 1, 128>}, {transform_indices = @transform_8, window_bounds = array<i64: 1, 1, 128>}, {transform_indices = @transform_9, window_bounds = array<i64: 1, 128, 512>}, {transform_indices = @transform_10, window_bounds = array<i64: 1, 1, 512>}, {transform_indices = @transform_11, window_bounds = array<i64: 1, 512, 128>}, {transform_indices = @transform_12, window_bounds = array<i64: 1, 1, 128>}, {transform_indices = @transform_13, window_bounds = array<i64: 1, 33, 128>}]} {
    %c0_i32 = arith.constant 0 : i32
    %0 = arith.cmpi eq, %arg1, %c0_i32 : i32
    %1 = arith.extui %0 : i1 to i32
    %c0_i32_0 = arith.constant 0 : i32
    %2 = arith.cmpi ne, %1, %c0_i32_0 : i32
    scf.if %2 {
      %c0_111 = arith.constant 0 : index
      %c0_112 = arith.constant 0 : index
      %c0_113 = arith.constant 0 : index
      %206 = vector.load %arg2[%c0_111, %c0_112, %c0_113] : memref<1x33x128xf32, #tpu.memory_space<vmem>>, vector<1x33x128xf32>
      %207 = vector.shape_cast %206 : vector<1x33x128xf32> to vector<33x128xf32>
      %c0_114 = arith.constant 0 : index
      %c0_115 = arith.constant 0 : index
      %208 = vector.load %arg16[%c0_114, %c0_115] : memref<33x128xf32, #tpu.memory_space<vmem>>, vector<33x128xf32>
      tpu.vector_store %arg16[%c0_114, %c0_115], %207 {strides = array<i32>} : memref<33x128xf32, #tpu.memory_space<vmem>>, vector<33x128xf32>,
    } else {
    }
    %c0 = arith.constant 0 : index
    %c0_1 = arith.constant 0 : index
    %3 = vector.load %arg16[%c0, %c0_1] : memref<33x128xf32, #tpu.memory_space<vmem>>, vector<33x128xf32>
    %c0_2 = arith.constant 0 : index
    %c0_3 = arith.constant 0 : index
    %c0_4 = arith.constant 0 : index
    %4 = vector.load %arg3[%c0_2, %c0_3, %c0_4] : memref<1x1x128xf32, #tpu.memory_space<vmem>>, vector<1x1x128xf32>
    %5 = vector.shape_cast %4 : vector<1x1x128xf32> to vector<1x128xf32>
    %c0_5 = arith.constant 0 : index
    %c0_6 = arith.constant 0 : index
    %c0_7 = arith.constant 0 : index
    %6 = vector.load %arg4[%c0_5, %c0_6, %c0_7] : memref<1x1x128xf32, #tpu.memory_space<vmem>>, vector<1x1x128xf32>
    %7 = vector.shape_cast %6 : vector<1x1x128xf32> to vector<1x128xf32>
    %cst = arith.constant dense<0.000000e+00> : vector<33xf32>
    %8 = vector.multi_reduction <add>, %3, %cst [1] : vector<33x128xf32> to vector<33xf32>
    %9 = vector.shape_cast %8 : vector<33xf32> to vector<33x1xf32>
    %cst_8 = arith.constant 1.280000e+02 : f32
    %10 = vector.broadcast %cst_8 : f32 to vector<33x1xf32>
    %11 = arith.divf %9, %10 : vector<33x1xf32>
    %12 = vector.broadcast %11 : vector<33x1xf32> to vector<33x128xf32>
    %13 = arith.subf %3, %12 : vector<33x128xf32>
    %14 = arith.mulf %13, %13 : vector<33x128xf32>
    %cst_9 = arith.constant dense<0.000000e+00> : vector<33xf32>
    %15 = vector.multi_reduction <add>, %14, %cst_9 [1] : vector<33x128xf32> to vector<33xf32>
    %16 = vector.shape_cast %15 : vector<33xf32> to vector<33x1xf32>
    %cst_10 = arith.constant 1.280000e+02 : f32
    %17 = vector.broadcast %cst_10 : f32 to vector<33x1xf32>
    %18 = arith.divf %16, %17 : vector<33x1xf32>
    %cst_11 = arith.constant 9.99999974E-6 : f32
    %19 = vector.broadcast %cst_11 : f32 to vector<33x1xf32>
    %20 = arith.addf %18, %19 : vector<33x1xf32>
    %21 = math.rsqrt %20 : vector<33x1xf32>
    %22 = vector.broadcast %21 : vector<33x1xf32> to vector<33x128xf32>
    %23 = arith.mulf %13, %22 : vector<33x128xf32>
    %24 = vector.broadcast %5 : vector<1x128xf32> to vector<33x128xf32>
    %25 = arith.mulf %23, %24 : vector<33x128xf32>
    %26 = vector.broadcast %7 : vector<1x128xf32> to vector<33x128xf32>
    %27 = arith.addf %25, %26 : vector<33x128xf32>
    %28 = arith.truncf %27 : vector<33x128xf32> to vector<33x128xbf16>
    %c0_12 = arith.constant 0 : index
    %c0_13 = arith.constant 0 : index
    %c0_14 = arith.constant 0 : index
    %29 = vector.load %arg5[%c0_12, %c0_13, %c0_14] : memref<1x128x384xbf16, #tpu.memory_space<vmem>>, vector<1x128x384xbf16>
    %30 = vector.shape_cast %29 : vector<1x128x384xbf16> to vector<128x384xbf16>
    %cst_15 = arith.constant dense<0.000000e+00> : vector<33x384xf32>
    %31 = tpu.matmul %28, %30, %cst_15 {dimension_numbers = #tpu.dot_dimension_numbers<[1], [0], [0], [1], [0, 0, 1, 1], [], []>} : vector<33x128xbf16>, vector<128x384xbf16>, vector<33x384xf32> -> vector<33x384xf32>
    %c0_16 = arith.constant 0 : index
    %c0_17 = arith.constant 0 : index
    %c0_18 = arith.constant 0 : index
    %32 = vector.load %arg6[%c0_16, %c0_17, %c0_18] : memref<1x1x384xf32, #tpu.memory_space<vmem>>, vector<1x1x384xf32>
    %33 = vector.shape_cast %32 : vector<1x1x384xf32> to vector<1x384xf32>
    %34 = vector.broadcast %33 : vector<1x384xf32> to vector<33x384xf32>
    %35 = arith.addf %31, %34 : vector<33x384xf32>
    %36 = arith.truncf %35 : vector<33x384xf32> to vector<33x384xbf16>
    %c0_19 = arith.constant 0 : index
    %c0_20 = arith.constant 0 : index
    %37 = vector.load %arg17[%c0_19, %c0_20] : memref<33x384xbf16, #tpu.memory_space<vmem>>, vector<33x384xbf16>
    tpu.vector_store %arg17[%c0_19, %c0_20], %36 {strides = array<i32>} : memref<33x384xbf16, #tpu.memory_space<vmem>>, vector<33x384xbf16>,
    %c0_21 = arith.constant 0 : index
    %c0_22 = arith.constant 0 : index
    %38 = vector.load %arg17[%c0_21, %c0_22] : memref<33x384xbf16, #tpu.memory_space<vmem>>, vector<33x32xbf16>
    %c0_23 = arith.constant 0 : index
    %c128 = arith.constant 128 : index
    %39 = vector.load %arg17[%c0_23, %c128] : memref<33x384xbf16, #tpu.memory_space<vmem>>, vector<33x32xbf16>
    %c0_24 = arith.constant 0 : index
    %c256 = arith.constant 256 : index
    %40 = vector.load %arg17[%c0_24, %c256] : memref<33x384xbf16, #tpu.memory_space<vmem>>, vector<33x32xbf16>
    %cst_25 = arith.constant dense<0.000000e+00> : vector<33x33xf32>
    %41 = tpu.matmul %38, %39, %cst_25 {dimension_numbers = #tpu.dot_dimension_numbers<[1], [1], [0], [0], [0, 0, 1, 0], [], []>} : vector<33x32xbf16>, vector<33x32xbf16>, vector<33x33xf32> -> vector<33x33xf32>
    %cst_26 = arith.constant dense<0xFF800000> : vector<33xf32>
    %42 = vector.multi_reduction <maximumf>, %41, %cst_26 [1] : vector<33x33xf32> to vector<33xf32>
    %43 = vector.shape_cast %42 : vector<33xf32> to vector<33x1xf32>
    %44 = vector.broadcast %43 : vector<33x1xf32> to vector<33x33xf32>
    %45 = arith.subf %41, %44 : vector<33x33xf32>
    %46 = math.exp %45 : vector<33x33xf32>
    %cst_27 = arith.constant dense<0.000000e+00> : vector<33xf32>
    %47 = vector.multi_reduction <add>, %46, %cst_27 [1] : vector<33x33xf32> to vector<33xf32>
    %48 = vector.shape_cast %47 : vector<33xf32> to vector<33x1xf32>
    %49 = tpu.reciprocal %48 {approx = true} : vector<33x1xf32> -> vector<33x1xf32>
    %50 = vector.broadcast %49 : vector<33x1xf32> to vector<33x33xf32>
    %51 = arith.mulf %46, %50 : vector<33x33xf32>
    %52 = arith.truncf %51 : vector<33x33xf32> to vector<33x33xbf16>
    %cst_28 = arith.constant dense<0.000000e+00> : vector<33x32xf32>
    %53 = tpu.matmul %52, %40, %cst_28 {dimension_numbers = #tpu.dot_dimension_numbers<[1], [0], [0], [1], [0, 0, 1, 1], [], []>} : vector<33x33xbf16>, vector<33x32xbf16>, vector<33x32xf32> -> vector<33x32xf32>
    %54 = arith.truncf %53 : vector<33x32xf32> to vector<33x32xbf16>
    %c0_29 = arith.constant 0 : index
    %c0_30 = arith.constant 0 : index
    %55 = vector.load %arg18[%c0_29, %c0_30] : memref<33x128xbf16, #tpu.memory_space<vmem>>, vector<33x32xbf16>
    tpu.vector_store %arg18[%c0_29, %c0_30], %54 {strides = array<i32>} : memref<33x128xbf16, #tpu.memory_space<vmem>>, vector<33x32xbf16>,
    %c0_31 = arith.constant 0 : index
    %c32 = arith.constant 32 : index
    %56 = vector.load %arg17[%c0_31, %c32] : memref<33x384xbf16, #tpu.memory_space<vmem>>, vector<33x32xbf16>
    %c0_32 = arith.constant 0 : index
    %c160 = arith.constant 160 : index
    %57 = vector.load %arg17[%c0_32, %c160] : memref<33x384xbf16, #tpu.memory_space<vmem>>, vector<33x32xbf16>
    %c0_33 = arith.constant 0 : index
    %c288 = arith.constant 288 : index
    %58 = vector.load %arg17[%c0_33, %c288] : memref<33x384xbf16, #tpu.memory_space<vmem>>, vector<33x32xbf16>
    %cst_34 = arith.constant dense<0.000000e+00> : vector<33x33xf32>
    %59 = tpu.matmul %56, %57, %cst_34 {dimension_numbers = #tpu.dot_dimension_numbers<[1], [1], [0], [0], [0, 0, 1, 0], [], []>} : vector<33x32xbf16>, vector<33x32xbf16>, vector<33x33xf32> -> vector<33x33xf32>
    %cst_35 = arith.constant dense<0xFF800000> : vector<33xf32>
    %60 = vector.multi_reduction <maximumf>, %59, %cst_35 [1] : vector<33x33xf32> to vector<33xf32>
    %61 = vector.shape_cast %60 : vector<33xf32> to vector<33x1xf32>
    %62 = vector.broadcast %61 : vector<33x1xf32> to vector<33x33xf32>
    %63 = arith.subf %59, %62 : vector<33x33xf32>
    %64 = math.exp %63 : vector<33x33xf32>
    %cst_36 = arith.constant dense<0.000000e+00> : vector<33xf32>
    %65 = vector.multi_reduction <add>, %64, %cst_36 [1] : vector<33x33xf32> to vector<33xf32>
    %66 = vector.shape_cast %65 : vector<33xf32> to vector<33x1xf32>
    %67 = tpu.reciprocal %66 {approx = true} : vector<33x1xf32> -> vector<33x1xf32>
    %68 = vector.broadcast %67 : vector<33x1xf32> to vector<33x33xf32>
    %69 = arith.mulf %64, %68 : vector<33x33xf32>
    %70 = arith.truncf %69 : vector<33x33xf32> to vector<33x33xbf16>
    %cst_37 = arith.constant dense<0.000000e+00> : vector<33x32xf32>
    %71 = tpu.matmul %70, %58, %cst_37 {dimension_numbers = #tpu.dot_dimension_numbers<[1], [0], [0], [1], [0, 0, 1, 1], [], []>} : vector<33x33xbf16>, vector<33x32xbf16>, vector<33x32xf32> -> vector<33x32xf32>
    %72 = arith.truncf %71 : vector<33x32xf32> to vector<33x32xbf16>
    %c0_38 = arith.constant 0 : index
    %c32_39 = arith.constant 32 : index
    %73 = vector.load %arg18[%c0_38, %c32_39] : memref<33x128xbf16, #tpu.memory_space<vmem>>, vector<33x32xbf16>
    tpu.vector_store %arg18[%c0_38, %c32_39], %72 {strides = array<i32>} : memref<33x128xbf16, #tpu.memory_space<vmem>>, vector<33x32xbf16>,
    %c0_40 = arith.constant 0 : index
    %c64 = arith.constant 64 : index
    %74 = vector.load %arg17[%c0_40, %c64] : memref<33x384xbf16, #tpu.memory_space<vmem>>, vector<33x32xbf16>
    %c0_41 = arith.constant 0 : index
    %c192 = arith.constant 192 : index
    %75 = vector.load %arg17[%c0_41, %c192] : memref<33x384xbf16, #tpu.memory_space<vmem>>, vector<33x32xbf16>
    %c0_42 = arith.constant 0 : index
    %c320 = arith.constant 320 : index
    %76 = vector.load %arg17[%c0_42, %c320] : memref<33x384xbf16, #tpu.memory_space<vmem>>, vector<33x32xbf16>
    %cst_43 = arith.constant dense<0.000000e+00> : vector<33x33xf32>
    %77 = tpu.matmul %74, %75, %cst_43 {dimension_numbers = #tpu.dot_dimension_numbers<[1], [1], [0], [0], [0, 0, 1, 0], [], []>} : vector<33x32xbf16>, vector<33x32xbf16>, vector<33x33xf32> -> vector<33x33xf32>
    %cst_44 = arith.constant dense<0xFF800000> : vector<33xf32>
    %78 = vector.multi_reduction <maximumf>, %77, %cst_44 [1] : vector<33x33xf32> to vector<33xf32>
    %79 = vector.shape_cast %78 : vector<33xf32> to vector<33x1xf32>
    %80 = vector.broadcast %79 : vector<33x1xf32> to vector<33x33xf32>
    %81 = arith.subf %77, %80 : vector<33x33xf32>
    %82 = math.exp %81 : vector<33x33xf32>
    %cst_45 = arith.constant dense<0.000000e+00> : vector<33xf32>
    %83 = vector.multi_reduction <add>, %82, %cst_45 [1] : vector<33x33xf32> to vector<33xf32>
    %84 = vector.shape_cast %83 : vector<33xf32> to vector<33x1xf32>
    %85 = tpu.reciprocal %84 {approx = true} : vector<33x1xf32> -> vector<33x1xf32>
    %86 = vector.broadcast %85 : vector<33x1xf32> to vector<33x33xf32>
    %87 = arith.mulf %82, %86 : vector<33x33xf32>
    %88 = arith.truncf %87 : vector<33x33xf32> to vector<33x33xbf16>
    %cst_46 = arith.constant dense<0.000000e+00> : vector<33x32xf32>
    %89 = tpu.matmul %88, %76, %cst_46 {dimension_numbers = #tpu.dot_dimension_numbers<[1], [0], [0], [1], [0, 0, 1, 1], [], []>} : vector<33x33xbf16>, vector<33x32xbf16>, vector<33x32xf32> -> vector<33x32xf32>
    %90 = arith.truncf %89 : vector<33x32xf32> to vector<33x32xbf16>
    %c0_47 = arith.constant 0 : index
    %c64_48 = arith.constant 64 : index
    %91 = vector.load %arg18[%c0_47, %c64_48] : memref<33x128xbf16, #tpu.memory_space<vmem>>, vector<33x32xbf16>
    tpu.vector_store %arg18[%c0_47, %c64_48], %90 {strides = array<i32>} : memref<33x128xbf16, #tpu.memory_space<vmem>>, vector<33x32xbf16>,
    %c0_49 = arith.constant 0 : index
    %c96 = arith.constant 96 : index
    %92 = vector.load %arg17[%c0_49, %c96] : memref<33x384xbf16, #tpu.memory_space<vmem>>, vector<33x32xbf16>
    %c0_50 = arith.constant 0 : index
    %c224 = arith.constant 224 : index
    %93 = vector.load %arg17[%c0_50, %c224] : memref<33x384xbf16, #tpu.memory_space<vmem>>, vector<33x32xbf16>
    %c0_51 = arith.constant 0 : index
    %c352 = arith.constant 352 : index
    %94 = vector.load %arg17[%c0_51, %c352] : memref<33x384xbf16, #tpu.memory_space<vmem>>, vector<33x32xbf16>
    %cst_52 = arith.constant dense<0.000000e+00> : vector<33x33xf32>
    %95 = tpu.matmul %92, %93, %cst_52 {dimension_numbers = #tpu.dot_dimension_numbers<[1], [1], [0], [0], [0, 0, 1, 0], [], []>} : vector<33x32xbf16>, vector<33x32xbf16>, vector<33x33xf32> -> vector<33x33xf32>
    %cst_53 = arith.constant dense<0xFF800000> : vector<33xf32>
    %96 = vector.multi_reduction <maximumf>, %95, %cst_53 [1] : vector<33x33xf32> to vector<33xf32>
    %97 = vector.shape_cast %96 : vector<33xf32> to vector<33x1xf32>
    %98 = vector.broadcast %97 : vector<33x1xf32> to vector<33x33xf32>
    %99 = arith.subf %95, %98 : vector<33x33xf32>
    %100 = math.exp %99 : vector<33x33xf32>
    %cst_54 = arith.constant dense<0.000000e+00> : vector<33xf32>
    %101 = vector.multi_reduction <add>, %100, %cst_54 [1] : vector<33x33xf32> to vector<33xf32>
    %102 = vector.shape_cast %101 : vector<33xf32> to vector<33x1xf32>
    %103 = tpu.reciprocal %102 {approx = true} : vector<33x1xf32> -> vector<33x1xf32>
    %104 = vector.broadcast %103 : vector<33x1xf32> to vector<33x33xf32>
    %105 = arith.mulf %100, %104 : vector<33x33xf32>
    %106 = arith.truncf %105 : vector<33x33xf32> to vector<33x33xbf16>
    %cst_55 = arith.constant dense<0.000000e+00> : vector<33x32xf32>
    %107 = tpu.matmul %106, %94, %cst_55 {dimension_numbers = #tpu.dot_dimension_numbers<[1], [0], [0], [1], [0, 0, 1, 1], [], []>} : vector<33x33xbf16>, vector<33x32xbf16>, vector<33x32xf32> -> vector<33x32xf32>
    %108 = arith.truncf %107 : vector<33x32xf32> to vector<33x32xbf16>
    %c0_56 = arith.constant 0 : index
    %c96_57 = arith.constant 96 : index
    %109 = vector.load %arg18[%c0_56, %c96_57] : memref<33x128xbf16, #tpu.memory_space<vmem>>, vector<33x32xbf16>
    tpu.vector_store %arg18[%c0_56, %c96_57], %108 {strides = array<i32>} : memref<33x128xbf16, #tpu.memory_space<vmem>>, vector<33x32xbf16>,
    %c0_58 = arith.constant 0 : index
    %c0_59 = arith.constant 0 : index
    %110 = vector.load %arg18[%c0_58, %c0_59] : memref<33x128xbf16, #tpu.memory_space<vmem>>, vector<33x128xbf16>
    %c0_60 = arith.constant 0 : index
    %c0_61 = arith.constant 0 : index
    %c0_62 = arith.constant 0 : index
    %111 = vector.load %arg7[%c0_60, %c0_61, %c0_62] : memref<1x128x128xbf16, #tpu.memory_space<vmem>>, vector<1x128x128xbf16>
    %112 = vector.shape_cast %111 : vector<1x128x128xbf16> to vector<128x128xbf16>
    %cst_63 = arith.constant dense<0.000000e+00> : vector<33x128xf32>
    %113 = tpu.matmul %110, %112, %cst_63 {dimension_numbers = #tpu.dot_dimension_numbers<[1], [0], [0], [1], [0, 0, 1, 1], [], []>} : vector<33x128xbf16>, vector<128x128xbf16>, vector<33x128xf32> -> vector<33x128xf32>
    %114 = arith.addf %3, %113 : vector<33x128xf32>
    %c0_64 = arith.constant 0 : index
    %c0_65 = arith.constant 0 : index
    %c0_66 = arith.constant 0 : index
    %115 = vector.load %arg8[%c0_64, %c0_65, %c0_66] : memref<1x1x128xf32, #tpu.memory_space<vmem>>, vector<1x1x128xf32>
    %116 = vector.shape_cast %115 : vector<1x1x128xf32> to vector<1x128xf32>
    %117 = vector.broadcast %116 : vector<1x128xf32> to vector<33x128xf32>
    %118 = arith.addf %114, %117 : vector<33x128xf32>
    %c0_67 = arith.constant 0 : index
    %c0_68 = arith.constant 0 : index
    %c0_69 = arith.constant 0 : index
    %119 = vector.load %arg9[%c0_67, %c0_68, %c0_69] : memref<1x1x128xf32, #tpu.memory_space<vmem>>, vector<1x1x128xf32>
    %120 = vector.shape_cast %119 : vector<1x1x128xf32> to vector<1x128xf32>
    %c0_70 = arith.constant 0 : index
    %c0_71 = arith.constant 0 : index
    %c0_72 = arith.constant 0 : index
    %121 = vector.load %arg10[%c0_70, %c0_71, %c0_72] : memref<1x1x128xf32, #tpu.memory_space<vmem>>, vector<1x1x128xf32>
    %122 = vector.shape_cast %121 : vector<1x1x128xf32> to vector<1x128xf32>
    %cst_73 = arith.constant dense<0.000000e+00> : vector<33xf32>
    %123 = vector.multi_reduction <add>, %118, %cst_73 [1] : vector<33x128xf32> to vector<33xf32>
    %124 = vector.shape_cast %123 : vector<33xf32> to vector<33x1xf32>
    %cst_74 = arith.constant 1.280000e+02 : f32
    %125 = vector.broadcast %cst_74 : f32 to vector<33x1xf32>
    %126 = arith.divf %124, %125 : vector<33x1xf32>
    %127 = vector.broadcast %126 : vector<33x1xf32> to vector<33x128xf32>
    %128 = arith.subf %118, %127 : vector<33x128xf32>
    %129 = arith.mulf %128, %128 : vector<33x128xf32>
    %cst_75 = arith.constant dense<0.000000e+00> : vector<33xf32>
    %130 = vector.multi_reduction <add>, %129, %cst_75 [1] : vector<33x128xf32> to vector<33xf32>
    %131 = vector.shape_cast %130 : vector<33xf32> to vector<33x1xf32>
    %cst_76 = arith.constant 1.280000e+02 : f32
    %132 = vector.broadcast %cst_76 : f32 to vector<33x1xf32>
    %133 = arith.divf %131, %132 : vector<33x1xf32>
    %cst_77 = arith.constant 9.99999974E-6 : f32
    %134 = vector.broadcast %cst_77 : f32 to vector<33x1xf32>
    %135 = arith.addf %133, %134 : vector<33x1xf32>
    %136 = math.rsqrt %135 : vector<33x1xf32>
    %137 = vector.broadcast %136 : vector<33x1xf32> to vector<33x128xf32>
    %138 = arith.mulf %128, %137 : vector<33x128xf32>
    %139 = vector.broadcast %120 : vector<1x128xf32> to vector<33x128xf32>
    %140 = arith.mulf %138, %139 : vector<33x128xf32>
    %141 = vector.broadcast %122 : vector<1x128xf32> to vector<33x128xf32>
    %142 = arith.addf %140, %141 : vector<33x128xf32>
    %143 = arith.truncf %142 : vector<33x128xf32> to vector<33x128xbf16>
    %cst_78 = arith.constant 0.000000e+00 : f32
    %144 = vector.broadcast %cst_78 : f32 to vector<33x128xf32>
    %c0_79 = arith.constant 0 : index
    %c0_80 = arith.constant 0 : index
    %c0_81 = arith.constant 0 : index
    %145 = vector.load %arg11[%c0_79, %c0_80, %c0_81] : memref<1x128x512xbf16, #tpu.memory_space<vmem>>, vector<1x128x512xbf16>
    %146 = vector.shape_cast %145 : vector<1x128x512xbf16> to vector<128x512xbf16>
    %cst_82 = arith.constant dense<0.000000e+00> : vector<33x512xf32>
    %147 = tpu.matmul %143, %146, %cst_82 {dimension_numbers = #tpu.dot_dimension_numbers<[1], [0], [0], [1], [0, 0, 1, 1], [], []>} : vector<33x128xbf16>, vector<128x512xbf16>, vector<33x512xf32> -> vector<33x512xf32>
    %c0_83 = arith.constant 0 : index
    %c0_84 = arith.constant 0 : index
    %c0_85 = arith.constant 0 : index
    %148 = vector.load %arg12[%c0_83, %c0_84, %c0_85] : memref<1x1x512xf32, #tpu.memory_space<vmem>>, vector<1x1x512xf32>
    %149 = vector.shape_cast %148 : vector<1x1x512xf32> to vector<1x512xf32>
    %150 = vector.broadcast %149 : vector<1x512xf32> to vector<33x512xf32>
    %151 = arith.addf %147, %150 : vector<33x512xf32>
    %cst_86 = arith.constant 5.000000e-01 : f32
    %152 = vector.broadcast %cst_86 : f32 to vector<33x512xf32>
    %153 = arith.mulf %152, %151 : vector<33x512xf32>
    %cst_87 = arith.constant 0.707106769 : f32
    %154 = vector.broadcast %cst_87 : f32 to vector<33x512xf32>
    %155 = arith.mulf %151, %154 : vector<33x512xf32>
    %156 = math.absf %155 : vector<33x512xf32>
    %cst_88 = arith.constant 0.327591091 : f32
    %157 = vector.broadcast %cst_88 : f32 to vector<33x512xf32>
    %158 = arith.mulf %157, %156 : vector<33x512xf32>
    %cst_89 = arith.constant 1.000000e+00 : f32
    %159 = vector.broadcast %cst_89 : f32 to vector<33x512xf32>
    %160 = arith.addf %159, %158 : vector<33x512xf32>
    %cst_90 = arith.constant 1.000000e+00 : f32
    %161 = vector.broadcast %cst_90 : f32 to vector<33x512xf32>
    %162 = arith.divf %161, %160 : vector<33x512xf32>
    %cst_91 = arith.constant 1.06140542 : f32
    %163 = vector.broadcast %cst_91 : f32 to vector<33x512xf32>
    %164 = arith.mulf %163, %162 : vector<33x512xf32>
    %cst_92 = arith.constant -1.45315206 : f32
    %165 = vector.broadcast %cst_92 : f32 to vector<33x512xf32>
    %166 = arith.addf %164, %165 : vector<33x512xf32>
    %167 = arith.mulf %166, %162 : vector<33x512xf32>
    %cst_93 = arith.constant 1.42141378 : f32
    %168 = vector.broadcast %cst_93 : f32 to vector<33x512xf32>
    %169 = arith.addf %167, %168 : vector<33x512xf32>
    %170 = arith.mulf %169, %162 : vector<33x512xf32>
    %cst_94 = arith.constant -0.284496725 : f32
    %171 = vector.broadcast %cst_94 : f32 to vector<33x512xf32>
    %172 = arith.addf %170, %171 : vector<33x512xf32>
    %173 = arith.mulf %172, %162 : vector<33x512xf32>
    %cst_95 = arith.constant 0.254829586 : f32
    %174 = vector.broadcast %cst_95 : f32 to vector<33x512xf32>
    %175 = arith.addf %173, %174 : vector<33x512xf32>
    %176 = arith.mulf %175, %162 : vector<33x512xf32>
    %cst_96 = arith.constant 0.000000e+00 : f32
    %177 = vector.broadcast %cst_96 : f32 to vector<33x512xf32>
    %178 = arith.subf %177, %156 : vector<33x512xf32>
    %179 = arith.mulf %178, %156 : vector<33x512xf32>
    %180 = math.exp %179 : vector<33x512xf32>
    %181 = arith.mulf %176, %180 : vector<33x512xf32>
    %cst_97 = arith.constant 1.000000e+00 : f32
    %182 = vector.broadcast %cst_97 : f32 to vector<33x512xf32>
    %183 = arith.subf %182, %181 : vector<33x512xf32>
    %cst_98 = arith.constant 0.000000e+00 : f32
    %184 = vector.broadcast %cst_98 : f32 to vector<33x512xf32>
    %185 = arith.cmpf oge, %155, %184 : vector<33x512xf32>
    %cst_99 = arith.constant 0.000000e+00 : f32
    %186 = vector.broadcast %cst_99 : f32 to vector<33x512xf32>
    %187 = arith.subf %186, %183 : vector<33x512xf32>
    %188 = arith.select %185, %183, %187 : vector<33x512xi1>, vector<33x512xf32>
    %cst_100 = arith.constant 1.000000e+00 : f32
    %189 = vector.broadcast %cst_100 : f32 to vector<33x512xf32>
    %190 = arith.addf %189, %188 : vector<33x512xf32>
    %191 = arith.mulf %153, %190 : vector<33x512xf32>
    %192 = arith.truncf %191 : vector<33x512xf32> to vector<33x512xbf16>
    %c0_101 = arith.constant 0 : index
    %c0_102 = arith.constant 0 : index
    %c0_103 = arith.constant 0 : index
    %193 = vector.load %arg13[%c0_101, %c0_102, %c0_103] : memref<1x512x128xbf16, #tpu.memory_space<vmem>>, vector<1x512x128xbf16>
    %194 = vector.shape_cast %193 : vector<1x512x128xbf16> to vector<512x128xbf16>
    %cst_104 = arith.constant dense<0.000000e+00> : vector<33x128xf32>
    %195 = tpu.matmul %192, %194, %cst_104 {dimension_numbers = #tpu.dot_dimension_numbers<[1], [0], [0], [1], [0, 0, 1, 1], [], []>} : vector<33x512xbf16>, vector<512x128xbf16>, vector<33x128xf32> -> vector<33x128xf32>
    %196 = arith.addf %144, %195 : vector<33x128xf32>
    %197 = arith.addf %118, %196 : vector<33x128xf32>
    %c0_105 = arith.constant 0 : index
    %c0_106 = arith.constant 0 : index
    %c0_107 = arith.constant 0 : index
    %198 = vector.load %arg14[%c0_105, %c0_106, %c0_107] : memref<1x1x128xf32, #tpu.memory_space<vmem>>, vector<1x1x128xf32>
    %199 = vector.shape_cast %198 : vector<1x1x128xf32> to vector<1x128xf32>
    %200 = vector.broadcast %199 : vector<1x128xf32> to vector<33x128xf32>
    %201 = arith.addf %197, %200 : vector<33x128xf32>
    %c0_108 = arith.constant 0 : index
    %c0_109 = arith.constant 0 : index
    %202 = vector.load %arg16[%c0_108, %c0_109] : memref<33x128xf32, #tpu.memory_space<vmem>>, vector<33x128xf32>
    tpu.vector_store %arg16[%c0_108, %c0_109], %201 {strides = array<i32>} : memref<33x128xf32, #tpu.memory_space<vmem>>, vector<33x128xf32>,
    %c1_i32 = arith.constant 1 : i32
    %203 = arith.cmpi eq, %arg1, %c1_i32 : i32
    %204 = arith.extui %203 : i1 to i32
    %c0_i32_110 = arith.constant 0 : i32
    %205 = arith.cmpi ne, %204, %c0_i32_110 : i32
    scf.if %205 {
      %c0_111 = arith.constant 0 : index
      %c0_112 = arith.constant 0 : index
      %c0_113 = arith.constant 0 : index
      %206 = vector.load %arg15[%c0_111, %c0_112, %c0_113] : memref<1x33x128xf32, #tpu.memory_space<vmem>>, vector<1x33x128xf32>
      %207 = vector.shape_cast %206 : vector<1x33x128xf32> to vector<33x128xf32>
      %208 = vector.shape_cast %201 : vector<33x128xf32> to vector<1x33x128xf32>
      tpu.vector_store %arg15[%c0_111, %c0_112, %c0_113], %208 {strides = array<i32>} : memref<1x33x128xf32, #tpu.memory_space<vmem>>, vector<1x33x128xf32>,
    } else {
    }
    return
  }
  func.func @transform_0(%arg0: i32, %arg1: i32) -> (i32, i32, i32) {
    %c0_i32 = arith.constant 0 : i32
    %c0_i32_0 = arith.constant 0 : i32
    %c0_i32_1 = arith.constant 0 : i32
    return %arg0, %c0_i32, %c0_i32_0 : i32, i32, i32
  }
  func.func @transform_1(%arg0: i32, %arg1: i32) -> (i32, i32, i32) {
    %c0_i32 = arith.constant 0 : i32
    %c0_i32_0 = arith.constant 0 : i32
    %c0_i32_1 = arith.constant 0 : i32
    return %arg1, %c0_i32, %c0_i32_0 : i32, i32, i32
  }
  func.func @transform_2(%arg0: i32, %arg1: i32) -> (i32, i32, i32) {
    %c0_i32 = arith.constant 0 : i32
    %c0_i32_0 = arith.constant 0 : i32
    %c0_i32_1 = arith.constant 0 : i32
    return %arg1, %c0_i32, %c0_i32_0 : i32, i32, i32
  }
  func.func @transform_3(%arg0: i32, %arg1: i32) -> (i32, i32, i32) {
    %c0_i32 = arith.constant 0 : i32
    %c0_i32_0 = arith.constant 0 : i32
    %c0_i32_1 = arith.constant 0 : i32
    return %arg1, %c0_i32, %c0_i32_0 : i32, i32, i32
  }
  func.func @transform_4(%arg0: i32, %arg1: i32) -> (i32, i32, i32) {
    %c0_i32 = arith.constant 0 : i32
    %c0_i32_0 = arith.constant 0 : i32
    %c0_i32_1 = arith.constant 0 : i32
    return %arg1, %c0_i32, %c0_i32_0 : i32, i32, i32
  }
  func.func @transform_5(%arg0: i32, %arg1: i32) -> (i32, i32, i32) {
    %c0_i32 = arith.constant 0 : i32
    %c0_i32_0 = arith.constant 0 : i32
    %c0_i32_1 = arith.constant 0 : i32
    return %arg1, %c0_i32, %c0_i32_0 : i32, i32, i32
  }
  func.func @transform_6(%arg0: i32, %arg1: i32) -> (i32, i32, i32) {
    %c0_i32 = arith.constant 0 : i32
    %c0_i32_0 = arith.constant 0 : i32
    %c0_i32_1 = arith.constant 0 : i32
    return %arg1, %c0_i32, %c0_i32_0 : i32, i32, i32
  }
  func.func @transform_7(%arg0: i32, %arg1: i32) -> (i32, i32, i32) {
    %c0_i32 = arith.constant 0 : i32
    %c0_i32_0 = arith.constant 0 : i32
    %c0_i32_1 = arith.constant 0 : i32
    return %arg1, %c0_i32, %c0_i32_0 : i32, i32, i32
  }
  func.func @transform_8(%arg0: i32, %arg1: i32) -> (i32, i32, i32) {
    %c0_i32 = arith.constant 0 : i32
    %c0_i32_0 = arith.constant 0 : i32
    %c0_i32_1 = arith.constant 0 : i32
    return %arg1, %c0_i32, %c0_i32_0 : i32, i32, i32
  }
  func.func @transform_9(%arg0: i32, %arg1: i32) -> (i32, i32, i32) {
    %c0_i32 = arith.constant 0 : i32
    %c0_i32_0 = arith.constant 0 : i32
    %c0_i32_1 = arith.constant 0 : i32
    return %arg1, %c0_i32, %c0_i32_0 : i32, i32, i32
  }
  func.func @transform_10(%arg0: i32, %arg1: i32) -> (i32, i32, i32) {
    %c0_i32 = arith.constant 0 : i32
    %c0_i32_0 = arith.constant 0 : i32
    %c0_i32_1 = arith.constant 0 : i32
    return %arg1, %c0_i32, %c0_i32_0 : i32, i32, i32
  }
  func.func @transform_11(%arg0: i32, %arg1: i32) -> (i32, i32, i32) {
    %c0_i32 = arith.constant 0 : i32
    %c0_i32_0 = arith.constant 0 : i32
    %c0_i32_1 = arith.constant 0 : i32
    return %arg1, %c0_i32, %c0_i32_0 : i32, i32, i32
  }
  func.func @transform_12(%arg0: i32, %arg1: i32) -> (i32, i32, i32) {
    %c0_i32 = arith.constant 0 : i32
    %c0_i32_0 = arith.constant 0 : i32
    %c0_i32_1 = arith.constant 0 : i32
    return %arg1, %c0_i32, %c0_i32_0 : i32, i32, i32
  }
  func.func @transform_13(%arg0: i32, %arg1: i32) -> (i32, i32, i32) {
    %c0_i32 = arith.constant 0 : i32
    %c0_i32_0 = arith.constant 0 : i32
    %c0_i32_1 = arith.constant 0 : i32
    return %arg0, %c0_i32, %c0_i32_0 : i32, i32, i32
  }
}

module attributes {stable_mosaic.version = 11 : i64} {
  func.func @_head_kernel(%arg0: memref<2x128xf32, #tpu.memory_space<vmem>>, %arg1: memref<1x128xf32, #tpu.memory_space<vmem>>, %arg2: memref<1x128xf32, #tpu.memory_space<vmem>>, %arg3: memref<128x5xbf16, #tpu.memory_space<vmem>>, %arg4: memref<1x5xf32, #tpu.memory_space<vmem>>, %arg5: memref<2x5xf32, #tpu.memory_space<vmem>>) attributes {dimension_semantics = [], scalar_prefetch = 0 : i64, scratch_operands = 0 : i64, tpu.core_type = #tpu.core_type<tc>} {
    %c0 = arith.constant 0 : index
    %c0_0 = arith.constant 0 : index
    %0 = vector.load %arg0[%c0, %c0_0] : memref<2x128xf32, #tpu.memory_space<vmem>>, vector<2x128xf32>
    %c0_1 = arith.constant 0 : index
    %c0_2 = arith.constant 0 : index
    %1 = vector.load %arg1[%c0_1, %c0_2] : memref<1x128xf32, #tpu.memory_space<vmem>>, vector<1x128xf32>
    %c0_3 = arith.constant 0 : index
    %c0_4 = arith.constant 0 : index
    %2 = vector.load %arg2[%c0_3, %c0_4] : memref<1x128xf32, #tpu.memory_space<vmem>>, vector<1x128xf32>
    %cst = arith.constant dense<0.000000e+00> : vector<2xf32>
    %3 = vector.multi_reduction <add>, %0, %cst [1] : vector<2x128xf32> to vector<2xf32>
    %4 = vector.shape_cast %3 : vector<2xf32> to vector<2x1xf32>
    %cst_5 = arith.constant 1.280000e+02 : f32
    %5 = vector.broadcast %cst_5 : f32 to vector<2x1xf32>
    %6 = arith.divf %4, %5 : vector<2x1xf32>
    %7 = vector.broadcast %6 : vector<2x1xf32> to vector<2x128xf32>
    %8 = arith.subf %0, %7 : vector<2x128xf32>
    %9 = arith.mulf %8, %8 : vector<2x128xf32>
    %cst_6 = arith.constant dense<0.000000e+00> : vector<2xf32>
    %10 = vector.multi_reduction <add>, %9, %cst_6 [1] : vector<2x128xf32> to vector<2xf32>
    %11 = vector.shape_cast %10 : vector<2xf32> to vector<2x1xf32>
    %cst_7 = arith.constant 1.280000e+02 : f32
    %12 = vector.broadcast %cst_7 : f32 to vector<2x1xf32>
    %13 = arith.divf %11, %12 : vector<2x1xf32>
    %cst_8 = arith.constant 9.99999974E-6 : f32
    %14 = vector.broadcast %cst_8 : f32 to vector<2x1xf32>
    %15 = arith.addf %13, %14 : vector<2x1xf32>
    %16 = math.rsqrt %15 : vector<2x1xf32>
    %17 = vector.broadcast %16 : vector<2x1xf32> to vector<2x128xf32>
    %18 = arith.mulf %8, %17 : vector<2x128xf32>
    %19 = vector.broadcast %1 : vector<1x128xf32> to vector<2x128xf32>
    %20 = arith.mulf %18, %19 : vector<2x128xf32>
    %21 = vector.broadcast %2 : vector<1x128xf32> to vector<2x128xf32>
    %22 = arith.addf %20, %21 : vector<2x128xf32>
    %23 = arith.truncf %22 : vector<2x128xf32> to vector<2x128xbf16>
    %c0_9 = arith.constant 0 : index
    %c0_10 = arith.constant 0 : index
    %24 = vector.load %arg3[%c0_9, %c0_10] : memref<128x5xbf16, #tpu.memory_space<vmem>>, vector<128x5xbf16>
    %cst_11 = arith.constant dense<0.000000e+00> : vector<2x5xf32>
    %25 = tpu.matmul %23, %24, %cst_11 {dimension_numbers = #tpu.dot_dimension_numbers<[1], [0], [0], [1], [0, 0, 1, 1], [], []>} : vector<2x128xbf16>, vector<128x5xbf16>, vector<2x5xf32> -> vector<2x5xf32>
    %c0_12 = arith.constant 0 : index
    %c0_13 = arith.constant 0 : index
    %26 = vector.load %arg4[%c0_12, %c0_13] : memref<1x5xf32, #tpu.memory_space<vmem>>, vector<1x5xf32>
    %27 = vector.broadcast %26 : vector<1x5xf32> to vector<2x5xf32>
    %28 = arith.addf %25, %27 : vector<2x5xf32>
    %c0_14 = arith.constant 0 : index
    %c0_15 = arith.constant 0 : index
    %29 = vector.load %arg5[%c0_14, %c0_15] : memref<2x5xf32, #tpu.memory_space<vmem>>, vector<2x5xf32>
    tpu.vector_store %arg5[%c0_14, %c0_15], %28 {strides = array<i32>} : memref<2x5xf32, #tpu.memory_space<vmem>>, vector<2x5xf32>,
    return
  }
}

</mosaic_0001>

<llo_original>
// kernel: _lambda_.3
$region0: #{_lambda_.3}
  #allocation0 [shape = 'u32[]', space=smem, size = 0x4, offset = 0x4, fixed_abs, tag = 'smem constant byte address 0x4 - core index']
  #allocation1 [shape = 'u32[144,128]{1,0:T(1,128)}', space=vmem, size = 0x12000, scoped, tag = 'internal scratch']
  %s0 = inlined_call_operand.vmem [shape: bf16[2,1,32,8,8], index: 0, kind: input, shape index: {}]
  %s1 = inlined_call_operand.vmem [shape: bf16[1,8,8,128], index: 1, kind: input, shape index: {}]
  %s2 = inlined_call_operand.vmem [shape: f32[1,128], index: 2, kind: input, shape index: {}]
  %s3 = inlined_call_operand.vmem [shape: f32[4,8,128], index: 3, kind: input, shape index: {}]
  %s4 = inlined_call_operand.vmem [shape: f32[2,4,8,128], index: 4, kind: output, shape index: {}]
  %s5 = sld [smem:[#allocation0]]
  $region49: #{_lambda_.3} parent=0
    _
  %s7 = ssub.s32 1, %s5
  %s8 = scalar_select 0, %s7, %s5
  loop: start=0, step=1, limit=10
  $region2: #{_lambda_.3} parent=0 // loop_pre_header
    _
  $region3: #{_lambda_.3} parent=0 // loop_header
    %s10 = sphi 0, %s14
    %p11 = scmp.ge.s32.totalorder %s10, 10
    %s17 = sphi 0, %s29
    %s18 = sphi 0, %s25
    %s19 = sphi 0, %s17
    %s20 = sphi 0, %s18
    %s21 = sphi 0, %s19
    %s22 = sphi 0, %s20
    %s34 = sphi 0, %s36
    %s37 = sphi 0, %s34
    %s38 = sphi 0, %s37
    %s54 = sphi 0, %s38
    %s58 = sphi 0, %s58
    %s60 = sphi 0, %s58
    %s61 = sphi 0, %s60
    %s75 = sphi 0, %s61
    %s79 = sphi 0, %s79
    %s81 = sphi 0, %s79
    %s82 = sphi 0, %s81
    %s96 = sphi 0, %s82
    %s102 = sphi 0, %s104
    %s105 = sphi 0, %s102
    %s106 = sphi 0, %s105
    %s122 = sphi 0, %s106
    %s130 = sphi 0, %s132
    %s133 = sphi 0, %s130
    %s134 = sphi 0, %s133
    %s150 = sphi 0, %s134
  $region4: #{_lambda_.3} parent=0 // loop_header_branch
    %13 = sbr.rel (%p11) target = $region8
  $region5: #{_lambda_.3} parent=0 // loop_body
    %s15 = ssub.s32 %s10, 1
    %s16 = ssub.s32 %s10, 2
    %s23 = sadd.s32 1, %s18
    %p24 = scmp.ge.s32.totalorder %s23, 4
    %s25 = scalar_select %p24, 0, %s23
    %s26 = sadd.s32 1, %s17
    %s27 = scalar_select %p24, %s26, %s17
    %p28 = scmp.ge.s32.totalorder %s27, 2
    %s29 = scalar_select %p28, 0, %s27
    %s30 = ssub.s32 %s17, %s29
    %s31 = ssub.s32 %s18, %s25
    %s32 = sor.u32 %s30, %s31
    %p33 = scmp.eq.s32.totalorder %s32, 0
    %s35 = sadd.s32 %s34, 1
    %s36 = scalar_select %p33, %s34, %s35
    %p39 = pneg %p33
    %p40 = scmp.eq.s32.totalorder %s10, 7
    %p41 = por %p39, %p40
    %p42 = scmp.ne.s32.totalorder %s34, %s37
    %p43 = scmp.eq.s32.totalorder %s10, 0
    %p44 = por %p42, %p43
    %p45 = scmp.ne.s32.totalorder %s34, %s37
    %p46 = scmp.eq.s32.totalorder %s15, 7
    %p47 = por %p45, %p46
    %p48 = scmp.ne.s32.totalorder %s37, %s38
    %p49 = scmp.eq.s32.totalorder %s15, 0
    %p50 = por %p48, %p49
    %p51 = scmp.ne.s32.totalorder %s37, %s38
    %p52 = scmp.eq.s32.totalorder %s16, 7
    %p53 = por %p51, %p52
    %p55 = scmp.ne.s32.totalorder %s38, %s54
    %p56 = scmp.eq.s32.totalorder %s16, 0
    %p57 = por %p55, %p56
    %s59 = sadd.s32 %s58, 1
    %p62 = scmp.eq.s32.totalorder %s10, 7
    %p63 = scmp.ne.s32.totalorder %s58, %s60
    %p64 = scmp.eq.s32.totalorder %s10, 0
    %p65 = por %p63, %p64
    %p66 = scmp.ne.s32.totalorder %s58, %s60
    %p67 = scmp.eq.s32.totalorder %s15, 7
    %p68 = por %p66, %p67
    %p69 = scmp.ne.s32.totalorder %s60, %s61
    %p70 = scmp.eq.s32.totalorder %s15, 0
    %p71 = por %p69, %p70
    %p72 = scmp.ne.s32.totalorder %s60, %s61
    %p73 = scmp.eq.s32.totalorder %s16, 7
    %p74 = por %p72, %p73
    %p76 = scmp.ne.s32.totalorder %s61, %s75
    %p77 = scmp.eq.s32.totalorder %s16, 0
    %p78 = por %p76, %p77
    %s80 = sadd.s32 %s79, 1
    %p83 = scmp.eq.s32.totalorder %s10, 7
    %p84 = scmp.ne.s32.totalorder %s79, %s81
    %p85 = scmp.eq.s32.totalorder %s10, 0
    %p86 = por %p84, %p85
    %p87 = scmp.ne.s32.totalorder %s79, %s81
    %p88 = scmp.eq.s32.totalorder %s15, 7
    %p89 = por %p87, %p88
    %p90 = scmp.ne.s32.totalorder %s81, %s82
    %p91 = scmp.eq.s32.totalorder %s15, 0
    %p92 = por %p90, %p91
    %p93 = scmp.ne.s32.totalorder %s81, %s82
    %p94 = scmp.eq.s32.totalorder %s16, 7
    %p95 = por %p93, %p94
    %p97 = scmp.ne.s32.totalorder %s82, %s96
    %p98 = scmp.eq.s32.totalorder %s16, 0
    %p99 = por %p97, %p98
    %s100 = ssub.s32 %s18, %s25
    %p101 = scmp.eq.s32.totalorder %s100, 0
    %s103 = sadd.s32 %s102, 1
    %s104 = scalar_select %p101, %s102, %s103
    %p107 = pneg %p101
    %p108 = scmp.eq.s32.totalorder %s10, 7
    %p109 = por %p107, %p108
    %p110 = scmp.ne.s32.totalorder %s102, %s105
    %p111 = scmp.eq.s32.totalorder %s10, 0
    %p112 = por %p110, %p111
    %p113 = scmp.ne.s32.totalorder %s102, %s105
    %p114 = scmp.eq.s32.totalorder %s15, 7
    %p115 = por %p113, %p114
    %p116 = scmp.ne.s32.totalorder %s105, %s106
    %p117 = scmp.eq.s32.totalorder %s15, 0
    %p118 = por %p116, %p117
    %p119 = scmp.ne.s32.totalorder %s105, %s106
    %p120 = scmp.eq.s32.totalorder %s16, 7
    %p121 = por %p119, %p120
    %p123 = scmp.ne.s32.totalorder %s106, %s122
    %p124 = scmp.eq.s32.totalorder %s16, 0
    %p125 = por %p123, %p124
    %s126 = ssub.s32 %s17, %s29
    %s127 = ssub.s32 %s18, %s25
    %s128 = sor.u32 %s126, %s127
    %p129 = scmp.eq.s32.totalorder %s128, 0
    %s131 = sadd.s32 %s130, 1
    %s132 = scalar_select %p129, %s130, %s131
    %p135 = pneg %p129
    %p136 = scmp.eq.s32.totalorder %s10, 7
    %p137 = por %p135, %p136
    %p138 = scmp.ne.s32.totalorder %s130, %s133
    %p139 = scmp.eq.s32.totalorder %s10, 0
    %p140 = por %p138, %p139
    %p141 = scmp.ne.s32.totalorder %s130, %s133
    %p142 = scmp.eq.s32.totalorder %s15, 7
    %p143 = por %p141, %p142
    %p144 = scmp.ne.s32.totalorder %s133, %s134
    %p145 = scmp.eq.s32.totalorder %s15, 0
    %p146 = por %p144, %p145
    %p147 = scmp.ne.s32.totalorder %s133, %s134
    %p148 = scmp.eq.s32.totalorder %s16, 7
    %p149 = por %p147, %p148
    %p151 = scmp.ne.s32.totalorder %s134, %s150
    %p152 = scmp.eq.s32.totalorder %s16, 0
    %p153 = por %p151, %p152
    %p154 = scmp.le.s32.totalorder 1, %s10
    %p155 = scmp.lt.s32.totalorder %s10, 9
    %p156 = pnand %p154, %p155
    %p157 = pneg %p156
    // Predicated region
    $region9: #{_lambda_.3} parent=5 // pred_check
      _
    $region10: #{_lambda_.3} parent=5 // pred_check_branch
      %159 = sbr.rel (%p156) target = $region12
    $region11: #{_lambda_.3} parent=5 // pred_region
      %s160 = ssub.s32 %s10, 1
      // Predicated region
      $region13: #{_lambda_.3} parent=11 // pred_check
        %p161 = pneg %p71
      $region14: #{_lambda_.3} parent=11 // pred_check_branch
        %163 = sbr.rel (%p161) target = $region16
      $region15: #{_lambda_.3} parent=11 // pred_region
        _
      $region16: #{_lambda_.3} parent=11 // pred_fallthru
        _
      // Predicated region
      $region17: #{_lambda_.3} parent=11 // pred_check
        %p164 = pneg %p92
      $region18: #{_lambda_.3} parent=11 // pred_check_branch
        %166 = sbr.rel (%p164) target = $region20
      $region19: #{_lambda_.3} parent=11 // pred_region
        _
      $region20: #{_lambda_.3} parent=11 // pred_fallthru
        _
    $region12: #{_lambda_.3} parent=5 // pred_fallthru
      _
    %p167 = scmp.lt.s32.totalorder %s10, 8
    // Predicated region
    $region21: #{_lambda_.3} parent=5 // pred_check
      %p168 = pneg %p167
    $region22: #{_lambda_.3} parent=5 // pred_check_branch
      %170 = sbr.rel (%p168) target = $region24
    $region23: #{_lambda_.3} parent=5 // pred_region
      // Predicated region
      $region25: #{_lambda_.3} parent=23 // pred_check
        %p171 = pneg %p44
      $region26: #{_lambda_.3} parent=23 // pred_check_branch
        %173 = sbr.rel (%p171) target = $region28
      $region27: #{_lambda_.3} parent=23 // pred_region
        %s174 = smul.u32 8, %s18
        %p175 = scmp.lt.s32.totalorder %s17, 1
        %s176 = scalar_select %p175, %s17, 1
        %p177 = scmp.lt.s32.totalorder %s174, 31
        %s178 = scalar_select %p177, %s174, 31
        %s179 = smul.addr %s176, 32
        %s180 = sadd.s32 %s178, %s179
        %s181 = smul.addr %s180, 4
        %s182 = scalar_lea.vmem %s0, %s181
        %s183 = smul.u32 8, %s18
      $region28: #{_lambda_.3} parent=23 // pred_fallthru
        _
      // Predicated region
      $region29: #{_lambda_.3} parent=23 // pred_check
        %p184 = pneg %p112
      $region30: #{_lambda_.3} parent=23 // pred_check_branch
        %186 = sbr.rel (%p184) target = $region32
      $region31: #{_lambda_.3} parent=23 // pred_region
        %p187 = scmp.lt.s32.totalorder %s18, 3
        %s188 = scalar_select %p187, %s18, 3
        %s189 = smul.addr %s188, 8
        %s190 = scalar_lea.vmem %s3, %s189
      $region32: #{_lambda_.3} parent=23 // pred_fallthru
        _
    $region24: #{_lambda_.3} parent=5 // pred_fallthru
      _
    %p191 = scmp.le.s32.totalorder 1, %s10
    %p192 = scmp.lt.s32.totalorder %s10, 9
    %p193 = pnand %p191, %p192
    %p194 = pneg %p193
    // Predicated region
    $region33: #{_lambda_.3} parent=5 // pred_check
      _
    $region34: #{_lambda_.3} parent=5 // pred_check_branch
      %196 = sbr.rel (%p193) target = $region36
    $region35: #{_lambda_.3} parent=5 // pred_region
      %s197 = ssub.s32 %s10, 1
      %s198 = smul.u32 8, %s20
      %p199 = scmp.lt.s32.totalorder %s19, 1
      %s200 = scalar_select %p199, %s19, 1
      %p201 = scmp.lt.s32.totalorder %s198, 31
      %s202 = scalar_select %p201, %s198, 31
      %s203 = smul.addr %s200, 32
      %s204 = sadd.s32 %s202, %s203
      %s205 = smul.addr %s204, 4
      %s206 = scalar_lea.vmem %s0, %s205
      %p207 = pneg %p50
      %p208 = pneg %p47
      %p209 = pneg %p71
      %p210 = pneg %p68
      %p211 = pneg %p92
      %p212 = pneg %p89
      %p213 = scmp.lt.s32.totalorder %s20, 3
      %s214 = scalar_select %p213, %s20, 3
      %s215 = smul.addr %s214, 8
      %s216 = scalar_lea.vmem %s3, %s215
      %p217 = pneg %p118
      %p218 = pneg %p115
      %p219 = pneg %p146
      %p220 = pneg %p143
      %p221 = scmp.lt.s32.totalorder %s19, 1
      %s222 = scalar_select %p221, %s19, 1
      %p223 = scmp.lt.s32.totalorder %s20, 3
      %s224 = scalar_select %p223, %s20, 3
      %s225 = smul.addr %s222, 4
      %s226 = sadd.s32 %s224, %s225
      %s227 = smul.addr %s226, 8
      %s228 = scalar_lea.vmem %s4, %s227
      %s229 = smul.u32 8, %s20
      %p230 = scmp.lt.s32.totalorder %s19, 1
      %s231 = scalar_select %p230, %s19, 1
      %p232 = scmp.lt.s32.totalorder %s229, 31
      %s233 = scalar_select %p232, %s229, 31
      %s234 = smul.addr %s231, 32
      %s235 = sadd.s32 %s233, %s234
      %s236 = smul.addr %s235, 4
      %s237 = scalar_lea.vmem %s0, %s236
      %s238 = smul.u32 8, %s20
      %p239 = scmp.lt.s32.totalorder %s20, 3
      %s240 = scalar_select %p239, %s20, 3
      %s241 = smul.addr %s240, 8
      %s242 = scalar_lea.vmem %s3, %s241
      %p243 = scmp.lt.s32.totalorder %s19, 1
      %s244 = scalar_select %p243, %s19, 1
      %p245 = scmp.lt.s32.totalorder %s20, 3
      %s246 = scalar_select %p245, %s20, 3
      %s247 = smul.addr %s244, 4
      %s248 = sadd.s32 %s246, %s247
      %s249 = smul.addr %s248, 8
      %s250 = scalar_lea.vmem %s4, %s249
      %v252 = vld [vmem:[%s242] sm:$0xff]
      %v253 = vld [vmem:[%s2] sm:$0x1]
      %v255 = vlaneseq
      %v256 = vshrl.u32 %v255, 7
      %v257 = vsub.s32 0, %v256
      %v258 = vrot.slane %v253, %v257
      %v260 = vadd.f32 %v252, %v258
      %v261 = vld [vmem:[%s237] sm:$0xf]
      %v262 = vld [vmem:[%s1] sm:$0xf]
      %vm263 = vcmask 64512
      %v265 = vsel %vm263, %v261, 0
      %vm267 = vcmask 1043456
      %v269 = vsel %vm267, %v262, 0
      %271 = vmatprep.subr.bf16.mxu0 0
      %272 = vmatpush1.bf16.msra.mxu0 %v269
      %273 = vmatprep.subr.bf16.mxu0 0
      %274 = vmatpush1.bf16.msra.mxu0 0
      %275 = vmatprep.subr.bf16.mxu0 0
      %276 = vmatpush1.bf16.msra.mxu0 0
      %277 = vmatprep.subr.bf16.mxu0 0
      %278 = vmatpush1.bf16.msra.mxu0 0
      %279 = vmatprep.subr.bf16.mxu0 0
      %280 = vmatpush1.bf16.msra.mxu0 0
      %281 = vmatprep.subr.bf16.mxu0 0
      %282 = vmatpush1.bf16.msra.mxu0 0
      %283 = vmatprep.subr.bf16.mxu0 0
      %284 = vmatpush1.bf16.msra.mxu0 0
      %285 = vmatprep.subr.bf16.mxu0 0
      %286 = vmatpush1.bf16.msra.mxu0 0
      %287 = vmatprep.subr.bf16.mxu0 0
      %288 = vmatpush1.bf16.msra.mxu0 0
      %289 = vmatprep.subr.bf16.mxu0 0
      %290 = vmatpush1.bf16.msra.mxu0 0
      %291 = vmatprep.subr.bf16.mxu0 0
      %292 = vmatpush1.bf16.msra.mxu0 0
      %293 = vmatprep.subr.bf16.mxu0 0
      %294 = vmatpush1.bf16.msra.mxu0 0
      %295 = vmatprep.subr.bf16.mxu0 0
      %296 = vmatpush1.bf16.msra.mxu0 0
      %297 = vmatprep.subr.bf16.mxu0 0
      %298 = vmatpush1.bf16.msra.mxu0 0
      %299 = vmatprep.subr.bf16.mxu0 0
      %300 = vmatpush1.bf16.msra.mxu0 0
      %301 = vmatprep.subr.bf16.mxu0 0
      %302 = vmatpush1.bf16.msra.mxu0 0
      %303 = vmatprep.mubr.bf16.mxu0 0
      %304 = vmatmul.mubr.bf16.gmra.mrb[0].mxu0 %v265
      %v305 = vpop.f32.mrb[0].mxu0
      %v306 = vadd.f32 0.0, %v305
      %v307 = vpop.f32.mrb[0].mxu0
      %v308 = vpop.f32.mrb[0].mxu0
      %v309 = vpop.f32.mrb[0].mxu0
      %310 = vdwg.mxu0
      %v311 = vadd.f32 %v260, %v306
      %s312 = scalar_lea.vmem %s237, 4
      %v313 = vld [vmem:[%s312] sm:$0xf]
      %s314 = scalar_lea.vmem %s1, 4
      %v315 = vld [vmem:[%s314] sm:$0xf]
      %v317 = vsel %vm263, %v313, 0
      %v320 = vsel %vm267, %v315, 0
      %322 = vmatprep.subr.bf16.mxu0 0
      %323 = vmatpush1.bf16.msra.mxu0 %v320
      %324 = vmatprep.subr.bf16.mxu0 0
      %325 = vmatpush1.bf16.msra.mxu0 0
      %326 = vmatprep.subr.bf16.mxu0 0
      %327 = vmatpush1.bf16.msra.mxu0 0
      %328 = vmatprep.subr.bf16.mxu0 0
      %329 = vmatpush1.bf16.msra.mxu0 0
      %330 = vmatprep.subr.bf16.mxu0 0
      %331 = vmatpush1.bf16.msra.mxu0 0
      %332 = vmatprep.subr.bf16.mxu0 0
      %333 = vmatpush1.bf16.msra.mxu0 0
      %334 = vmatprep.subr.bf16.mxu0 0
      %335 = vmatpush1.bf16.msra.mxu0 0
      %336 = vmatprep.subr.bf16.mxu0 0
      %337 = vmatpush1.bf16.msra.mxu0 0
      %338 = vmatprep.subr.bf16.mxu0 0
      %339 = vmatpush1.bf16.msra.mxu0 0
      %340 = vmatprep.subr.bf16.mxu0 0
      %341 = vmatpush1.bf16.msra.mxu0 0
      %342 = vmatprep.subr.bf16.mxu0 0
      %343 = vmatpush1.bf16.msra.mxu0 0
      %344 = vmatprep.subr.bf16.mxu0 0
      %345 = vmatpush1.bf16.msra.mxu0 0
      %346 = vmatprep.subr.bf16.mxu0 0
      %347 = vmatpush1.bf16.msra.mxu0 0
      %348 = vmatprep.subr.bf16.mxu0 0
      %349 = vmatpush1.bf16.msra.mxu0 0
      %350 = vmatprep.subr.bf16.mxu0 0
      %351 = vmatpush1.bf16.msra.mxu0 0
      %352 = vmatprep.subr.bf16.mxu0 0
      %353 = vmatpush1.bf16.msra.mxu0 0
      %354 = vmatprep.mubr.bf16.mxu0 0
      %355 = vmatmul.mubr.bf16.gmra.mrb[0].mxu0 %v317
      %v356 = vpop.f32.mrb[0].mxu0
      %v357 = vadd.f32 0.0, %v356
      %v358 = vpop.f32.mrb[0].mxu0
      %v359 = vpop.f32.mrb[0].mxu0
      %v360 = vpop.f32.mrb[0].mxu0
      %361 = vdwg.mxu0
      %v362 = vadd.f32 %v311, %v357
      %s363 = scalar_lea.vmem %s237, 8
      %v364 = vld [vmem:[%s363] sm:$0xf]
      %s365 = scalar_lea.vmem %s1, 8
      %v366 = vld [vmem:[%s365] sm:$0xf]
      %v368 = vsel %vm263, %v364, 0
      %v371 = vsel %vm267, %v366, 0
      %373 = vmatprep.subr.bf16.mxu0 0
      %374 = vmatpush1.bf16.msra.mxu0 %v371
      %375 = vmatprep.subr.bf16.mxu0 0
      %376 = vmatpush1.bf16.msra.mxu0 0
      %377 = vmatprep.subr.bf16.mxu0 0
      %378 = vmatpush1.bf16.msra.mxu0 0
      %379 = vmatprep.subr.bf16.mxu0 0
      %380 = vmatpush1.bf16.msra.mxu0 0
      %381 = vmatprep.subr.bf16.mxu0 0
      %382 = vmatpush1.bf16.msra.mxu0 0
      %383 = vmatprep.subr.bf16.mxu0 0
      %384 = vmatpush1.bf16.msra.mxu0 0
      %385 = vmatprep.subr.bf16.mxu0 0
      %386 = vmatpush1.bf16.msra.mxu0 0
      %387 = vmatprep.subr.bf16.mxu0 0
      %388 = vmatpush1.bf16.msra.mxu0 0
      %389 = vmatprep.subr.bf16.mxu0 0
      %390 = vmatpush1.bf16.msra.mxu0 0
      %391 = vmatprep.subr.bf16.mxu0 0
      %392 = vmatpush1.bf16.msra.mxu0 0
      %393 = vmatprep.subr.bf16.mxu0 0
      %394 = vmatpush1.bf16.msra.mxu0 0
      %395 = vmatprep.subr.bf16.mxu0 0
      %396 = vmatpush1.bf16.msra.mxu0 0
      %397 = vmatprep.subr.bf16.mxu0 0
      %398 = vmatpush1.bf16.msra.mxu0 0
      %399 = vmatprep.subr.bf16.mxu0 0
      %400 = vmatpush1.bf16.msra.mxu0 0
      %401 = vmatprep.subr.bf16.mxu0 0
      %402 = vmatpush1.bf16.msra.mxu0 0
      %403 = vmatprep.subr.bf16.mxu0 0
      %404 = vmatpush1.bf16.msra.mxu0 0
      %405 = vmatprep.mubr.bf16.mxu0 0
      %406 = vmatmul.mubr.bf16.gmra.mrb[0].mxu0 %v368
      %v407 = vpop.f32.mrb[0].mxu0
      %v408 = vadd.f32 0.0, %v407
      %v409 = vpop.f32.mrb[0].mxu0
      %v410 = vpop.f32.mrb[0].mxu0
      %v411 = vpop.f32.mrb[0].mxu0
      %412 = vdwg.mxu0
      %v413 = vadd.f32 %v362, %v408
      %s414 = scalar_lea.vmem %s237, 12
      %v415 = vld [vmem:[%s414] sm:$0xf]
      %s416 = scalar_lea.vmem %s1, 12
      %v417 = vld [vmem:[%s416] sm:$0xf]
      %v419 = vsel %vm263, %v415, 0
      %v422 = vsel %vm267, %v417, 0
      %424 = vmatprep.subr.bf16.mxu0 0
      %425 = vmatpush1.bf16.msra.mxu0 %v422
      %426 = vmatprep.subr.bf16.mxu0 0
      %427 = vmatpush1.bf16.msra.mxu0 0
      %428 = vmatprep.subr.bf16.mxu0 0
      %429 = vmatpush1.bf16.msra.mxu0 0
      %430 = vmatprep.subr.bf16.mxu0 0
      %431 = vmatpush1.bf16.msra.mxu0 0
      %432 = vmatprep.subr.bf16.mxu0 0
      %433 = vmatpush1.bf16.msra.mxu0 0
      %434 = vmatprep.subr.bf16.mxu0 0
      %435 = vmatpush1.bf16.msra.mxu0 0
      %436 = vmatprep.subr.bf16.mxu0 0
      %437 = vmatpush1.bf16.msra.mxu0 0
      %438 = vmatprep.subr.bf16.mxu0 0
      %439 = vmatpush1.bf16.msra.mxu0 0
      %440 = vmatprep.subr.bf16.mxu0 0
      %441 = vmatpush1.bf16.msra.mxu0 0
      %442 = vmatprep.subr.bf16.mxu0 0
      %443 = vmatpush1.bf16.msra.mxu0 0
      %444 = vmatprep.subr.bf16.mxu0 0
      %445 = vmatpush1.bf16.msra.mxu0 0
      %446 = vmatprep.subr.bf16.mxu0 0
      %447 = vmatpush1.bf16.msra.mxu0 0
      %448 = vmatprep.subr.bf16.mxu0 0
      %449 = vmatpush1.bf16.msra.mxu0 0
      %450 = vmatprep.subr.bf16.mxu0 0
      %451 = vmatpush1.bf16.msra.mxu0 0
      %452 = vmatprep.subr.bf16.mxu0 0
      %453 = vmatpush1.bf16.msra.mxu0 0
      %454 = vmatprep.subr.bf16.mxu0 0
      %455 = vmatpush1.bf16.msra.mxu0 0
      %456 = vmatprep.mubr.bf16.mxu0 0
      %457 = vmatmul.mubr.bf16.gmra.mrb[0].mxu0 %v419
      %v458 = vpop.f32.mrb[0].mxu0
      %v459 = vadd.f32 0.0, %v458
      %v460 = vpop.f32.mrb[0].mxu0
      %v461 = vpop.f32.mrb[0].mxu0
      %v462 = vpop.f32.mrb[0].mxu0
      %463 = vdwg.mxu0
      %v464 = vadd.f32 %v413, %v459
      %s465 = scalar_lea.vmem %s237, 16
      %v466 = vld [vmem:[%s465] sm:$0xf]
      %s467 = scalar_lea.vmem %s1, 16
      %v468 = vld [vmem:[%s467] sm:$0xf]
      %v470 = vsel %vm263, %v466, 0
      %v473 = vsel %vm267, %v468, 0
      %475 = vmatprep.subr.bf16.mxu0 0
      %476 = vmatpush1.bf16.msra.mxu0 %v473
      %477 = vmatprep.subr.bf16.mxu0 0
      %478 = vmatpush1.bf16.msra.mxu0 0
      %479 = vmatprep.subr.bf16.mxu0 0
      %480 = vmatpush1.bf16.msra.mxu0 0
      %481 = vmatprep.subr.bf16.mxu0 0
      %482 = vmatpush1.bf16.msra.mxu0 0
      %483 = vmatprep.subr.bf16.mxu0 0
      %484 = vmatpush1.bf16.msra.mxu0 0
      %485 = vmatprep.subr.bf16.mxu0 0
      %486 = vmatpush1.bf16.msra.mxu0 0
      %487 = vmatprep.subr.bf16.mxu0 0
      %488 = vmatpush1.bf16.msra.mxu0 0
      %489 = vmatprep.subr.bf16.mxu0 0
      %490 = vmatpush1.bf16.msra.mxu0 0
      %491 = vmatprep.subr.bf16.mxu0 0
      %492 = vmatpush1.bf16.msra.mxu0 0
      %493 = vmatprep.subr.bf16.mxu0 0
      %494 = vmatpush1.bf16.msra.mxu0 0
      %495 = vmatprep.subr.bf16.mxu0 0
      %496 = vmatpush1.bf16.msra.mxu0 0
      %497 = vmatprep.subr.bf16.mxu0 0
      %498 = vmatpush1.bf16.msra.mxu0 0
      %499 = vmatprep.subr.bf16.mxu0 0
      %500 = vmatpush1.bf16.msra.mxu0 0
      %501 = vmatprep.subr.bf16.mxu0 0
      %502 = vmatpush1.bf16.msra.mxu0 0
      %503 = vmatprep.subr.bf16.mxu0 0
      %504 = vmatpush1.bf16.msra.mxu0 0
      %505 = vmatprep.subr.bf16.mxu0 0
      %506 = vmatpush1.bf16.msra.mxu0 0
      %507 = vmatprep.mubr.bf16.mxu0 0
      %508 = vmatmul.mubr.bf16.gmra.mrb[0].mxu0 %v470
      %v509 = vpop.f32.mrb[0].mxu0
      %v510 = vadd.f32 0.0, %v509
      %v511 = vpop.f32.mrb[0].mxu0
      %v512 = vpop.f32.mrb[0].mxu0
      %v513 = vpop.f32.mrb[0].mxu0
      %514 = vdwg.mxu0
      %v515 = vadd.f32 %v464, %v510
      %s516 = scalar_lea.vmem %s237, 20
      %v517 = vld [vmem:[%s516] sm:$0xf]
      %s518 = scalar_lea.vmem %s1, 20
      %v519 = vld [vmem:[%s518] sm:$0xf]
      %v521 = vsel %vm263, %v517, 0
      %v524 = vsel %vm267, %v519, 0
      %526 = vmatprep.subr.bf16.mxu0 0
      %527 = vmatpush1.bf16.msra.mxu0 %v524
      %528 = vmatprep.subr.bf16.mxu0 0
      %529 = vmatpush1.bf16.msra.mxu0 0
      %530 = vmatprep.subr.bf16.mxu0 0
      %531 = vmatpush1.bf16.msra.mxu0 0
      %532 = vmatprep.subr.bf16.mxu0 0
      %533 = vmatpush1.bf16.msra.mxu0 0
      %534 = vmatprep.subr.bf16.mxu0 0
      %535 = vmatpush1.bf16.msra.mxu0 0
      %536 = vmatprep.subr.bf16.mxu0 0
      %537 = vmatpush1.bf16.msra.mxu0 0
      %538 = vmatprep.subr.bf16.mxu0 0
      %539 = vmatpush1.bf16.msra.mxu0 0
      %540 = vmatprep.subr.bf16.mxu0 0
      %541 = vmatpush1.bf16.msra.mxu0 0
      %542 = vmatprep.subr.bf16.mxu0 0
      %543 = vmatpush1.bf16.msra.mxu0 0
      %544 = vmatprep.subr.bf16.mxu0 0
      %545 = vmatpush1.bf16.msra.mxu0 0
      %546 = vmatprep.subr.bf16.mxu0 0
      %547 = vmatpush1.bf16.msra.mxu0 0
      %548 = vmatprep.subr.bf16.mxu0 0
      %549 = vmatpush1.bf16.msra.mxu0 0
      %550 = vmatprep.subr.bf16.mxu0 0
      %551 = vmatpush1.bf16.msra.mxu0 0
      %552 = vmatprep.subr.bf16.mxu0 0
      %553 = vmatpush1.bf16.msra.mxu0 0
      %554 = vmatprep.subr.bf16.mxu0 0
      %555 = vmatpush1.bf16.msra.mxu0 0
      %556 = vmatprep.subr.bf16.mxu0 0
      %557 = vmatpush1.bf16.msra.mxu0 0
      %558 = vmatprep.mubr.bf16.mxu0 0
      %559 = vmatmul.mubr.bf16.gmra.mrb[0].mxu0 %v521
      %v560 = vpop.f32.mrb[0].mxu0
      %v561 = vadd.f32 0.0, %v560
      %v562 = vpop.f32.mrb[0].mxu0
      %v563 = vpop.f32.mrb[0].mxu0
      %v564 = vpop.f32.mrb[0].mxu0
      %565 = vdwg.mxu0
      %v566 = vadd.f32 %v515, %v561
      %s567 = scalar_lea.vmem %s237, 24
      %v568 = vld [vmem:[%s567] sm:$0xf]
      %s569 = scalar_lea.vmem %s1, 24
      %v570 = vld [vmem:[%s569] sm:$0xf]
      %v572 = vsel %vm263, %v568, 0
      %v575 = vsel %vm267, %v570, 0
      %577 = vmatprep.subr.bf16.mxu0 0
      %578 = vmatpush1.bf16.msra.mxu0 %v575
      %579 = vmatprep.subr.bf16.mxu0 0
      %580 = vmatpush1.bf16.msra.mxu0 0
      %581 = vmatprep.subr.bf16.mxu0 0
      %582 = vmatpush1.bf16.msra.mxu0 0
      %583 = vmatprep.subr.bf16.mxu0 0
      %584 = vmatpush1.bf16.msra.mxu0 0
      %585 = vmatprep.subr.bf16.mxu0 0
      %586 = vmatpush1.bf16.msra.mxu0 0
      %587 = vmatprep.subr.bf16.mxu0 0
      %588 = vmatpush1.bf16.msra.mxu0 0
      %589 = vmatprep.subr.bf16.mxu0 0
      %590 = vmatpush1.bf16.msra.mxu0 0
      %591 = vmatprep.subr.bf16.mxu0 0
      %592 = vmatpush1.bf16.msra.mxu0 0
      %593 = vmatprep.subr.bf16.mxu0 0
      %594 = vmatpush1.bf16.msra.mxu0 0
      %595 = vmatprep.subr.bf16.mxu0 0
      %596 = vmatpush1.bf16.msra.mxu0 0
      %597 = vmatprep.subr.bf16.mxu0 0
      %598 = vmatpush1.bf16.msra.mxu0 0
      %599 = vmatprep.subr.bf16.mxu0 0
      %600 = vmatpush1.bf16.msra.mxu0 0
      %601 = vmatprep.subr.bf16.mxu0 0
      %602 = vmatpush1.bf16.msra.mxu0 0
      %603 = vmatprep.subr.bf16.mxu0 0
      %604 = vmatpush1.bf16.msra.mxu0 0
      %605 = vmatprep.subr.bf16.mxu0 0
      %606 = vmatpush1.bf16.msra.mxu0 0
      %607 = vmatprep.subr.bf16.mxu0 0
      %608 = vmatpush1.bf16.msra.mxu0 0
      %609 = vmatprep.mubr.bf16.mxu0 0
      %610 = vmatmul.mubr.bf16.gmra.mrb[0].mxu0 %v572
      %v611 = vpop.f32.mrb[0].mxu0
      %v612 = vadd.f32 0.0, %v611
      %v613 = vpop.f32.mrb[0].mxu0
      %v614 = vpop.f32.mrb[0].mxu0
      %v615 = vpop.f32.mrb[0].mxu0
      %616 = vdwg.mxu0
      %v617 = vadd.f32 %v566, %v612
      %s618 = scalar_lea.vmem %s237, 28
      %v619 = vld [vmem:[%s618] sm:$0xf]
      %s620 = scalar_lea.vmem %s1, 28
      %v621 = vld [vmem:[%s620] sm:$0xf]
      %v623 = vsel %vm263, %v619, 0
      %v626 = vsel %vm267, %v621, 0
      %628 = vmatprep.subr.bf16.mxu0 0
      %629 = vmatpush1.bf16.msra.mxu0 %v626
      %630 = vmatprep.subr.bf16.mxu0 0
      %631 = vmatpush1.bf16.msra.mxu0 0
      %632 = vmatprep.subr.bf16.mxu0 0
      %633 = vmatpush1.bf16.msra.mxu0 0
      %634 = vmatprep.subr.bf16.mxu0 0
      %635 = vmatpush1.bf16.msra.mxu0 0
      %636 = vmatprep.subr.bf16.mxu0 0
      %637 = vmatpush1.bf16.msra.mxu0 0
      %638 = vmatprep.subr.bf16.mxu0 0
      %639 = vmatpush1.bf16.msra.mxu0 0
      %640 = vmatprep.subr.bf16.mxu0 0
      %641 = vmatpush1.bf16.msra.mxu0 0
      %642 = vmatprep.subr.bf16.mxu0 0
      %643 = vmatpush1.bf16.msra.mxu0 0
      %644 = vmatprep.subr.bf16.mxu0 0
      %645 = vmatpush1.bf16.msra.mxu0 0
      %646 = vmatprep.subr.bf16.mxu0 0
      %647 = vmatpush1.bf16.msra.mxu0 0
      %648 = vmatprep.subr.bf16.mxu0 0
      %649 = vmatpush1.bf16.msra.mxu0 0
      %650 = vmatprep.subr.bf16.mxu0 0
      %651 = vmatpush1.bf16.msra.mxu0 0
      %652 = vmatprep.subr.bf16.mxu0 0
      %653 = vmatpush1.bf16.msra.mxu0 0
      %654 = vmatprep.subr.bf16.mxu0 0
      %655 = vmatpush1.bf16.msra.mxu0 0
      %656 = vmatprep.subr.bf16.mxu0 0
      %657 = vmatpush1.bf16.msra.mxu0 0
      %658 = vmatprep.subr.bf16.mxu0 0
      %659 = vmatpush1.bf16.msra.mxu0 0
      %660 = vmatprep.mubr.bf16.mxu0 0
      %661 = vmatmul.mubr.bf16.gmra.mrb[0].mxu0 %v623
      %v662 = vpop.f32.mrb[0].mxu0
      %v663 = vadd.f32 0.0, %v662
      %v664 = vpop.f32.mrb[0].mxu0
      %v665 = vpop.f32.mrb[0].mxu0
      %v666 = vpop.f32.mrb[0].mxu0
      %667 = vdwg.mxu0
      %v668 = vadd.f32 %v617, %v663
      %669 = vst [vmem:[%s250] sm:$0xff] %v668
      %p670 = scmp.lt.s32.totalorder %s19, 1
      %s671 = scalar_select %p670, %s19, 1
      %p672 = scmp.lt.s32.totalorder %s20, 3
      %s673 = scalar_select %p672, %s20, 3
      %s674 = smul.addr %s671, 4
      %s675 = sadd.s32 %s673, %s674
      %s676 = smul.addr %s675, 8
      %s677 = scalar_lea.vmem %s4, %s676
      // Predicated region
      $region37: #{_lambda_.3} parent=35 // pred_check
        %p678 = pneg %p143
      $region38: #{_lambda_.3} parent=35 // pred_check_branch
        %680 = sbr.rel (%p678) target = $region40
      $region39: #{_lambda_.3} parent=35 // pred_region
        _
      $region40: #{_lambda_.3} parent=35 // pred_fallthru
        _
    $region36: #{_lambda_.3} parent=5 // pred_fallthru
      _
    %p681 = scmp.le.s32.totalorder 2, %s10
    // Predicated region
    $region41: #{_lambda_.3} parent=5 // pred_check
      %p682 = pneg %p681
    $region42: #{_lambda_.3} parent=5 // pred_check_branch
      %684 = sbr.rel (%p682) target = $region44
    $region43: #{_lambda_.3} parent=5 // pred_region
      %s685 = ssub.s32 %s10, 2
      // Predicated region
      $region45: #{_lambda_.3} parent=43 // pred_check
        %p686 = pneg %p149
      $region46: #{_lambda_.3} parent=43 // pred_check_branch
        %688 = sbr.rel (%p686) target = $region48
      $region47: #{_lambda_.3} parent=43 // pred_region
        %p689 = scmp.lt.s32.totalorder %s21, 1
        %s690 = scalar_select %p689, %s21, 1
        %p691 = scmp.lt.s32.totalorder %s22, 3
        %s692 = scalar_select %p691, %s22, 3
        %s693 = smul.addr %s690, 4
        %s694 = sadd.s32 %s692, %s693
        %s695 = smul.addr %s694, 8
        %s696 = scalar_lea.vmem %s4, %s695
      $region48: #{_lambda_.3} parent=43 // pred_fallthru
        _
    $region44: #{_lambda_.3} parent=5 // pred_fallthru
      _
  $region6: #{_lambda_.3} parent=0 // loop_footer
    %s14 = sadd.s32 1, %s10
  $region7: #{_lambda_.3} parent=0 // loop_footer_branch
    %9 = sbr.rel target = $region3
  $region8: #{_lambda_.3} parent=0 // loop_exit
    _

// kernel: _lambda_.5
$region0: #{_lambda_.5}
  #allocation0 [shape = 'u32[]', space=smem, size = 0x4, offset = 0x4, fixed_abs, tag = 'smem constant byte address 0x4 - core index']
  #allocation1 [shape = 'u32[144,128]{1,0:T(1,128)}', space=vmem, size = 0x12000, scoped, tag = 'internal scratch']
  %s0 = inlined_call_operand.vmem [shape: f32[2,128], index: 0, kind: input, shape index: {}]
  %s1 = inlined_call_operand.vmem [shape: f32[1,128], index: 1, kind: input, shape index: {}]
  %s2 = inlined_call_operand.vmem [shape: f32[1,128], index: 2, kind: input, shape index: {}]
  %s3 = inlined_call_operand.vmem [shape: bf16[128,5], index: 3, kind: input, shape index: {}]
  %s4 = inlined_call_operand.vmem [shape: f32[1,5], index: 4, kind: input, shape index: {}]
  %s5 = inlined_call_operand.hbm [shape: f32[2,5], index: 5, kind: output, shape index: {}]
  %s6 = sld [smem:[#allocation0]]
  $region30: #{_lambda_.5} parent=0
    _
  %s8 = ssub.s32 1, %s6
  %s9 = scalar_select 0, %s8, %s6
  $region1: #{_lambda_.5} parent=0
    #allocation2 [shape = 'u8[1024]{0}', space=vmem, size = 0x400, scoped, tag = 'output window, operand 0, single buffered']
    #allocation3 [shape = 's32[1]{0}', space=sflag, size = 0x4, scoped, tag = 'scoped memory for _lambda_.5']
    %10 = vsyncpa [#allocation3], 0
    // Predicated region
    $region2: #{_lambda_.5} parent=1 // pred_check
      _
    $region3: #{_lambda_.5} parent=1 // pred_check_branch
      %12 = sbr.rel (0) target = $region5
    $region4: #{_lambda_.5} parent=1 // pred_region
      _
    $region5: #{_lambda_.5} parent=1 // pred_fallthru
      _
    // Predicated region
    $region6: #{_lambda_.5} parent=1 // pred_check
      _
    $region7: #{_lambda_.5} parent=1 // pred_check_branch
      %14 = sbr.rel (0) target = $region9
    $region8: #{_lambda_.5} parent=1 // pred_region
      _
    $region9: #{_lambda_.5} parent=1 // pred_fallthru
      _
    // Predicated region
    $region10: #{_lambda_.5} parent=1 // pred_check
      _
    $region11: #{_lambda_.5} parent=1 // pred_check_branch
      %16 = sbr.rel (0) target = $region13
    $region12: #{_lambda_.5} parent=1 // pred_region
      _
    $region13: #{_lambda_.5} parent=1 // pred_fallthru
      _
    // Predicated region
    $region14: #{_lambda_.5} parent=1 // pred_check
      _
    $region15: #{_lambda_.5} parent=1 // pred_check_branch
      %18 = sbr.rel (0) target = $region17
    $region16: #{_lambda_.5} parent=1 // pred_region
      _
    $region17: #{_lambda_.5} parent=1 // pred_fallthru
      _
    // Predicated region
    $region18: #{_lambda_.5} parent=1 // pred_check
      _
    $region19: #{_lambda_.5} parent=1 // pred_check_branch
      %20 = sbr.rel (0) target = $region21
    $region20: #{_lambda_.5} parent=1 // pred_region
      _
    $region21: #{_lambda_.5} parent=1 // pred_fallthru
      _
    %v22 = vld [vmem:[%s0] sm:$0x3]
    %v23 = vld [vmem:[%s1] sm:$0x1]
    %v24 = vld [vmem:[%s2] sm:$0x1]
    %vm25 = vcmask 1041408
    %v26 = vsel %vm25, %v22, 0.0
    %27 = vadd.xlane.f32.xlu0 %v26
    %v28 = vpop.xlane.xlu0 %27
    %v29 = vrcp.pop 128.0
    %v30 = vmul.f32 %v28, %v29
    %v31 = vsub.f32 %v22, %v30
    %v32 = vmul.f32 %v31, %v31
    %v33 = vsel %vm25, %v32, 0.0
    %34 = vadd.xlane.f32.xlu0 %v33
    %v35 = vpop.xlane.xlu0 %34
    %v36 = vmul.f32 %v35, %v29
    %v37 = vadd.f32 %v36, 1e-05
    %v38 = vrsqrt.pop %v37
    %v39 = vmul.f32 %v31, %v38
    %v41 = vlaneseq
    %v42 = vshrl.u32 %v41, 7
    %v43 = vsub.s32 0, %v42
    %v44 = vrot.slane %v23, %v43
    %v46 = vmul.f32 %v39, %v44
    %v48 = vlaneseq
    %v49 = vshrl.u32 %v48, 7
    %v50 = vsub.s32 0, %v49
    %v51 = vrot.slane %v24, %v50
    %v53 = vadd.f32 %v46, %v51
    %v54 = vpack.c.bf16 %v53, %v53
    %v55 = vld [vmem:[%s3] sm:$0xf]
    %v56 = vld [vmem:[%s3 + $0x4] sm:$0xf]
    %v57 = vld [vmem:[%s3 + $0x8] sm:$0xf]
    %v58 = vld [vmem:[%s3 + $0xc] sm:$0xf]
    %v59 = vld [vmem:[%s3 + $0x10] sm:$0xf]
    %v60 = vld [vmem:[%s3 + $0x14] sm:$0xf]
    %v61 = vld [vmem:[%s3 + $0x18] sm:$0xf]
    %v62 = vld [vmem:[%s3 + $0x1c] sm:$0xf]
    %v63 = vld [vmem:[%s3 + $0x20] sm:$0xf]
    %v64 = vld [vmem:[%s3 + $0x24] sm:$0xf]
    %v65 = vld [vmem:[%s3 + $0x28] sm:$0xf]
    %v66 = vld [vmem:[%s3 + $0x2c] sm:$0xf]
    %v67 = vld [vmem:[%s3 + $0x30] sm:$0xf]
    %v68 = vld [vmem:[%s3 + $0x34] sm:$0xf]
    %v69 = vld [vmem:[%s3 + $0x38] sm:$0xf]
    %v70 = vld [vmem:[%s3 + $0x3c] sm:$0xf]
    %v71 = vld [vmem:[%s4] sm:$0x1]
    %v73 = vlaneseq
    %v74 = vshrl.u32 %v73, 7
    %v75 = vsub.s32 0, %v74
    %v76 = vrot.slane %v71, %v75
    %v94 = vunpack.c.l.b16 %v55
    %v95 = vunpack.c.l.b16 %v56
    %v96 = vunpack.c.l.b16 %v57
    %v97 = vunpack.c.l.b16 %v58
    %v98 = vunpack.c.l.b16 %v59
    %v99 = vunpack.c.l.b16 %v60
    %v100 = vunpack.c.l.b16 %v61
    %v101 = vunpack.c.l.b16 %v62
    %v102 = vunpack.c.l.b16 %v63
    %v103 = vunpack.c.l.b16 %v64
    %v104 = vunpack.c.l.b16 %v65
    %v105 = vunpack.c.l.b16 %v66
    %v106 = vunpack.c.l.b16 %v67
    %v107 = vunpack.c.l.b16 %v68
    %v108 = vunpack.c.l.b16 %v69
    %v109 = vunpack.c.l.b16 %v70
    %v110 = vpack.c.b16 %v95, %v94
    %v111 = vpack.c.b16 %v97, %v96
    %v112 = vpack.c.b16 %v99, %v98
    %v113 = vpack.c.b16 %v101, %v100
    %v114 = vpack.c.b16 %v103, %v102
    %v115 = vpack.c.b16 %v105, %v104
    %v116 = vpack.c.b16 %v107, %v106
    %v117 = vpack.c.b16 %v109, %v108
    %126 = vmatprep.subr.bf16.mxu0 0
    %127 = vmatpush1.bf16.msra.mxu0 %v110
    %128 = vmatprep.subr.bf16.mxu0 0
    %129 = vmatpush1.bf16.msra.mxu0 %v111
    %130 = vmatprep.subr.bf16.mxu0 0
    %131 = vmatpush1.bf16.msra.mxu0 %v112
    %132 = vmatprep.subr.bf16.mxu0 0
    %133 = vmatpush1.bf16.msra.mxu0 %v113
    %134 = vmatprep.subr.bf16.mxu0 0
    %135 = vmatpush1.bf16.msra.mxu0 %v114
    %136 = vmatprep.subr.bf16.mxu0 0
    %137 = vmatpush1.bf16.msra.mxu0 %v115
    %138 = vmatprep.subr.bf16.mxu0 0
    %139 = vmatpush1.bf16.msra.mxu0 %v116
    %140 = vmatprep.subr.bf16.mxu0 0
    %141 = vmatpush1.bf16.msra.mxu0 %v117
    %142 = vmatprep.subr.bf16.mxu0 0
    %143 = vmatpush1.bf16.msra.mxu0 0
    %144 = vmatprep.subr.bf16.mxu0 0
    %145 = vmatpush1.bf16.msra.mxu0 0
    %146 = vmatprep.subr.bf16.mxu0 0
    %147 = vmatpush1.bf16.msra.mxu0 0
    %148 = vmatprep.subr.bf16.mxu0 0
    %149 = vmatpush1.bf16.msra.mxu0 0
    %150 = vmatprep.subr.bf16.mxu0 0
    %151 = vmatpush1.bf16.msra.mxu0 0
    %152 = vmatprep.subr.bf16.mxu0 0
    %153 = vmatpush1.bf16.msra.mxu0 0
    %154 = vmatprep.subr.bf16.mxu0 0
    %155 = vmatpush1.bf16.msra.mxu0 0
    %156 = vmatprep.subr.bf16.mxu0 0
    %157 = vmatpush1.bf16.msra.mxu0 0
    %158 = vmatprep.mubr.bf16.mxu0 0
    %159 = vmatmul.mubr.bf16.gmra.mrb[0].mxu0 %v54
    %v160 = vpop.f32.mrb[0].mxu0
    %v161 = vadd.f32 %v76, %v160
    %v162 = vpop.f32.mrb[0].mxu0
    %v163 = vpop.f32.mrb[0].mxu0
    %v164 = vpop.f32.mrb[0].mxu0
    %165 = vdwg.mxu0
    %vm166 = vcmask 33792
    %167 = vst.msk [vmem:[#allocation2] sm:$0x3] %vm166, %v161
    // Predicated region
    $region22: #{_lambda_.5} parent=1 // pred_check
      _
    $region23: #{_lambda_.5} parent=1 // pred_check_branch
      %169 = sbr.rel (0) target = $region25
    $region24: #{_lambda_.5} parent=1 // pred_region
      %s171 = ssub.s32 32, 32
      %172 = vsyncadd [#allocation3], %s171
      %s174 = sshll.u32 [#allocation2], 4
      %s175 = int_to_ptr.vmem [resolvable:$true] %s174
      %177 = dma.vmem_to_hbm [thread:$0]  %s175, 32, %s5, [#allocation3]
    $region25: #{_lambda_.5} parent=1 // pred_fallthru
      _
    // Predicated region
    $region26: #{_lambda_.5} parent=1 // pred_check
      _
    $region27: #{_lambda_.5} parent=1 // pred_check_branch
      %179 = sbr.rel (0) target = $region29
    $region28: #{_lambda_.5} parent=1 // pred_region
      %180 = dma.done [#allocation3], 32
    $region29: #{_lambda_.5} parent=1 // pred_fallthru
      _
    %181 = vsyncpa [#allocation3], 1

// kernel: _lambda_.4
$region0: #{_lambda_.4}
  #allocation0 [shape = 'u32[]', space=smem, size = 0x4, offset = 0x4, fixed_abs, tag = 'smem constant byte address 0x4 - core index']
  #allocation1 [shape = 'u32[144,128]{1,0:T(1,128)}', space=vmem, size = 0x12000, scoped, tag = 'internal scratch']
  #allocation2 [shape = 'f32[33,128]{1,0:T(8,128)}', space=vmem, size = 0x5000, scoped, tag = 'scratch operand']
  #allocation3 [shape = 'bf16[33,384]{1,0:T(8,128)(2,1)}', space=vmem, size = 0x7800, scoped, tag = 'scratch operand']
  #allocation4 [shape = 'bf16[33,128]{1,0:T(8,128)(2,1)}', space=vmem, size = 0x2800, scoped, tag = 'scratch operand']
  %s0 = inlined_call_operand.vmem [shape: f32[2,33,128], index: 0, kind: input, shape index: {}]
  %s1 = inlined_call_operand.vmem [shape: f32[2,1,128], index: 1, kind: input, shape index: {}]
  %s2 = inlined_call_operand.vmem [shape: f32[2,1,128], index: 2, kind: input, shape index: {}]
  %s3 = inlined_call_operand.vmem [shape: bf16[2,128,384], index: 3, kind: input, shape index: {}]
  %s4 = inlined_call_operand.vmem [shape: f32[2,1,384], index: 4, kind: input, shape index: {}]
  %s5 = inlined_call_operand.hbm [shape: bf16[2,128,128], index: 5, kind: input, shape index: {}]
  %s6 = inlined_call_operand.vmem [shape: f32[2,1,128], index: 6, kind: input, shape index: {}]
  %s7 = inlined_call_operand.vmem [shape: f32[2,1,128], index: 7, kind: input, shape index: {}]
  %s8 = inlined_call_operand.vmem [shape: f32[2,1,128], index: 8, kind: input, shape index: {}]
  %s9 = inlined_call_operand.vmem [shape: bf16[2,128,512], index: 9, kind: input, shape index: {}]
  %s10 = inlined_call_operand.vmem [shape: f32[2,1,512], index: 10, kind: input, shape index: {}]
  %s11 = inlined_call_operand.hbm [shape: bf16[2,512,128], index: 11, kind: input, shape index: {}]
  %s12 = inlined_call_operand.vmem [shape: f32[2,1,128], index: 12, kind: input, shape index: {}]
  %s13 = inlined_call_operand.vmem [shape: f32[2,33,128], index: 13, kind: output, shape index: {}]
  %s14 = sld [smem:[#allocation0]]
  $region101: #{_lambda_.4} parent=0
    _
  %s16 = ssub.s32 1, %s14
  %s17 = scalar_select 0, %s16, %s14
  $region1: #{_lambda_.4} parent=0
    #allocation5 [shape = 'u8[65536]{0}', space=vmem, size = 0x10000, scoped, tag = 'input window, operand 5']
    #allocation6 [shape = 's32[2]{0}', space=sflag, size = 0x8, scoped, tag = 'scoped memory for _lambda_.4']
    #allocation7 [shape = 'u8[262144]{0}', space=vmem, size = 0x40000, scoped, tag = 'input window, operand 11']
    #allocation8 [shape = 's32[2]{0}', space=sflag, size = 0x8, scoped, tag = 'scoped memory for _lambda_.4']
    %18 = vsyncpa [#allocation6], 0
    %s19 = scalar_lea.sflag [#allocation6], 1
    %20 = vsyncpa %s19, 0
    %21 = vsyncpa [#allocation8], 0
    %s22 = scalar_lea.sflag [#allocation8], 1
    %23 = vsyncpa %s22, 0
    loop: start=0, step=1, limit=6
    $region2: #{_lambda_.4} parent=1 // loop_pre_header
      _
    $region3: #{_lambda_.4} parent=1 // loop_header
      %s25 = sphi 0, %s29
      %p26 = scmp.ge.s32.totalorder %s25, 6
      %s32 = sphi 0, %s44
      %s33 = sphi 0, %s40
      %s34 = sphi 0, %s32
      %s35 = sphi 0, %s33
      %s36 = sphi 0, %s34
      %s37 = sphi 0, %s35
      %s47 = sphi 0, %s49
      %s50 = sphi 0, %s47
      %s51 = sphi 0, %s50
      %s67 = sphi 0, %s51
      %s73 = sphi 0, %s75
      %s76 = sphi 0, %s73
      %s77 = sphi 0, %s76
      %s93 = sphi 0, %s77
      %s99 = sphi 0, %s101
      %s102 = sphi 0, %s99
      %s103 = sphi 0, %s102
      %s119 = sphi 0, %s103
      %s125 = sphi 0, %s127
      %s128 = sphi 0, %s125
      %s129 = sphi 0, %s128
      %s145 = sphi 0, %s129
      %s151 = sphi 0, %s153
      %s154 = sphi 0, %s151
      %s155 = sphi 0, %s154
      %s171 = sphi 0, %s155
      %s177 = sphi 0, %s179
      %s180 = sphi 0, %s177
      %s181 = sphi 0, %s180
      %s197 = sphi 0, %s181
      %s203 = sphi 0, %s205
      %s206 = sphi 0, %s203
      %s207 = sphi 0, %s206
      %s223 = sphi 0, %s207
      %s229 = sphi 0, %s231
      %s232 = sphi 0, %s229
      %s233 = sphi 0, %s232
      %s249 = sphi 0, %s233
      %s255 = sphi 0, %s257
      %s258 = sphi 0, %s255
      %s259 = sphi 0, %s258
      %s275 = sphi 0, %s259
      %s281 = sphi 0, %s283
      %s284 = sphi 0, %s281
      %s285 = sphi 0, %s284
      %s301 = sphi 0, %s285
      %s307 = sphi 0, %s309
      %s310 = sphi 0, %s307
      %s311 = sphi 0, %s310
      %s327 = sphi 0, %s311
      %s333 = sphi 0, %s335
      %s336 = sphi 0, %s333
      %s337 = sphi 0, %s336
      %s353 = sphi 0, %s337
      %s359 = sphi 0, %s361
      %s362 = sphi 0, %s359
      %s363 = sphi 0, %s362
      %s379 = sphi 0, %s363
      %s385 = sphi 0, %s387
      %s388 = sphi 0, %s385
      %s389 = sphi 0, %s388
      %s405 = sphi 0, %s389
    $region4: #{_lambda_.4} parent=1 // loop_header_branch
      %28 = sbr.rel (%p26) target = $region8
    $region5: #{_lambda_.4} parent=1 // loop_body
      %s30 = ssub.s32 %s25, 1
      %s31 = ssub.s32 %s25, 2
      %s38 = sadd.s32 1, %s33
      %p39 = scmp.ge.s32.totalorder %s38, 2
      %s40 = scalar_select %p39, 0, %s38
      %s41 = sadd.s32 1, %s32
      %s42 = scalar_select %p39, %s41, %s32
      %p43 = scmp.ge.s32.totalorder %s42, 2
      %s44 = scalar_select %p43, 0, %s42
      %s45 = ssub.s32 %s32, %s44
      %p46 = scmp.eq.s32.totalorder %s45, 0
      %s48 = sadd.s32 %s47, 1
      %s49 = scalar_select %p46, %s47, %s48
      %p52 = pneg %p46
      %p53 = scmp.eq.s32.totalorder %s25, 3
      %p54 = por %p52, %p53
      %p55 = scmp.ne.s32.totalorder %s47, %s50
      %p56 = scmp.eq.s32.totalorder %s25, 0
      %p57 = por %p55, %p56
      %p58 = scmp.ne.s32.totalorder %s47, %s50
      %p59 = scmp.eq.s32.totalorder %s30, 3
      %p60 = por %p58, %p59
      %p61 = scmp.ne.s32.totalorder %s50, %s51
      %p62 = scmp.eq.s32.totalorder %s30, 0
      %p63 = por %p61, %p62
      %p64 = scmp.ne.s32.totalorder %s50, %s51
      %p65 = scmp.eq.s32.totalorder %s31, 3
      %p66 = por %p64, %p65
      %p68 = scmp.ne.s32.totalorder %s51, %s67
      %p69 = scmp.eq.s32.totalorder %s31, 0
      %p70 = por %p68, %p69
      %s71 = ssub.s32 %s33, %s40
      %p72 = scmp.eq.s32.totalorder %s71, 0
      %s74 = sadd.s32 %s73, 1
      %s75 = scalar_select %p72, %s73, %s74
      %p78 = pneg %p72
      %p79 = scmp.eq.s32.totalorder %s25, 3
      %p80 = por %p78, %p79
      %p81 = scmp.ne.s32.totalorder %s73, %s76
      %p82 = scmp.eq.s32.totalorder %s25, 0
      %p83 = por %p81, %p82
      %p84 = scmp.ne.s32.totalorder %s73, %s76
      %p85 = scmp.eq.s32.totalorder %s30, 3
      %p86 = por %p84, %p85
      %p87 = scmp.ne.s32.totalorder %s76, %s77
      %p88 = scmp.eq.s32.totalorder %s30, 0
      %p89 = por %p87, %p88
      %p90 = scmp.ne.s32.totalorder %s76, %s77
      %p91 = scmp.eq.s32.totalorder %s31, 3
      %p92 = por %p90, %p91
      %p94 = scmp.ne.s32.totalorder %s77, %s93
      %p95 = scmp.eq.s32.totalorder %s31, 0
      %p96 = por %p94, %p95
      %s97 = ssub.s32 %s33, %s40
      %p98 = scmp.eq.s32.totalorder %s97, 0
      %s100 = sadd.s32 %s99, 1
      %s101 = scalar_select %p98, %s99, %s100
      %p104 = pneg %p98
      %p105 = scmp.eq.s32.totalorder %s25, 3
      %p106 = por %p104, %p105
      %p107 = scmp.ne.s32.totalorder %s99, %s102
      %p108 = scmp.eq.s32.totalorder %s25, 0
      %p109 = por %p107, %p108
      %p110 = scmp.ne.s32.totalorder %s99, %s102
      %p111 = scmp.eq.s32.totalorder %s30, 3
      %p112 = por %p110, %p111
      %p113 = scmp.ne.s32.totalorder %s102, %s103
      %p114 = scmp.eq.s32.totalorder %s30, 0
      %p115 = por %p113, %p114
      %p116 = scmp.ne.s32.totalorder %s102, %s103
      %p117 = scmp.eq.s32.totalorder %s31, 3
      %p118 = por %p116, %p117
      %p120 = scmp.ne.s32.totalorder %s103, %s119
      %p121 = scmp.eq.s32.totalorder %s31, 0
      %p122 = por %p120, %p121
      %s123 = ssub.s32 %s33, %s40
      %p124 = scmp.eq.s32.totalorder %s123, 0
      %s126 = sadd.s32 %s125, 1
      %s127 = scalar_select %p124, %s125, %s126
      %p130 = pneg %p124
      %p131 = scmp.eq.s32.totalorder %s25, 3
      %p132 = por %p130, %p131
      %p133 = scmp.ne.s32.totalorder %s125, %s128
      %p134 = scmp.eq.s32.totalorder %s25, 0
      %p135 = por %p133, %p134
      %p136 = scmp.ne.s32.totalorder %s125, %s128
      %p137 = scmp.eq.s32.totalorder %s30, 3
      %p138 = por %p136, %p137
      %p139 = scmp.ne.s32.totalorder %s128, %s129
      %p140 = scmp.eq.s32.totalorder %s30, 0
      %p141 = por %p139, %p140
      %p142 = scmp.ne.s32.totalorder %s128, %s129
      %p143 = scmp.eq.s32.totalorder %s31, 3
      %p144 = por %p142, %p143
      %p146 = scmp.ne.s32.totalorder %s129, %s145
      %p147 = scmp.eq.s32.totalorder %s31, 0
      %p148 = por %p146, %p147
      %s149 = ssub.s32 %s33, %s40
      %p150 = scmp.eq.s32.totalorder %s149, 0
      %s152 = sadd.s32 %s151, 1
      %s153 = scalar_select %p150, %s151, %s152
      %p156 = pneg %p150
      %p157 = scmp.eq.s32.totalorder %s25, 3
      %p158 = por %p156, %p157
      %p159 = scmp.ne.s32.totalorder %s151, %s154
      %p160 = scmp.eq.s32.totalorder %s25, 0
      %p161 = por %p159, %p160
      %p162 = scmp.ne.s32.totalorder %s151, %s154
      %p163 = scmp.eq.s32.totalorder %s30, 3
      %p164 = por %p162, %p163
      %p165 = scmp.ne.s32.totalorder %s154, %s155
      %p166 = scmp.eq.s32.totalorder %s30, 0
      %p167 = por %p165, %p166
      %p168 = scmp.ne.s32.totalorder %s154, %s155
      %p169 = scmp.eq.s32.totalorder %s31, 3
      %p170 = por %p168, %p169
      %p172 = scmp.ne.s32.totalorder %s155, %s171
      %p173 = scmp.eq.s32.totalorder %s31, 0
      %p174 = por %p172, %p173
      %s175 = ssub.s32 %s33, %s40
      %p176 = scmp.eq.s32.totalorder %s175, 0
      %s178 = sadd.s32 %s177, 1
      %s179 = scalar_select %p176, %s177, %s178
      %p182 = pneg %p176
      %p183 = scmp.eq.s32.totalorder %s25, 3
      %p184 = por %p182, %p183
      %p185 = scmp.ne.s32.totalorder %s177, %s180
      %p186 = scmp.eq.s32.totalorder %s25, 0
      %p187 = por %p185, %p186
      %p188 = scmp.ne.s32.totalorder %s177, %s180
      %p189 = scmp.eq.s32.totalorder %s30, 3
      %p190 = por %p188, %p189
      %p191 = scmp.ne.s32.totalorder %s180, %s181
      %p192 = scmp.eq.s32.totalorder %s30, 0
      %p193 = por %p191, %p192
      %p194 = scmp.ne.s32.totalorder %s180, %s181
      %p195 = scmp.eq.s32.totalorder %s31, 3
      %p196 = por %p194, %p195
      %p198 = scmp.ne.s32.totalorder %s181, %s197
      %p199 = scmp.eq.s32.totalorder %s31, 0
      %p200 = por %p198, %p199
      %s201 = ssub.s32 %s33, %s40
      %p202 = scmp.eq.s32.totalorder %s201, 0
      %s204 = sadd.s32 %s203, 1
      %s205 = scalar_select %p202, %s203, %s204
      %p208 = pneg %p202
      %p209 = scmp.eq.s32.totalorder %s25, 3
      %p210 = por %p208, %p209
      %p211 = scmp.ne.s32.totalorder %s203, %s206
      %p212 = scmp.eq.s32.totalorder %s25, 0
      %p213 = por %p211, %p212
      %p214 = scmp.ne.s32.totalorder %s203, %s206
      %p215 = scmp.eq.s32.totalorder %s30, 3
      %p216 = por %p214, %p215
      %p217 = scmp.ne.s32.totalorder %s206, %s207
      %p218 = scmp.eq.s32.totalorder %s30, 0
      %p219 = por %p217, %p218
      %p220 = scmp.ne.s32.totalorder %s206, %s207
      %p221 = scmp.eq.s32.totalorder %s31, 3
      %p222 = por %p220, %p221
      %p224 = scmp.ne.s32.totalorder %s207, %s223
      %p225 = scmp.eq.s32.totalorder %s31, 0
      %p226 = por %p224, %p225
      %s227 = ssub.s32 %s33, %s40
      %p228 = scmp.eq.s32.totalorder %s227, 0
      %s230 = sadd.s32 %s229, 1
      %s231 = scalar_select %p228, %s229, %s230
      %p234 = pneg %p228
      %p235 = scmp.eq.s32.totalorder %s25, 3
      %p236 = por %p234, %p235
      %p237 = scmp.ne.s32.totalorder %s229, %s232
      %p238 = scmp.eq.s32.totalorder %s25, 0
      %p239 = por %p237, %p238
      %p240 = scmp.ne.s32.totalorder %s229, %s232
      %p241 = scmp.eq.s32.totalorder %s30, 3
      %p242 = por %p240, %p241
      %p243 = scmp.ne.s32.totalorder %s232, %s233
      %p244 = scmp.eq.s32.totalorder %s30, 0
      %p245 = por %p243, %p244
      %p246 = scmp.ne.s32.totalorder %s232, %s233
      %p247 = scmp.eq.s32.totalorder %s31, 3
      %p248 = por %p246, %p247
      %p250 = scmp.ne.s32.totalorder %s233, %s249
      %p251 = scmp.eq.s32.totalorder %s31, 0
      %p252 = por %p250, %p251
      %s253 = ssub.s32 %s33, %s40
      %p254 = scmp.eq.s32.totalorder %s253, 0
      %s256 = sadd.s32 %s255, 1
      %s257 = scalar_select %p254, %s255, %s256
      %p260 = pneg %p254
      %p261 = scmp.eq.s32.totalorder %s25, 3
      %p262 = por %p260, %p261
      %p263 = scmp.ne.s32.totalorder %s255, %s258
      %p264 = scmp.eq.s32.totalorder %s25, 0
      %p265 = por %p263, %p264
      %p266 = scmp.ne.s32.totalorder %s255, %s258
      %p267 = scmp.eq.s32.totalorder %s30, 3
      %p268 = por %p266, %p267
      %p269 = scmp.ne.s32.totalorder %s258, %s259
      %p270 = scmp.eq.s32.totalorder %s30, 0
      %p271 = por %p269, %p270
      %p272 = scmp.ne.s32.totalorder %s258, %s259
      %p273 = scmp.eq.s32.totalorder %s31, 3
      %p274 = por %p272, %p273
      %p276 = scmp.ne.s32.totalorder %s259, %s275
      %p277 = scmp.eq.s32.totalorder %s31, 0
      %p278 = por %p276, %p277
      %s279 = ssub.s32 %s33, %s40
      %p280 = scmp.eq.s32.totalorder %s279, 0
      %s282 = sadd.s32 %s281, 1
      %s283 = scalar_select %p280, %s281, %s282
      %p286 = pneg %p280
      %p287 = scmp.eq.s32.totalorder %s25, 3
      %p288 = por %p286, %p287
      %p289 = scmp.ne.s32.totalorder %s281, %s284
      %p290 = scmp.eq.s32.totalorder %s25, 0
      %p291 = por %p289, %p290
      %p292 = scmp.ne.s32.totalorder %s281, %s284
      %p293 = scmp.eq.s32.totalorder %s30, 3
      %p294 = por %p292, %p293
      %p295 = scmp.ne.s32.totalorder %s284, %s285
      %p296 = scmp.eq.s32.totalorder %s30, 0
      %p297 = por %p295, %p296
      %p298 = scmp.ne.s32.totalorder %s284, %s285
      %p299 = scmp.eq.s32.totalorder %s31, 3
      %p300 = por %p298, %p299
      %p302 = scmp.ne.s32.totalorder %s285, %s301
      %p303 = scmp.eq.s32.totalorder %s31, 0
      %p304 = por %p302, %p303
      %s305 = ssub.s32 %s33, %s40
      %p306 = scmp.eq.s32.totalorder %s305, 0
      %s308 = sadd.s32 %s307, 1
      %s309 = scalar_select %p306, %s307, %s308
      %p312 = pneg %p306
      %p313 = scmp.eq.s32.totalorder %s25, 3
      %p314 = por %p312, %p313
      %p315 = scmp.ne.s32.totalorder %s307, %s310
      %p316 = scmp.eq.s32.totalorder %s25, 0
      %p317 = por %p315, %p316
      %p318 = scmp.ne.s32.totalorder %s307, %s310
      %p319 = scmp.eq.s32.totalorder %s30, 3
      %p320 = por %p318, %p319
      %p321 = scmp.ne.s32.totalorder %s310, %s311
      %p322 = scmp.eq.s32.totalorder %s30, 0
      %p323 = por %p321, %p322
      %p324 = scmp.ne.s32.totalorder %s310, %s311
      %p325 = scmp.eq.s32.totalorder %s31, 3
      %p326 = por %p324, %p325
      %p328 = scmp.ne.s32.totalorder %s311, %s327
      %p329 = scmp.eq.s32.totalorder %s31, 0
      %p330 = por %p328, %p329
      %s331 = ssub.s32 %s33, %s40
      %p332 = scmp.eq.s32.totalorder %s331, 0
      %s334 = sadd.s32 %s333, 1
      %s335 = scalar_select %p332, %s333, %s334
      %p338 = pneg %p332
      %p339 = scmp.eq.s32.totalorder %s25, 3
      %p340 = por %p338, %p339
      %p341 = scmp.ne.s32.totalorder %s333, %s336
      %p342 = scmp.eq.s32.totalorder %s25, 0
      %p343 = por %p341, %p342
      %p344 = scmp.ne.s32.totalorder %s333, %s336
      %p345 = scmp.eq.s32.totalorder %s30, 3
      %p346 = por %p344, %p345
      %p347 = scmp.ne.s32.totalorder %s336, %s337
      %p348 = scmp.eq.s32.totalorder %s30, 0
      %p349 = por %p347, %p348
      %p350 = scmp.ne.s32.totalorder %s336, %s337
      %p351 = scmp.eq.s32.totalorder %s31, 3
      %p352 = por %p350, %p351
      %p354 = scmp.ne.s32.totalorder %s337, %s353
      %p355 = scmp.eq.s32.totalorder %s31, 0
      %p356 = por %p354, %p355
      %s357 = ssub.s32 %s33, %s40
      %p358 = scmp.eq.s32.totalorder %s357, 0
      %s360 = sadd.s32 %s359, 1
      %s361 = scalar_select %p358, %s359, %s360
      %p364 = pneg %p358
      %p365 = scmp.eq.s32.totalorder %s25, 3
      %p366 = por %p364, %p365
      %p367 = scmp.ne.s32.totalorder %s359, %s362
      %p368 = scmp.eq.s32.totalorder %s25, 0
      %p369 = por %p367, %p368
      %p370 = scmp.ne.s32.totalorder %s359, %s362
      %p371 = scmp.eq.s32.totalorder %s30, 3
      %p372 = por %p370, %p371
      %p373 = scmp.ne.s32.totalorder %s362, %s363
      %p374 = scmp.eq.s32.totalorder %s30, 0
      %p375 = por %p373, %p374
      %p376 = scmp.ne.s32.totalorder %s362, %s363
      %p377 = scmp.eq.s32.totalorder %s31, 3
      %p378 = por %p376, %p377
      %p380 = scmp.ne.s32.totalorder %s363, %s379
      %p381 = scmp.eq.s32.totalorder %s31, 0
      %p382 = por %p380, %p381
      %s383 = ssub.s32 %s32, %s44
      %p384 = scmp.eq.s32.totalorder %s383, 0
      %s386 = sadd.s32 %s385, 1
      %s387 = scalar_select %p384, %s385, %s386
      %p390 = pneg %p384
      %p391 = scmp.eq.s32.totalorder %s25, 3
      %p392 = por %p390, %p391
      %p393 = scmp.ne.s32.totalorder %s385, %s388
      %p394 = scmp.eq.s32.totalorder %s25, 0
      %p395 = por %p393, %p394
      %p396 = scmp.ne.s32.totalorder %s385, %s388
      %p397 = scmp.eq.s32.totalorder %s30, 3
      %p398 = por %p396, %p397
      %p399 = scmp.ne.s32.totalorder %s388, %s389
      %p400 = scmp.eq.s32.totalorder %s30, 0
      %p401 = por %p399, %p400
      %p402 = scmp.ne.s32.totalorder %s388, %s389
      %p403 = scmp.eq.s32.totalorder %s31, 3
      %p404 = por %p402, %p403
      %p406 = scmp.ne.s32.totalorder %s389, %s405
      %p407 = scmp.eq.s32.totalorder %s31, 0
      %p408 = por %p406, %p407
      %p409 = scmp.le.s32.totalorder 1, %s25
      %p410 = scmp.lt.s32.totalorder %s25, 5
      %p411 = pnand %p409, %p410
      %p412 = pneg %p411
      // Predicated region
      $region9: #{_lambda_.4} parent=5 // pred_check
        _
      $region10: #{_lambda_.4} parent=5 // pred_check_branch
        %414 = sbr.rel (%p411) target = $region12
      $region11: #{_lambda_.4} parent=5 // pred_region
        %s415 = ssub.s32 %s25, 1
      $region12: #{_lambda_.4} parent=5 // pred_fallthru
        _
      %p416 = scmp.lt.s32.totalorder %s25, 4
      // Predicated region
      $region13: #{_lambda_.4} parent=5 // pred_check
        %p417 = pneg %p416
      $region14: #{_lambda_.4} parent=5 // pred_check_branch
        %419 = sbr.rel (%p417) target = $region16
      $region15: #{_lambda_.4} parent=5 // pred_region
        // Predicated region
        $region17: #{_lambda_.4} parent=15 // pred_check
          %p420 = pneg %p57
        $region18: #{_lambda_.4} parent=15 // pred_check_branch
          %422 = sbr.rel (%p420) target = $region20
        $region19: #{_lambda_.4} parent=15 // pred_region
          %p423 = scmp.lt.s32.totalorder %s32, 1
          %s424 = scalar_select %p423, %s32, 1
          %s425 = smul.addr %s424, 5
          %s426 = smul.addr %s425, 8
          %s427 = scalar_lea.vmem %s0, %s426
        $region20: #{_lambda_.4} parent=15 // pred_fallthru
          _
        // Predicated region
        $region21: #{_lambda_.4} parent=15 // pred_check
          %p428 = pneg %p83
        $region22: #{_lambda_.4} parent=15 // pred_check_branch
          %430 = sbr.rel (%p428) target = $region24
        $region23: #{_lambda_.4} parent=15 // pred_region
          %p431 = scmp.lt.s32.totalorder %s33, 1
          %s432 = scalar_select %p431, %s33, 1
          %s433 = scalar_lea.vmem %s1, %s432
        $region24: #{_lambda_.4} parent=15 // pred_fallthru
          _
        // Predicated region
        $region25: #{_lambda_.4} parent=15 // pred_check
          %p434 = pneg %p109
        $region26: #{_lambda_.4} parent=15 // pred_check_branch
          %436 = sbr.rel (%p434) target = $region28
        $region27: #{_lambda_.4} parent=15 // pred_region
          %p437 = scmp.lt.s32.totalorder %s33, 1
          %s438 = scalar_select %p437, %s33, 1
          %s439 = scalar_lea.vmem %s2, %s438
        $region28: #{_lambda_.4} parent=15 // pred_fallthru
          _
        // Predicated region
        $region29: #{_lambda_.4} parent=15 // pred_check
          %p440 = pneg %p135
        $region30: #{_lambda_.4} parent=15 // pred_check_branch
          %442 = sbr.rel (%p440) target = $region32
        $region31: #{_lambda_.4} parent=15 // pred_region
          %p443 = scmp.lt.s32.totalorder %s33, 1
          %s444 = scalar_select %p443, %s33, 1
          %s445 = smul.addr %s444, 48
          %s446 = smul.addr %s445, 4
          %s447 = scalar_lea.vmem %s3, %s446
        $region32: #{_lambda_.4} parent=15 // pred_fallthru
          _
        // Predicated region
        $region33: #{_lambda_.4} parent=15 // pred_check
          %p448 = pneg %p161
        $region34: #{_lambda_.4} parent=15 // pred_check_branch
          %450 = sbr.rel (%p448) target = $region36
        $region35: #{_lambda_.4} parent=15 // pred_region
          %p451 = scmp.lt.s32.totalorder %s33, 1
          %s452 = scalar_select %p451, %s33, 1
          %s453 = smul.addr %s452, 3
          %s454 = scalar_lea.vmem %s4, %s453
        $region36: #{_lambda_.4} parent=15 // pred_fallthru
          _
        // Predicated region
        $region37: #{_lambda_.4} parent=15 // pred_check
          %p455 = pneg %p187
        $region38: #{_lambda_.4} parent=15 // pred_check_branch
          %457 = sbr.rel (%p455) target = $region40
        $region39: #{_lambda_.4} parent=15 // pred_region
          %s458 = sand.u32 %s177, 1
          %s459 = scalar_lea.sflag [#allocation6], %s458
          %s460 = sand.u32 %s177, 1
          %s461 = smul.addr %s460, 64
          %s462 = scalar_lea.vmem [#allocation5], %s461
          %s464 = ssub.s32 1024, 1024
          %465 = vsyncadd %s459, %s464
          %s466 = smul.addr %s33, 16
          %s467 = smul.addr %s466, 64
          %s468 = scalar_lea.hbm %s5, %s467
          %s469 = sshll.u32 %s462, 4
          %s470 = int_to_ptr.vmem [resolvable:$true] %s469
          %475 = dma.hbm_to_vmem [thread:$0]  %s468, 1024, %s470, %s459, 64, 64, 4
        $region40: #{_lambda_.4} parent=15 // pred_fallthru
          _
        // Predicated region
        $region41: #{_lambda_.4} parent=15 // pred_check
          %p476 = pneg %p213
        $region42: #{_lambda_.4} parent=15 // pred_check_branch
          %478 = sbr.rel (%p476) target = $region44
        $region43: #{_lambda_.4} parent=15 // pred_region
          %p479 = scmp.lt.s32.totalorder %s33, 1
          %s480 = scalar_select %p479, %s33, 1
          %s481 = scalar_lea.vmem %s6, %s480
        $region44: #{_lambda_.4} parent=15 // pred_fallthru
          _
        // Predicated region
        $region45: #{_lambda_.4} parent=15 // pred_check
          %p482 = pneg %p239
        $region46: #{_lambda_.4} parent=15 // pred_check_branch
          %484 = sbr.rel (%p482) target = $region48
        $region47: #{_lambda_.4} parent=15 // pred_region
          %p485 = scmp.lt.s32.totalorder %s33, 1
          %s486 = scalar_select %p485, %s33, 1
          %s487 = scalar_lea.vmem %s7, %s486
        $region48: #{_lambda_.4} parent=15 // pred_fallthru
          _
        // Predicated region
        $region49: #{_lambda_.4} parent=15 // pred_check
          %p488 = pneg %p265
        $region50: #{_lambda_.4} parent=15 // pred_check_branch
          %490 = sbr.rel (%p488) target = $region52
        $region51: #{_lambda_.4} parent=15 // pred_region
          %p491 = scmp.lt.s32.totalorder %s33, 1
          %s492 = scalar_select %p491, %s33, 1
          %s493 = scalar_lea.vmem %s8, %s492
        $region52: #{_lambda_.4} parent=15 // pred_fallthru
          _
        // Predicated region
        $region53: #{_lambda_.4} parent=15 // pred_check
          %p494 = pneg %p291
        $region54: #{_lambda_.4} parent=15 // pred_check_branch
          %496 = sbr.rel (%p494) target = $region56
        $region55: #{_lambda_.4} parent=15 // pred_region
          %p497 = scmp.lt.s32.totalorder %s33, 1
          %s498 = scalar_select %p497, %s33, 1
          %s499 = smul.addr %s498, 64
          %s500 = smul.addr %s499, 4
          %s501 = scalar_lea.vmem %s9, %s500
        $region56: #{_lambda_.4} parent=15 // pred_fallthru
          _
        // Predicated region
        $region57: #{_lambda_.4} parent=15 // pred_check
          %p502 = pneg %p317
        $region58: #{_lambda_.4} parent=15 // pred_check_branch
          %504 = sbr.rel (%p502) target = $region60
        $region59: #{_lambda_.4} parent=15 // pred_region
          %p505 = scmp.lt.s32.totalorder %s33, 1
          %s506 = scalar_select %p505, %s33, 1
          %s507 = smul.addr %s506, 4
          %s508 = scalar_lea.vmem %s10, %s507
        $region60: #{_lambda_.4} parent=15 // pred_fallthru
          _
        // Predicated region
        $region61: #{_lambda_.4} parent=15 // pred_check
          %p509 = pneg %p343
        $region62: #{_lambda_.4} parent=15 // pred_check_branch
          %511 = sbr.rel (%p509) target = $region64
        $region63: #{_lambda_.4} parent=15 // pred_region
          %s512 = sand.u32 %s333, 1
          %s513 = scalar_lea.sflag [#allocation8], %s512
          %s514 = sand.u32 %s333, 1
          %s515 = smul.addr %s514, 256
          %s516 = scalar_lea.vmem [#allocation7], %s515
          %s518 = ssub.s32 4096, 4096
          %519 = vsyncadd %s513, %s518
          %s520 = smul.addr %s33, 64
          %s521 = smul.addr %s520, 64
          %s522 = scalar_lea.hbm %s11, %s521
          %s523 = sshll.u32 %s516, 4
          %s524 = int_to_ptr.vmem [resolvable:$true] %s523
          %529 = dma.hbm_to_vmem [thread:$0]  %s522, 4096, %s524, %s513, 64, 64, 4
        $region64: #{_lambda_.4} parent=15 // pred_fallthru
          _
        // Predicated region
        $region65: #{_lambda_.4} parent=15 // pred_check
          %p530 = pneg %p369
        $region66: #{_lambda_.4} parent=15 // pred_check_branch
          %532 = sbr.rel (%p530) target = $region68
        $region67: #{_lambda_.4} parent=15 // pred_region
          %p533 = scmp.lt.s32.totalorder %s33, 1
          %s534 = scalar_select %p533, %s33, 1
          %s535 = scalar_lea.vmem %s12, %s534
        $region68: #{_lambda_.4} parent=15 // pred_fallthru
          _
      $region16: #{_lambda_.4} parent=5 // pred_fallthru
        _
      %p536 = scmp.le.s32.totalorder 1, %s25
      %p537 = scmp.lt.s32.totalorder %s25, 5
      %p538 = pnand %p536, %p537
      %p539 = pneg %p538
      // Predicated region
      $region69: #{_lambda_.4} parent=5 // pred_check
        _
      $region70: #{_lambda_.4} parent=5 // pred_check_branch
        %541 = sbr.rel (%p538) target = $region72
      $region71: #{_lambda_.4} parent=5 // pred_region
        %s542 = ssub.s32 %s25, 1
        %s543 = sand.u32 %s180, 1
        %s544 = scalar_lea.sflag [#allocation6], %s543
        %s545 = sand.u32 %s180, 1
        %s546 = smul.addr %s545, 64
        %s547 = scalar_lea.vmem [#allocation5], %s546
        // Predicated region
        $region73: #{_lambda_.4} parent=71 // pred_check
          %p548 = pneg %p193
        $region74: #{_lambda_.4} parent=71 // pred_check_branch
          %550 = sbr.rel (%p548) target = $region76
        $region75: #{_lambda_.4} parent=71 // pred_region
          %551 = dma.done %s544, 1024
        $region76: #{_lambda_.4} parent=71 // pred_fallthru
          _
        %s552 = sand.u32 %s336, 1
        %s553 = scalar_lea.sflag [#allocation8], %s552
        %s554 = sand.u32 %s336, 1
        %s555 = smul.addr %s554, 256
        %s556 = scalar_lea.vmem [#allocation7], %s555
        // Predicated region
        $region77: #{_lambda_.4} parent=71 // pred_check
          %p557 = pneg %p349
        $region78: #{_lambda_.4} parent=71 // pred_check_branch
          %559 = sbr.rel (%p557) target = $region80
        $region79: #{_lambda_.4} parent=71 // pred_region
          %560 = dma.done %s553, 4096
        $region80: #{_lambda_.4} parent=71 // pred_fallthru
          _
        %p561 = scmp.lt.s32.totalorder %s34, 1
        %s562 = scalar_select %p561, %s34, 1
        %s563 = smul.addr %s562, 5
        %s564 = smul.addr %s563, 8
        %s565 = scalar_lea.vmem %s0, %s564
        %p566 = pneg %p63
        %p567 = pneg %p60
        %p568 = scmp.lt.s32.totalorder %s35, 1
        %s569 = scalar_select %p568, %s35, 1
        %s570 = scalar_lea.vmem %s1, %s569
        %p571 = pneg %p89
        %p572 = pneg %p86
        %p573 = scmp.lt.s32.totalorder %s35, 1
        %s574 = scalar_select %p573, %s35, 1
        %s575 = scalar_lea.vmem %s2, %s574
        %p576 = pneg %p115
        %p577 = pneg %p112
        %p578 = scmp.lt.s32.totalorder %s35, 1
        %s579 = scalar_select %p578, %s35, 1
        %s580 = smul.addr %s579, 48
        %s581 = smul.addr %s580, 4
        %s582 = scalar_lea.vmem %s3, %s581
        %p583 = pneg %p141
        %p584 = pneg %p138
        %p585 = scmp.lt.s32.totalorder %s35, 1
        %s586 = scalar_select %p585, %s35, 1
        %s587 = smul.addr %s586, 3
        %s588 = scalar_lea.vmem %s4, %s587
        %p589 = pneg %p167
        %p590 = pneg %p164
        %s591 = sand.u32 %s180, 1
        %s592 = scalar_lea.sflag [#allocation6], %s591
        %s593 = sand.u32 %s180, 1
        %s594 = smul.addr %s593, 64
        %s595 = scalar_lea.vmem [#allocation5], %s594
        %p596 = pneg %p193
        %p597 = pneg %p190
        %p598 = scmp.lt.s32.totalorder %s35, 1
        %s599 = scalar_select %p598, %s35, 1
        %s600 = scalar_lea.vmem %s6, %s599
        %p601 = pneg %p219
        %p602 = pneg %p216
        %p603 = scmp.lt.s32.totalorder %s35, 1
        %s604 = scalar_select %p603, %s35, 1
        %s605 = scalar_lea.vmem %s7, %s604
        %p606 = pneg %p245
        %p607 = pneg %p242
        %p608 = scmp.lt.s32.totalorder %s35, 1
        %s609 = scalar_select %p608, %s35, 1
        %s610 = scalar_lea.vmem %s8, %s609
        %p611 = pneg %p271
        %p612 = pneg %p268
        %p613 = scmp.lt.s32.totalorder %s35, 1
        %s614 = scalar_select %p613, %s35, 1
        %s615 = smul.addr %s614, 64
        %s616 = smul.addr %s615, 4
        %s617 = scalar_lea.vmem %s9, %s616
        %p618 = pneg %p297
        %p619 = pneg %p294
        %p620 = scmp.lt.s32.totalorder %s35, 1
        %s621 = scalar_select %p620, %s35, 1
        %s622 = smul.addr %s621, 4
        %s623 = scalar_lea.vmem %s10, %s622
        %p624 = pneg %p323
        %p625 = pneg %p320
        %s626 = sand.u32 %s336, 1
        %s627 = scalar_lea.sflag [#allocation8], %s626
        %s628 = sand.u32 %s336, 1
        %s629 = smul.addr %s628, 256
        %s630 = scalar_lea.vmem [#allocation7], %s629
        %p631 = pneg %p349
        %p632 = pneg %p346
        %p633 = scmp.lt.s32.totalorder %s35, 1
        %s634 = scalar_select %p633, %s35, 1
        %s635 = scalar_lea.vmem %s12, %s634
        %p636 = pneg %p375
        %p637 = pneg %p372
        %p638 = pneg %p401
        %p639 = pneg %p398
        %p640 = scmp.lt.s32.totalorder %s34, 1
        %s641 = scalar_select %p640, %s34, 1
        %s642 = smul.addr %s641, 5
        %s643 = smul.addr %s642, 8
        %s644 = scalar_lea.vmem %s13, %s643
        %p645 = scmp.lt.s32.totalorder %s34, 1
        %s646 = scalar_select %p645, %s34, 1
        %s647 = smul.addr %s646, 5
        %s648 = smul.addr %s647, 8
        %s649 = scalar_lea.vmem %s0, %s648
        %p650 = scmp.lt.s32.totalorder %s35, 1
        %s651 = scalar_select %p650, %s35, 1
        %s652 = scalar_lea.vmem %s1, %s651
        %p653 = scmp.lt.s32.totalorder %s35, 1
        %s654 = scalar_select %p653, %s35, 1
        %s655 = scalar_lea.vmem %s2, %s654
        %p656 = scmp.lt.s32.totalorder %s35, 1
        %s657 = scalar_select %p656, %s35, 1
        %s658 = smul.addr %s657, 48
        %s659 = smul.addr %s658, 4
        %s660 = scalar_lea.vmem %s3, %s659
        %p661 = scmp.lt.s32.totalorder %s35, 1
        %s662 = scalar_select %p661, %s35, 1
        %s663 = smul.addr %s662, 3
        %s664 = scalar_lea.vmem %s4, %s663
        %p665 = scmp.lt.s32.totalorder %s35, 1
        %s666 = scalar_select %p665, %s35, 1
        %s667 = scalar_lea.vmem %s6, %s666
        %p668 = scmp.lt.s32.totalorder %s35, 1
        %s669 = scalar_select %p668, %s35, 1
        %s670 = scalar_lea.vmem %s7, %s669
        %p671 = scmp.lt.s32.totalorder %s35, 1
        %s672 = scalar_select %p671, %s35, 1
        %s673 = scalar_lea.vmem %s8, %s672
        %p674 = scmp.lt.s32.totalorder %s35, 1
        %s675 = scalar_select %p674, %s35, 1
        %s676 = smul.addr %s675, 64
        %s677 = smul.addr %s676, 4
        %s678 = scalar_lea.vmem %s9, %s677
        %p679 = scmp.lt.s32.totalorder %s35, 1
        %s680 = scalar_select %p679, %s35, 1
        %s681 = smul.addr %s680, 4
        %s682 = scalar_lea.vmem %s10, %s681
        %p683 = scmp.lt.s32.totalorder %s35, 1
        %s684 = scalar_select %p683, %s35, 1
        %s685 = scalar_lea.vmem %s12, %s684
        %p686 = scmp.lt.s32.totalorder %s34, 1
        %s687 = scalar_select %p686, %s34, 1
        %s688 = smul.addr %s687, 5
        %s689 = smul.addr %s688, 8
        %s690 = scalar_lea.vmem %s13, %s689
        %p692 = scmp.eq.s32.totalorder %s35, 0
        // Predicated region
        $region81: #{_lambda_.4} parent=71 // pred_check
          %p693 = pneg %p692
        $region82: #{_lambda_.4} parent=71 // pred_check_branch
          %695 = sbr.rel (%p693) target = $region84
        $region83: #{_lambda_.4} parent=71 // pred_region
          %v696 = vld [vmem:[%s649] sm:$0xff]
          %v697 = vld [vmem:[%s649 + $0x8] sm:$0xff]
          %v698 = vld [vmem:[%s649 + $0x10] sm:$0xff]
          %v699 = vld [vmem:[%s649 + $0x18] sm:$0xff]
          %v700 = vld [vmem:[%s649 + $0x20] sm:$0x1]
          %701 = vst [vmem:[#allocation2] sm:$0xff] %v696
          %702 = vst [vmem:[#allocation2 + $0x8] sm:$0xff] %v697
          %703 = vst [vmem:[#allocation2 + $0x10] sm:$0xff] %v698
          %704 = vst [vmem:[#allocation2 + $0x18] sm:$0xff] %v699
          %705 = vst [vmem:[#allocation2 + $0x20] sm:$0x1] %v700
        $region84: #{_lambda_.4} parent=71 // pred_fallthru
          _
        %v706 = vld [vmem:[#allocation2] sm:$0xff]
        %v707 = vld [vmem:[#allocation2 + $0x8] sm:$0xff]
        %v708 = vld [vmem:[#allocation2 + $0x10] sm:$0xff]
        %v709 = vld [vmem:[#allocation2 + $0x18] sm:$0xff]
        %v710 = vld [vmem:[#allocation2 + $0x20] sm:$0x1]
        %v711 = vld [vmem:[%s652] sm:$0x1]
        %v712 = vld [vmem:[%s655] sm:$0x1]
        %713 = vadd.xlane.f32.xlu0 %v706
        %v714 = vpop.xlane.xlu0 %713
        %715 = vadd.xlane.f32.xlu0 %v707
        %v716 = vpop.xlane.xlu0 %715
        %717 = vadd.xlane.f32.xlu0 %v708
        %v718 = vpop.xlane.xlu0 %717
        %719 = vadd.xlane.f32.xlu0 %v709
        %v720 = vpop.xlane.xlu0 %719
        %vm721 = vcmask 1040384
        %v722 = vsel %vm721, %v710, 0.0
        %723 = vadd.xlane.f32.xlu0 %v722
        %v724 = vpop.xlane.xlu0 %723
        %v725 = vrcp.pop 128.0
        %v726 = vmul.f32 %v714, %v725
        %v727 = vmul.f32 %v716, %v725
        %v728 = vmul.f32 %v718, %v725
        %v729 = vmul.f32 %v720, %v725
        %v730 = vmul.f32 %v724, %v725
        %v731 = vsub.f32 %v706, %v726
        %v732 = vsub.f32 %v707, %v727
        %v733 = vsub.f32 %v708, %v728
        %v734 = vsub.f32 %v709, %v729
        %v735 = vsub.f32 %v710, %v730
        %v736 = vmul.f32 %v731, %v731
        %v737 = vmul.f32 %v732, %v732
        %v738 = vmul.f32 %v733, %v733
        %v739 = vmul.f32 %v734, %v734
        %v740 = vmul.f32 %v735, %v735
        %741 = vadd.xlane.f32.xlu0 %v736
        %v742 = vpop.xlane.xlu0 %741
        %743 = vadd.xlane.f32.xlu0 %v737
        %v744 = vpop.xlane.xlu0 %743
        %745 = vadd.xlane.f32.xlu0 %v738
        %v746 = vpop.xlane.xlu0 %745
        %747 = vadd.xlane.f32.xlu0 %v739
        %v748 = vpop.xlane.xlu0 %747
        %v749 = vsel %vm721, %v740, 0.0
        %750 = vadd.xlane.f32.xlu0 %v749
        %v751 = vpop.xlane.xlu0 %750
        %v752 = vmul.f32 %v742, %v725
        %v753 = vmul.f32 %v744, %v725
        %v754 = vmul.f32 %v746, %v725
        %v755 = vmul.f32 %v748, %v725
        %v756 = vmul.f32 %v751, %v725
        %v757 = vadd.f32 %v752, 1e-05
        %v758 = vadd.f32 %v753, 1e-05
        %v759 = vadd.f32 %v754, 1e-05
        %v760 = vadd.f32 %v755, 1e-05
        %v761 = vadd.f32 %v756, 1e-05
        %v762 = vrsqrt.pop %v757
        %v763 = vrsqrt.pop %v758
        %v764 = vrsqrt.pop %v759
        %v765 = vrsqrt.pop %v760
        %v766 = vrsqrt.pop %v761
        %v767 = vmul.f32 %v731, %v762
        %v768 = vmul.f32 %v732, %v763
        %v769 = vmul.f32 %v733, %v764
        %v770 = vmul.f32 %v734, %v765
        %v771 = vmul.f32 %v735, %v766
        %v773 = vlaneseq
        %v774 = vshrl.u32 %v773, 7
        %v775 = vsub.s32 0, %v774
        %v776 = vrot.slane %v711, %v775
        %v778 = vmul.f32 %v767, %v776
        %v779 = vmul.f32 %v768, %v776
        %v780 = vmul.f32 %v769, %v776
        %v781 = vmul.f32 %v770, %v776
        %v782 = vmul.f32 %v771, %v776
        %v784 = vlaneseq
        %v785 = vshrl.u32 %v784, 7
        %v786 = vsub.s32 0, %v785
        %v787 = vrot.slane %v712, %v786
        %v789 = vadd.f32 %v778, %v787
        %v790 = vadd.f32 %v779, %v787
        %v791 = vadd.f32 %v780, %v787
        %v792 = vadd.f32 %v781, %v787
        %v793 = vadd.f32 %v782, %v787
        %v794 = vpack.c.bf16 %v790, %v789
        %v795 = vpack.c.bf16 %v792, %v791
        %v796 = vpack.c.bf16 %v793, %v793
        %v797 = vld [vmem:[%s660] sm:$0xff]
        %v798 = vld [vmem:[%s660 + $0x8] sm:$0xf]
        %v799 = vld [vmem:[%s660 + $0xc] sm:$0xff]
        %v800 = vld [vmem:[%s660 + $0x14] sm:$0xf]
        %v801 = vld [vmem:[%s660 + $0x18] sm:$0xff]
        %v802 = vld [vmem:[%s660 + $0x20] sm:$0xf]
        %v803 = vld [vmem:[%s660 + $0x24] sm:$0xff]
        %v804 = vld [vmem:[%s660 + $0x2c] sm:$0xf]
        %v805 = vld [vmem:[%s660 + $0x30] sm:$0xff]
        %v806 = vld [vmem:[%s660 + $0x38] sm:$0xf]
        %v807 = vld [vmem:[%s660 + $0x3c] sm:$0xff]
        %v808 = vld [vmem:[%s660 + $0x44] sm:$0xf]
        %v809 = vld [vmem:[%s660 + $0x48] sm:$0xff]
        %v810 = vld [vmem:[%s660 + $0x50] sm:$0xf]
        %v811 = vld [vmem:[%s660 + $0x54] sm:$0xff]
        %v812 = vld [vmem:[%s660 + $0x5c] sm:$0xf]
        %v813 = vld [vmem:[%s660 + $0x60] sm:$0xff]
        %v814 = vld [vmem:[%s660 + $0x68] sm:$0xf]
        %v815 = vld [vmem:[%s660 + $0x6c] sm:$0xff]
        %v816 = vld [vmem:[%s660 + $0x74] sm:$0xf]
        %v817 = vld [vmem:[%s660 + $0x78] sm:$0xff]
        %v818 = vld [vmem:[%s660 + $0x80] sm:$0xf]
        %v819 = vld [vmem:[%s660 + $0x84] sm:$0xff]
        %v820 = vld [vmem:[%s660 + $0x8c] sm:$0xf]
        %v821 = vld [vmem:[%s660 + $0x90] sm:$0xff]
        %v822 = vld [vmem:[%s660 + $0x98] sm:$0xf]
        %v823 = vld [vmem:[%s660 + $0x9c] sm:$0xff]
        %v824 = vld [vmem:[%s660 + $0xa4] sm:$0xf]
        %v825 = vld [vmem:[%s660 + $0xa8] sm:$0xff]
        %v826 = vld [vmem:[%s660 + $0xb0] sm:$0xf]
        %v827 = vld [vmem:[%s660 + $0xb4] sm:$0xff]
        %v828 = vld [vmem:[%s660 + $0xbc] sm:$0xf]
        %v829 = vld [vmem:[%s664] sm:$0x7]
        %v831 = vlaneseq
        %v832 = vshrl.u32 %v831, 7
        %v833 = vsub.s32 0, %v832
        %v834 = vrot.slane %v829, %v833
        %v835 = vlaneseq
        %v836 = vshrl.u32 %v835, 7
        %v837 = vsub.s32 1, %v836
        %v838 = vrot.slane %v829, %v837
        %v839 = vlaneseq
        %v840 = vshrl.u32 %v839, 7
        %v841 = vsub.s32 2, %v840
        %v842 = vrot.slane %v829, %v841
        %v878 = vunpack.c.l.b16 %v797
        %v879 = vunpack.c.h.b16 %v797
        %v880 = vunpack.c.l.b16 %v798
        %v881 = vunpack.c.l.b16 %v799
        %v882 = vunpack.c.h.b16 %v799
        %v883 = vunpack.c.l.b16 %v800
        %v884 = vunpack.c.l.b16 %v801
        %v885 = vunpack.c.h.b16 %v801
        %v886 = vunpack.c.l.b16 %v802
        %v887 = vunpack.c.l.b16 %v803
        %v888 = vunpack.c.h.b16 %v803
        %v889 = vunpack.c.l.b16 %v804
        %v890 = vunpack.c.l.b16 %v805
        %v891 = vunpack.c.h.b16 %v805
        %v892 = vunpack.c.l.b16 %v806
        %v893 = vunpack.c.l.b16 %v807
        %v894 = vunpack.c.h.b16 %v807
        %v895 = vunpack.c.l.b16 %v808
        %v896 = vunpack.c.l.b16 %v809
        %v897 = vunpack.c.h.b16 %v809
        %v898 = vunpack.c.l.b16 %v810
        %v899 = vunpack.c.l.b16 %v811
        %v900 = vunpack.c.h.b16 %v811
        %v901 = vunpack.c.l.b16 %v812
        %v902 = vunpack.c.l.b16 %v813
        %v903 = vunpack.c.h.b16 %v813
        %v904 = vunpack.c.l.b16 %v814
        %v905 = vunpack.c.l.b16 %v815
        %v906 = vunpack.c.h.b16 %v815
        %v907 = vunpack.c.l.b16 %v816
        %v908 = vunpack.c.l.b16 %v817
        %v909 = vunpack.c.h.b16 %v817
        %v910 = vunpack.c.l.b16 %v818
        %v911 = vunpack.c.l.b16 %v819
        %v912 = vunpack.c.h.b16 %v819
        %v913 = vunpack.c.l.b16 %v820
        %v914 = vunpack.c.l.b16 %v821
        %v915 = vunpack.c.h.b16 %v821
        %v916 = vunpack.c.l.b16 %v822
        %v917 = vunpack.c.l.b16 %v823
        %v918 = vunpack.c.h.b16 %v823
        %v919 = vunpack.c.l.b16 %v824
        %v920 = vunpack.c.l.b16 %v825
        %v921 = vunpack.c.h.b16 %v825
        %v922 = vunpack.c.l.b16 %v826
        %v923 = vunpack.c.l.b16 %v827
        %v924 = vunpack.c.h.b16 %v827
        %v925 = vunpack.c.l.b16 %v828
        %v926 = vpack.c.b16 %v881, %v878
        %v927 = vpack.c.b16 %v882, %v879
        %v928 = vpack.c.b16 %v883, %v880
        %v929 = vpack.c.b16 %v887, %v884
        %v930 = vpack.c.b16 %v888, %v885
        %v931 = vpack.c.b16 %v889, %v886
        %v932 = vpack.c.b16 %v893, %v890
        %v933 = vpack.c.b16 %v894, %v891
        %v934 = vpack.c.b16 %v895, %v892
        %v935 = vpack.c.b16 %v899, %v896
        %v936 = vpack.c.b16 %v900, %v897
        %v937 = vpack.c.b16 %v901, %v898
        %v938 = vpack.c.b16 %v905, %v902
        %v939 = vpack.c.b16 %v906, %v903
        %v940 = vpack.c.b16 %v907, %v904
        %v941 = vpack.c.b16 %v911, %v908
        %v942 = vpack.c.b16 %v912, %v909
        %v943 = vpack.c.b16 %v913, %v910
        %v944 = vpack.c.b16 %v917, %v914
        %v945 = vpack.c.b16 %v918, %v915
        %v946 = vpack.c.b16 %v919, %v916
        %v947 = vpack.c.b16 %v923, %v920
        %v948 = vpack.c.b16 %v924, %v921
        %v949 = vpack.c.b16 %v925, %v922
        %974 = vmatprep.subr.bf16.mxu0 %v927
        %975 = vmatpush1.bf16.msra.mxu0 %v926
        %976 = vmatprep.subr.bf16.mxu0 %v930
        %977 = vmatpush1.bf16.msra.mxu0 %v929
        %978 = vmatprep.subr.bf16.mxu0 %v933
        %979 = vmatpush1.bf16.msra.mxu0 %v932
        %980 = vmatprep.subr.bf16.mxu0 %v936
        %981 = vmatpush1.bf16.msra.mxu0 %v935
        %982 = vmatprep.subr.bf16.mxu0 %v939
        %983 = vmatpush1.bf16.msra.mxu0 %v938
        %984 = vmatprep.subr.bf16.mxu0 %v942
        %985 = vmatpush1.bf16.msra.mxu0 %v941
        %986 = vmatprep.subr.bf16.mxu0 %v945
        %987 = vmatpush1.bf16.msra.mxu0 %v944
        %988 = vmatprep.subr.bf16.mxu0 %v948
        %989 = vmatpush1.bf16.msra.mxu0 %v947
        %990 = vmatprep.subr.bf16.mxu0 0
        %991 = vmatpush1.bf16.msra.mxu0 0
        %992 = vmatprep.subr.bf16.mxu0 0
        %993 = vmatpush1.bf16.msra.mxu0 0
        %994 = vmatprep.subr.bf16.mxu0 0
        %995 = vmatpush1.bf16.msra.mxu0 0
        %996 = vmatprep.subr.bf16.mxu0 0
        %997 = vmatpush1.bf16.msra.mxu0 0
        %998 = vmatprep.subr.bf16.mxu0 0
        %999 = vmatpush1.bf16.msra.mxu0 0
        %1000 = vmatprep.subr.bf16.mxu0 0
        %1001 = vmatpush1.bf16.msra.mxu0 0
        %1002 = vmatprep.subr.bf16.mxu0 0
        %1003 = vmatpush1.bf16.msra.mxu0 0
        %1004 = vmatprep.subr.bf16.mxu0 0
        %1005 = vmatpush1.bf16.msra.mxu0 0
        %1006 = vmatprep.mubr.bf16.mxu0 0
        %1007 = vmatmul.mubr.bf16.gmra.mrb[0].mxu0 %v794
        %v1008 = vpop.f32.mrb[0].mxu0
        %v1009 = vadd.f32 %v834, %v1008
        %v1010 = vpop.f32.mrb[0].mxu0
        %v1011 = vadd.f32 %v838, %v1010
        %v1012 = vpop.f32.mrb[0].mxu0
        %v1013 = vadd.f32 %v834, %v1012
        %v1014 = vpop.f32.mrb[0].mxu0
        %v1015 = vadd.f32 %v838, %v1014
        %1016 = vmatprep.mubr.bf16.mxu0 0
        %1017 = vmatmul.mubr.bf16.gmra.mrb[0].mxu0 %v795
        %v1018 = vpop.f32.mrb[0].mxu0
        %v1019 = vadd.f32 %v834, %v1018
        %v1020 = vpop.f32.mrb[0].mxu0
        %v1021 = vadd.f32 %v838, %v1020
        %v1022 = vpop.f32.mrb[0].mxu0
        %v1023 = vadd.f32 %v834, %v1022
        %v1024 = vpop.f32.mrb[0].mxu0
        %v1025 = vadd.f32 %v838, %v1024
        %1026 = vmatprep.mubr.bf16.mxu0 0
        %1027 = vmatmul.mubr.bf16.gmra.mrb[0].mxu0 %v796
        %v1028 = vpop.f32.mrb[0].mxu0
        %v1029 = vadd.f32 %v834, %v1028
        %v1030 = vpop.f32.mrb[0].mxu0
        %v1031 = vadd.f32 %v838, %v1030
        %v1032 = vpop.f32.mrb[0].mxu0
        %v1033 = vpop.f32.mrb[0].mxu0
        %1034 = vdwg.mxu0
        %1035 = vmatprep.subr.bf16.mxu0 0
        %1036 = vmatpush1.bf16.msra.mxu0 %v928
        %1037 = vmatprep.subr.bf16.mxu0 0
        %1038 = vmatpush1.bf16.msra.mxu0 %v931
        %1039 = vmatprep.subr.bf16.mxu0 0
        %1040 = vmatpush1.bf16.msra.mxu0 %v934
        %1041 = vmatprep.subr.bf16.mxu0 0
        %1042 = vmatpush1.bf16.msra.mxu0 %v937
        %1043 = vmatprep.subr.bf16.mxu0 0
        %1044 = vmatpush1.bf16.msra.mxu0 %v940
        %1045 = vmatprep.subr.bf16.mxu0 0
        %1046 = vmatpush1.bf16.msra.mxu0 %v943
        %1047 = vmatprep.subr.bf16.mxu0 0
        %1048 = vmatpush1.bf16.msra.mxu0 %v946
        %1049 = vmatprep.subr.bf16.mxu0 0
        %1050 = vmatpush1.bf16.msra.mxu0 %v949
        %1051 = vmatprep.subr.bf16.mxu0 0
        %1052 = vmatpush1.bf16.msra.mxu0 0
        %1053 = vmatprep.subr.bf16.mxu0 0
        %1054 = vmatpush1.bf16.msra.mxu0 0
        %1055 = vmatprep.subr.bf16.mxu0 0
        %1056 = vmatpush1.bf16.msra.mxu0 0
        %1057 = vmatprep.subr.bf16.mxu0 0
        %1058 = vmatpush1.bf16.msra.mxu0 0
        %1059 = vmatprep.subr.bf16.mxu0 0
        %1060 = vmatpush1.bf16.msra.mxu0 0
        %1061 = vmatprep.subr.bf16.mxu0 0
        %1062 = vmatpush1.bf16.msra.mxu0 0
        %1063 = vmatprep.subr.bf16.mxu0 0
        %1064 = vmatpush1.bf16.msra.mxu0 0
        %1065 = vmatprep.subr.bf16.mxu0 0
        %1066 = vmatpush1.bf16.msra.mxu0 0
        %1067 = vmatprep.mubr.bf16.mxu0 0
        %1068 = vmatmul.mubr.bf16.gmra.mrb[0].mxu0 %v794
        %v1069 = vpop.f32.mrb[0].mxu0
        %v1070 = vadd.f32 %v842, %v1069
        %v1071 = vpop.f32.mrb[0].mxu0
        %v1072 = vpop.f32.mrb[0].mxu0
        %v1073 = vadd.f32 %v842, %v1072
        %v1074 = vpop.f32.mrb[0].mxu0
        %1075 = vmatprep.mubr.bf16.mxu0 0
        %1076 = vmatmul.mubr.bf16.gmra.mrb[0].mxu0 %v795
        %v1077 = vpop.f32.mrb[0].mxu0
        %v1078 = vadd.f32 %v842, %v1077
        %v1079 = vpop.f32.mrb[0].mxu0
        %v1080 = vpop.f32.mrb[0].mxu0
        %v1081 = vadd.f32 %v842, %v1080
        %v1082 = vpop.f32.mrb[0].mxu0
        %1083 = vmatprep.mubr.bf16.mxu0 0
        %1084 = vmatmul.mubr.bf16.gmra.mrb[0].mxu0 %v796
        %v1085 = vpop.f32.mrb[0].mxu0
        %v1086 = vadd.f32 %v842, %v1085
        %v1087 = vpop.f32.mrb[0].mxu0
        %v1088 = vpop.f32.mrb[0].mxu0
        %v1089 = vpop.f32.mrb[0].mxu0
        %1090 = vdwg.mxu0
        %v1091 = vpack.c.bf16 %v1013, %v1009
        %v1092 = vpack.c.bf16 %v1015, %v1011
        %v1093 = vpack.c.bf16 %v1073, %v1070
        %v1094 = vpack.c.bf16 %v1023, %v1019
        %v1095 = vpack.c.bf16 %v1025, %v1021
        %v1096 = vpack.c.bf16 %v1081, %v1078
        %v1097 = vpack.c.bf16 %v1029, %v1029
        %v1098 = vpack.c.bf16 %v1031, %v1031
        %v1099 = vpack.c.bf16 %v1086, %v1086
        %v1109 = vunpack.c.l.b16 %v1091
        %v1110 = vunpack.c.l.b16 %v1092
        %v1111 = vunpack.c.l.b16 %v1093
        %v1112 = vunpack.c.h.b16 %v1091
        %v1113 = vunpack.c.h.b16 %v1092
        %v1114 = vunpack.c.h.b16 %v1093
        %v1115 = vunpack.c.l.b16 %v1094
        %v1116 = vunpack.c.l.b16 %v1095
        %v1117 = vunpack.c.l.b16 %v1096
        %v1118 = vunpack.c.h.b16 %v1094
        %v1119 = vunpack.c.h.b16 %v1095
        %v1120 = vunpack.c.h.b16 %v1096
        %v1121 = vunpack.c.l.b16 %v1097
        %v1122 = vunpack.c.l.b16 %v1098
        %v1123 = vunpack.c.l.b16 %v1099
        %v1124 = vpack.c.b16 %v1110, %v1109
        %v1125 = vpack.c.b16 %v1111, %v1111
        %v1126 = vpack.c.b16 %v1113, %v1112
        %v1127 = vpack.c.b16 %v1114, %v1114
        %v1128 = vpack.c.b16 %v1116, %v1115
        %v1129 = vpack.c.b16 %v1117, %v1117
        %v1130 = vpack.c.b16 %v1119, %v1118
        %v1131 = vpack.c.b16 %v1120, %v1120
        %v1132 = vpack.c.b16 %v1122, %v1121
        %v1133 = vpack.c.b16 %v1123, %v1123
        %1144 = vst [vmem:[#allocation3] sm:$0xff] %v1124
        %1145 = vst [vmem:[#allocation3 + $0x8] sm:$0xf] %v1125
        %1146 = vst [vmem:[#allocation3 + $0xc] sm:$0xff] %v1126
        %1147 = vst [vmem:[#allocation3 + $0x14] sm:$0xf] %v1127
        %1148 = vst [vmem:[#allocation3 + $0x18] sm:$0xff] %v1128
        %1149 = vst [vmem:[#allocation3 + $0x20] sm:$0xf] %v1129
        %1150 = vst [vmem:[#allocation3 + $0x24] sm:$0xff] %v1130
        %1151 = vst [vmem:[#allocation3 + $0x2c] sm:$0xf] %v1131
        %vm1152 = vcmask 1040384
        %vm1153 = vsmask.f32 256
        %vm1154 = vmand %vm1152, %vm1153
        %vm1155 = vcmask 1044484
        %vm1156 = vsmask.f32 4352
        %vm1157 = vmand %vm1155, %vm1156
        %vm1158 = vmor %vm1157, %vm1154
        %v1159 = vld [vmem:[#allocation3 + $0x30] sm:$0x11]
        %v1160 = vsel %vm1158, %v1132, %v1159
        %1161 = vst [vmem:[#allocation3 + $0x30] sm:$0x11] %v1160
        %v1162 = vld [vmem:[#allocation3 + $0x38] sm:$0x1]
        %v1163 = vsel %vm1154, %v1133, %v1162
        %1164 = vst [vmem:[#allocation3 + $0x38] sm:$0x1] %v1163
        %v1165 = vld [vmem:[#allocation3] sm:$0xf]
        %v1166 = vld [vmem:[#allocation3 + $0xc] sm:$0xf]
        %v1167 = vld [vmem:[#allocation3 + $0x18] sm:$0xf]
        %v1168 = vld [vmem:[#allocation3 + $0x24] sm:$0xf]
        %v1169 = vld [vmem:[#allocation3 + $0x30] sm:$0x1]
        %v1170 = vld [vmem:[#allocation3 + $0x4] sm:$0xf]
        %v1171 = vld [vmem:[#allocation3 + $0x10] sm:$0xf]
        %v1172 = vld [vmem:[#allocation3 + $0x1c] sm:$0xf]
        %v1173 = vld [vmem:[#allocation3 + $0x28] sm:$0xf]
        %v1174 = vld [vmem:[#allocation3 + $0x34] sm:$0x1]
        %v1175 = vld [vmem:[#allocation3 + $0x8] sm:$0xf]
        %v1176 = vld [vmem:[#allocation3 + $0x14] sm:$0xf]
        %v1177 = vld [vmem:[#allocation3 + $0x20] sm:$0xf]
        %v1178 = vld [vmem:[#allocation3 + $0x2c] sm:$0xf]
        %v1179 = vld [vmem:[#allocation3 + $0x38] sm:$0x1]
        %v1185 = vunpack.c.l.b16 %v1165
        %v1186 = vunpack.c.l.b16 %v1166
        %v1187 = vunpack.c.l.b16 %v1167
        %v1188 = vunpack.c.l.b16 %v1168
        %v1189 = vunpack.c.l.b16 %v1169
        %v1190 = vpack.c.b16 %v1186, %v1185
        %v1191 = vpack.c.b16 %v1188, %v1187
        %v1192 = vpack.c.b16 %v1189, %v1189
        %v1198 = vunpack.c.l.b16 %v1170
        %v1199 = vunpack.c.l.b16 %v1171
        %v1200 = vunpack.c.l.b16 %v1172
        %v1201 = vunpack.c.l.b16 %v1173
        %v1202 = vunpack.c.l.b16 %v1174
        %v1203 = vpack.c.b16 %v1199, %v1198
        %v1204 = vpack.c.b16 %v1201, %v1200
        %v1205 = vpack.c.b16 %v1202, %v1202
        %vm1206 = vcmask 261120
        %v1208 = vsel %vm1206, %v1190, 0
        %v1211 = vsel %vm1206, %v1191, 0
        %v1214 = vsel %vm1206, %v1192, 0
        %v1217 = vsel %vm1206, %v1203, 0
        %v1220 = vsel %vm1206, %v1204, 0
        %v1223 = vsel %vm1206, %v1205, 0
        %1225 = vmatprep.subr.bf16.mxu0 0
        %1226 = vmatpush1.bf16.xpose.msra.mxu0 %v1217
        %1227 = vmatprep.subr.bf16.mxu0 0
        %1228 = vmatpush1.bf16.xpose.msra.mxu0 %v1220
        %1229 = vmatprep.subr.bf16.mxu0 0
        %1230 = vmatpush1.bf16.xpose.msra.mxu0 %v1223
        %1231 = vmatprep.subr.bf16.mxu0 0
        %1232 = vmatpush1.bf16.xpose.msra.mxu0 0
        %1233 = vmatprep.subr.bf16.mxu0 0
        %1234 = vmatpush1.bf16.xpose.msra.mxu0 0
        %1235 = vmatprep.subr.bf16.mxu0 0
        %1236 = vmatpush1.bf16.xpose.msra.mxu0 0
        %1237 = vmatprep.subr.bf16.mxu0 0
        %1238 = vmatpush1.bf16.xpose.msra.mxu0 0
        %1239 = vmatprep.subr.bf16.mxu0 0
        %1240 = vmatpush1.bf16.xpose.msra.mxu0 0
        %1241 = vmatprep.subr.bf16.mxu0 0
        %1242 = vmatpush1.bf16.xpose.msra.mxu0 0
        %1243 = vmatprep.subr.bf16.mxu0 0
        %1244 = vmatpush1.bf16.xpose.msra.mxu0 0
        %1245 = vmatprep.subr.bf16.mxu0 0
        %1246 = vmatpush1.bf16.xpose.msra.mxu0 0
        %1247 = vmatprep.subr.bf16.mxu0 0
        %1248 = vmatpush1.bf16.xpose.msra.mxu0 0
        %1249 = vmatprep.subr.bf16.mxu0 0
        %1250 = vmatpush1.bf16.xpose.msra.mxu0 0
        %1251 = vmatprep.subr.bf16.mxu0 0
        %1252 = vmatpush1.bf16.xpose.msra.mxu0 0
        %1253 = vmatprep.subr.bf16.mxu0 0
        %1254 = vmatpush1.bf16.xpose.msra.mxu0 0
        %1255 = vmatprep.subr.bf16.mxu0 0
        %1256 = vmatpush1.bf16.xpose.msra.mxu0 0
        %1257 = vmatprep.mubr.bf16.mxu0 0
        %1258 = vmatmul.mubr.bf16.gmra.mrb[0].mxu0 %v1208
        %v1259 = vpop.f32.mrb[0].mxu0
        %v1260 = vadd.f32 0.0, %v1259
        %v1261 = vpop.f32.mrb[0].mxu0
        %v1262 = vpop.f32.mrb[0].mxu0
        %v1263 = vadd.f32 0.0, %v1262
        %v1264 = vpop.f32.mrb[0].mxu0
        %1265 = vmatprep.mubr.bf16.mxu0 0
        %1266 = vmatmul.mubr.bf16.gmra.mrb[0].mxu0 %v1211
        %v1267 = vpop.f32.mrb[0].mxu0
        %v1268 = vadd.f32 0.0, %v1267
        %v1269 = vpop.f32.mrb[0].mxu0
        %v1270 = vpop.f32.mrb[0].mxu0
        %v1271 = vadd.f32 0.0, %v1270
        %v1272 = vpop.f32.mrb[0].mxu0
        %1273 = vmatprep.mubr.bf16.mxu0 0
        %1274 = vmatmul.mubr.bf16.gmra.mrb[0].mxu0 %v1214
        %v1275 = vpop.f32.mrb[0].mxu0
        %v1276 = vadd.f32 0.0, %v1275
        %v1277 = vpop.f32.mrb[0].mxu0
        %v1278 = vpop.f32.mrb[0].mxu0
        %v1279 = vpop.f32.mrb[0].mxu0
        %1280 = vdwg.mxu0
        %vm1281 = vcmask 269312
        %v1282 = vsel %vm1281, %v1260, -inf
        %1283 = vmax.xlane.f32.xlu0 %v1282
        %v1284 = vpop.xlane.xlu0 %1283
        %v1285 = vsel %vm1281, %v1263, -inf
        %1286 = vmax.xlane.f32.xlu0 %v1285
        %v1287 = vpop.xlane.xlu0 %1286
        %v1288 = vsel %vm1281, %v1268, -inf
        %1289 = vmax.xlane.f32.xlu0 %v1288
        %v1290 = vpop.xlane.xlu0 %1289
        %v1291 = vsel %vm1281, %v1271, -inf
        %1292 = vmax.xlane.f32.xlu0 %v1291
        %v1293 = vpop.xlane.xlu0 %1292
        %vm1294 = vcmask 262144
        %v1295 = vsel %vm1294, %v1276, -inf
        %1296 = vmax.xlane.f32.xlu0 %v1295
        %v1297 = vpop.xlane.xlu0 %1296
        %v1298 = vsub.f32 %v1260, %v1284
        %v1299 = vsub.f32 %v1263, %v1287
        %v1300 = vsub.f32 %v1268, %v1290
        %v1301 = vsub.f32 %v1271, %v1293
        %v1302 = vsub.f32 %v1276, %v1297
        %v1303 = vmul.f32 %v1298, 1.442695
        %v1304 = vpow.pop %v1303
        %v1305 = vmul.f32 %v1299, 1.442695
        %v1306 = vpow.pop %v1305
        %v1307 = vmul.f32 %v1300, 1.442695
        %v1308 = vpow.pop %v1307
        %v1309 = vmul.f32 %v1301, 1.442695
        %v1310 = vpow.pop %v1309
        %v1311 = vmul.f32 %v1302, 1.442695
        %v1312 = vpow.pop %v1311
        %v1313 = vsel %vm1281, %v1304, 0.0
        %1314 = vadd.xlane.f32.xlu0 %v1313
        %v1315 = vpop.xlane.xlu0 %1314
        %v1316 = vsel %vm1281, %v1306, 0.0
        %1317 = vadd.xlane.f32.xlu0 %v1316
        %v1318 = vpop.xlane.xlu0 %1317
        %v1319 = vsel %vm1281, %v1308, 0.0
        %1320 = vadd.xlane.f32.xlu0 %v1319
        %v1321 = vpop.xlane.xlu0 %1320
        %v1322 = vsel %vm1281, %v1310, 0.0
        %1323 = vadd.xlane.f32.xlu0 %v1322
        %v1324 = vpop.xlane.xlu0 %1323
        %v1325 = vsel %vm1294, %v1312, 0.0
        %1326 = vadd.xlane.f32.xlu0 %v1325
        %v1327 = vpop.xlane.xlu0 %1326
        %v1328 = vrcp.pop %v1315
        %v1329 = vrcp.pop %v1318
        %v1330 = vrcp.pop %v1321
        %v1331 = vrcp.pop %v1324
        %v1332 = vrcp.pop %v1327
        %v1333 = vmul.f32 %v1304, %v1328
        %v1334 = vmul.f32 %v1306, %v1329
        %v1335 = vmul.f32 %v1308, %v1330
        %v1336 = vmul.f32 %v1310, %v1331
        %v1337 = vmul.f32 %v1312, %v1332
        %v1338 = vpack.c.bf16 %v1334, %v1333
        %v1339 = vpack.c.bf16 %v1336, %v1335
        %v1340 = vpack.c.bf16 %v1337, %v1337
        %v1346 = vunpack.c.l.b16 %v1175
        %v1347 = vunpack.c.l.b16 %v1176
        %v1348 = vunpack.c.l.b16 %v1177
        %v1349 = vunpack.c.l.b16 %v1178
        %v1350 = vunpack.c.l.b16 %v1179
        %v1351 = vpack.c.b16 %v1347, %v1346
        %v1352 = vpack.c.b16 %v1349, %v1348
        %v1353 = vpack.c.b16 %v1350, %v1350
        %v1357 = vsel %vm1281, %v1338, 0
        %v1360 = vsel %vm1281, %v1339, 0
        %v1363 = vsel %vm1281, %v1340, 0
        %v1365 = vsel 0, 4294967295, 65535
        %v1366 = vsel %vm721, %v1365, 0
        %v1368 = vand.u32 %v1353, %v1366
        %1370 = vmatprep.subr.bf16.mxu0 0
        %1371 = vmatpush1.bf16.msra.mxu0 %v1351
        %1372 = vmatprep.subr.bf16.mxu0 0
        %1373 = vmatpush1.bf16.msra.mxu0 %v1352
        %1374 = vmatprep.subr.bf16.mxu0 0
        %1375 = vmatpush1.bf16.msra.mxu0 %v1368
        %1376 = vmatprep.subr.bf16.mxu0 0
        %1377 = vmatpush1.bf16.msra.mxu0 0
        %1378 = vmatprep.subr.bf16.mxu0 0
        %1379 = vmatpush1.bf16.msra.mxu0 0
        %1380 = vmatprep.subr.bf16.mxu0 0
        %1381 = vmatpush1.bf16.msra.mxu0 0
        %1382 = vmatprep.subr.bf16.mxu0 0
        %1383 = vmatpush1.bf16.msra.mxu0 0
        %1384 = vmatprep.subr.bf16.mxu0 0
        %1385 = vmatpush1.bf16.msra.mxu0 0
        %1386 = vmatprep.subr.bf16.mxu0 0
        %1387 = vmatpush1.bf16.msra.mxu0 0
        %1388 = vmatprep.subr.bf16.mxu0 0
        %1389 = vmatpush1.bf16.msra.mxu0 0
        %1390 = vmatprep.subr.bf16.mxu0 0
        %1391 = vmatpush1.bf16.msra.mxu0 0
        %1392 = vmatprep.subr.bf16.mxu0 0
        %1393 = vmatpush1.bf16.msra.mxu0 0
        %1394 = vmatprep.subr.bf16.mxu0 0
        %1395 = vmatpush1.bf16.msra.mxu0 0
        %1396 = vmatprep.subr.bf16.mxu0 0
        %1397 = vmatpush1.bf16.msra.mxu0 0
        %1398 = vmatprep.subr.bf16.mxu0 0
        %1399 = vmatpush1.bf16.msra.mxu0 0
        %1400 = vmatprep.subr.bf16.mxu0 0
        %1401 = vmatpush1.bf16.msra.mxu0 0
        %1402 = vmatprep.mubr.bf16.mxu0 0
        %1403 = vmatmul.mubr.bf16.gmra.mrb[0].mxu0 %v1357
        %v1404 = vpop.f32.mrb[0].mxu0
        %v1405 = vadd.f32 0.0, %v1404
        %v1406 = vpop.f32.mrb[0].mxu0
        %v1407 = vpop.f32.mrb[0].mxu0
        %v1408 = vadd.f32 0.0, %v1407
        %v1409 = vpop.f32.mrb[0].mxu0
        %1410 = vmatprep.mubr.bf16.mxu0 0
        %1411 = vmatmul.mubr.bf16.gmra.mrb[0].mxu0 %v1360
        %v1412 = vpop.f32.mrb[0].mxu0
        %v1413 = vadd.f32 0.0, %v1412
        %v1414 = vpop.f32.mrb[0].mxu0
        %v1415 = vpop.f32.mrb[0].mxu0
        %v1416 = vadd.f32 0.0, %v1415
        %v1417 = vpop.f32.mrb[0].mxu0
        %1418 = vmatprep.mubr.bf16.mxu0 0
        %1419 = vmatmul.mubr.bf16.gmra.mrb[0].mxu0 %v1363
        %v1420 = vpop.f32.mrb[0].mxu0
        %v1421 = vadd.f32 0.0, %v1420
        %v1422 = vpop.f32.mrb[0].mxu0
        %v1423 = vpop.f32.mrb[0].mxu0
        %v1424 = vpop.f32.mrb[0].mxu0
        %1425 = vdwg.mxu0
        %v1426 = vpack.c.bf16 %v1408, %v1405
        %v1427 = vpack.c.bf16 %v1416, %v1413
        %v1428 = vpack.c.bf16 %v1421, %v1421
        %v1432 = vunpack.c.l.b16 %v1426
        %v1433 = vunpack.c.h.b16 %v1426
        %v1434 = vunpack.c.l.b16 %v1427
        %v1435 = vunpack.c.h.b16 %v1427
        %v1436 = vunpack.c.l.b16 %v1428
        %v1437 = vpack.c.b16 %v1432, %v1432
        %v1438 = vpack.c.b16 %v1433, %v1433
        %v1439 = vpack.c.b16 %v1434, %v1434
        %v1440 = vpack.c.b16 %v1435, %v1435
        %v1441 = vpack.c.b16 %v1436, %v1436
        %vm1447 = vcmask 257024
        %1448 = vst.msk [vmem:[#allocation4] sm:$0xf] %vm1447, %v1437
        %1449 = vst.msk [vmem:[#allocation4 + $0x4] sm:$0xf] %vm1447, %v1438
        %1450 = vst.msk [vmem:[#allocation4 + $0x8] sm:$0xf] %vm1447, %v1439
        %1451 = vst.msk [vmem:[#allocation4 + $0xc] sm:$0xf] %vm1447, %v1440
        %vm1452 = vcmask 253952
        %vm1453 = vmand %vm1452, %vm1153
        %v1454 = vld [vmem:[#allocation4 + $0x10] sm:$0x1]
        %v1455 = vsel %vm1453, %v1441, %v1454
        %1456 = vst [vmem:[#allocation4 + $0x10] sm:$0x1] %v1455
        %v1457 = vld [vmem:[#allocation3] sm:$0xf]
        %v1458 = vld [vmem:[#allocation3 + $0xc] sm:$0xf]
        %v1459 = vld [vmem:[#allocation3 + $0x18] sm:$0xf]
        %v1460 = vld [vmem:[#allocation3 + $0x24] sm:$0xf]
        %v1461 = vld [vmem:[#allocation3 + $0x30] sm:$0x1]
        %v1462 = vld [vmem:[#allocation3 + $0x4] sm:$0xf]
        %v1463 = vld [vmem:[#allocation3 + $0x10] sm:$0xf]
        %v1464 = vld [vmem:[#allocation3 + $0x1c] sm:$0xf]
        %v1465 = vld [vmem:[#allocation3 + $0x28] sm:$0xf]
        %v1466 = vld [vmem:[#allocation3 + $0x34] sm:$0x1]
        %v1467 = vld [vmem:[#allocation3 + $0x8] sm:$0xf]
        %v1468 = vld [vmem:[#allocation3 + $0x14] sm:$0xf]
        %v1469 = vld [vmem:[#allocation3 + $0x20] sm:$0xf]
        %v1470 = vld [vmem:[#allocation3 + $0x2c] sm:$0xf]
        %v1471 = vld [vmem:[#allocation3 + $0x38] sm:$0x1]
        %v1477 = vunpack.c.l.b16 %v1457
        %v1478 = vunpack.c.l.b16 %v1458
        %v1479 = vunpack.c.l.b16 %v1459
        %v1480 = vunpack.c.l.b16 %v1460
        %v1481 = vunpack.c.l.b16 %v1461
        %v1482 = vpack.c.b16 %v1478, %v1477
        %v1483 = vpack.c.b16 %v1480, %v1479
        %v1484 = vpack.c.b16 %v1481, %v1481
        %1485 = vrot.lane.b32.xlu0 %v1482, 96
        %v1486 = vpop.permute.xlu0 %1485
        %1487 = vrot.lane.b32.xlu0 %v1483, 96
        %v1488 = vpop.permute.xlu0 %1487
        %1489 = vrot.lane.b32.xlu0 %v1484, 96
        %v1490 = vpop.permute.xlu0 %1489
        %v1496 = vunpack.c.l.b16 %v1462
        %v1497 = vunpack.c.l.b16 %v1463
        %v1498 = vunpack.c.l.b16 %v1464
        %v1499 = vunpack.c.l.b16 %v1465
        %v1500 = vunpack.c.l.b16 %v1466
        %v1501 = vpack.c.b16 %v1497, %v1496
        %v1502 = vpack.c.b16 %v1499, %v1498
        %v1503 = vpack.c.b16 %v1500, %v1500
        %1504 = vrot.lane.b32.xlu0 %v1501, 96
        %v1505 = vpop.permute.xlu0 %1504
        %1506 = vrot.lane.b32.xlu0 %v1502, 96
        %v1507 = vpop.permute.xlu0 %1506
        %1508 = vrot.lane.b32.xlu0 %v1503, 96
        %v1509 = vpop.permute.xlu0 %1508
        %v1511 = vsel %vm1206, %v1486, 0
        %v1514 = vsel %vm1206, %v1488, 0
        %v1517 = vsel %vm1206, %v1490, 0
        %v1520 = vsel %vm1206, %v1505, 0
        %v1523 = vsel %vm1206, %v1507, 0
        %v1526 = vsel %vm1206, %v1509, 0
        %1528 = vmatprep.subr.bf16.mxu0 0
        %1529 = vmatpush1.bf16.xpose.msra.mxu0 %v1520
        %1530 = vmatprep.subr.bf16.mxu0 0
        %1531 = vmatpush1.bf16.xpose.msra.mxu0 %v1523
        %1532 = vmatprep.subr.bf16.mxu0 0
        %1533 = vmatpush1.bf16.xpose.msra.mxu0 %v1526
        %1534 = vmatprep.subr.bf16.mxu0 0
        %1535 = vmatpush1.bf16.xpose.msra.mxu0 0
        %1536 = vmatprep.subr.bf16.mxu0 0
        %1537 = vmatpush1.bf16.xpose.msra.mxu0 0
        %1538 = vmatprep.subr.bf16.mxu0 0
        %1539 = vmatpush1.bf16.xpose.msra.mxu0 0
        %1540 = vmatprep.subr.bf16.mxu0 0
        %1541 = vmatpush1.bf16.xpose.msra.mxu0 0
        %1542 = vmatprep.subr.bf16.mxu0 0
        %1543 = vmatpush1.bf16.xpose.msra.mxu0 0
        %1544 = vmatprep.subr.bf16.mxu0 0
        %1545 = vmatpush1.bf16.xpose.msra.mxu0 0
        %1546 = vmatprep.subr.bf16.mxu0 0
        %1547 = vmatpush1.bf16.xpose.msra.mxu0 0
        %1548 = vmatprep.subr.bf16.mxu0 0
        %1549 = vmatpush1.bf16.xpose.msra.mxu0 0
        %1550 = vmatprep.subr.bf16.mxu0 0
        %1551 = vmatpush1.bf16.xpose.msra.mxu0 0
        %1552 = vmatprep.subr.bf16.mxu0 0
        %1553 = vmatpush1.bf16.xpose.msra.mxu0 0
        %1554 = vmatprep.subr.bf16.mxu0 0
        %1555 = vmatpush1.bf16.xpose.msra.mxu0 0
        %1556 = vmatprep.subr.bf16.mxu0 0
        %1557 = vmatpush1.bf16.xpose.msra.mxu0 0
        %1558 = vmatprep.subr.bf16.mxu0 0
        %1559 = vmatpush1.bf16.xpose.msra.mxu0 0
        %1560 = vmatprep.mubr.bf16.mxu0 0
        %1561 = vmatmul.mubr.bf16.gmra.mrb[0].mxu0 %v1511
        %v1562 = vpop.f32.mrb[0].mxu0
        %v1563 = vadd.f32 0.0, %v1562
        %v1564 = vpop.f32.mrb[0].mxu0
        %v1565 = vpop.f32.mrb[0].mxu0
        %v1566 = vadd.f32 0.0, %v1565
        %v1567 = vpop.f32.mrb[0].mxu0
        %1568 = vmatprep.mubr.bf16.mxu0 0
        %1569 = vmatmul.mubr.bf16.gmra.mrb[0].mxu0 %v1514
        %v1570 = vpop.f32.mrb[0].mxu0
        %v1571 = vadd.f32 0.0, %v1570
        %v1572 = vpop.f32.mrb[0].mxu0
        %v1573 = vpop.f32.mrb[0].mxu0
        %v1574 = vadd.f32 0.0, %v1573
        %v1575 = vpop.f32.mrb[0].mxu0
        %1576 = vmatprep.mubr.bf16.mxu0 0
        %1577 = vmatmul.mubr.bf16.gmra.mrb[0].mxu0 %v1517
        %v1578 = vpop.f32.mrb[0].mxu0
        %v1579 = vadd.f32 0.0, %v1578
        %v1580 = vpop.f32.mrb[0].mxu0
        %v1581 = vpop.f32.mrb[0].mxu0
        %v1582 = vpop.f32.mrb[0].mxu0
        %1583 = vdwg.mxu0
        %v1584 = vsel %vm1281, %v1563, -inf
        %1585 = vmax.xlane.f32.xlu0 %v1584
        %v1586 = vpop.xlane.xlu0 %1585
        %v1587 = vsel %vm1281, %v1566, -inf
        %1588 = vmax.xlane.f32.xlu0 %v1587
        %v1589 = vpop.xlane.xlu0 %1588
        %v1590 = vsel %vm1281, %v1571, -inf
        %1591 = vmax.xlane.f32.xlu0 %v1590
        %v1592 = vpop.xlane.xlu0 %1591
        %v1593 = vsel %vm1281, %v1574, -inf
        %1594 = vmax.xlane.f32.xlu0 %v1593
        %v1595 = vpop.xlane.xlu0 %1594
        %v1596 = vsel %vm1294, %v1579, -inf
        %1597 = vmax.xlane.f32.xlu0 %v1596
        %v1598 = vpop.xlane.xlu0 %1597
        %v1599 = vsub.f32 %v1563, %v1586
        %v1600 = vsub.f32 %v1566, %v1589
        %v1601 = vsub.f32 %v1571, %v1592
        %v1602 = vsub.f32 %v1574, %v1595
        %v1603 = vsub.f32 %v1579, %v1598
        %v1604 = vmul.f32 %v1599, 1.442695
        %v1605 = vpow.pop %v1604
        %v1606 = vmul.f32 %v1600, 1.442695
        %v1607 = vpow.pop %v1606
        %v1608 = vmul.f32 %v1601, 1.442695
        %v1609 = vpow.pop %v1608
        %v1610 = vmul.f32 %v1602, 1.442695
        %v1611 = vpow.pop %v1610
        %v1612 = vmul.f32 %v1603, 1.442695
        %v1613 = vpow.pop %v1612
        %v1614 = vsel %vm1281, %v1605, 0.0
        %1615 = vadd.xlane.f32.xlu0 %v1614
        %v1616 = vpop.xlane.xlu0 %1615
        %v1617 = vsel %vm1281, %v1607, 0.0
        %1618 = vadd.xlane.f32.xlu0 %v1617
        %v1619 = vpop.xlane.xlu0 %1618
        %v1620 = vsel %vm1281, %v1609, 0.0
        %1621 = vadd.xlane.f32.xlu0 %v1620
        %v1622 = vpop.xlane.xlu0 %1621
        %v1623 = vsel %vm1281, %v1611, 0.0
        %1624 = vadd.xlane.f32.xlu0 %v1623
        %v1625 = vpop.xlane.xlu0 %1624
        %v1626 = vsel %vm1294, %v1613, 0.0
        %1627 = vadd.xlane.f32.xlu0 %v1626
        %v1628 = vpop.xlane.xlu0 %1627
        %v1629 = vrcp.pop %v1616
        %v1630 = vrcp.pop %v1619
        %v1631 = vrcp.pop %v1622
        %v1632 = vrcp.pop %v1625
        %v1633 = vrcp.pop %v1628
        %v1634 = vmul.f32 %v1605, %v1629
        %v1635 = vmul.f32 %v1607, %v1630
        %v1636 = vmul.f32 %v1609, %v1631
        %v1637 = vmul.f32 %v1611, %v1632
        %v1638 = vmul.f32 %v1613, %v1633
        %v1639 = vpack.c.bf16 %v1635, %v1634
        %v1640 = vpack.c.bf16 %v1637, %v1636
        %v1641 = vpack.c.bf16 %v1638, %v1638
        %v1647 = vunpack.c.l.b16 %v1467
        %v1648 = vunpack.c.l.b16 %v1468
        %v1649 = vunpack.c.l.b16 %v1469
        %v1650 = vunpack.c.l.b16 %v1470
        %v1651 = vunpack.c.l.b16 %v1471
        %v1652 = vpack.c.b16 %v1648, %v1647
        %v1653 = vpack.c.b16 %v1650, %v1649
        %v1654 = vpack.c.b16 %v1651, %v1651
        %1655 = vrot.lane.b32.xlu0 %v1652, 96
        %v1656 = vpop.permute.xlu0 %1655
        %1657 = vrot.lane.b32.xlu0 %v1653, 96
        %v1658 = vpop.permute.xlu0 %1657
        %1659 = vrot.lane.b32.xlu0 %v1654, 96
        %v1660 = vpop.permute.xlu0 %1659
        %v1664 = vsel %vm1281, %v1639, 0
        %v1667 = vsel %vm1281, %v1640, 0
        %v1670 = vsel %vm1281, %v1641, 0
        %v1673 = vand.u32 %v1660, %v1366
        %1675 = vmatprep.subr.bf16.mxu0 0
        %1676 = vmatpush1.bf16.msra.mxu0 %v1656
        %1677 = vmatprep.subr.bf16.mxu0 0
        %1678 = vmatpush1.bf16.msra.mxu0 %v1658
        %1679 = vmatprep.subr.bf16.mxu0 0
        %1680 = vmatpush1.bf16.msra.mxu0 %v1673
        %1681 = vmatprep.subr.bf16.mxu0 0
        %1682 = vmatpush1.bf16.msra.mxu0 0
        %1683 = vmatprep.subr.bf16.mxu0 0
        %1684 = vmatpush1.bf16.msra.mxu0 0
        %1685 = vmatprep.subr.bf16.mxu0 0
        %1686 = vmatpush1.bf16.msra.mxu0 0
        %1687 = vmatprep.subr.bf16.mxu0 0
        %1688 = vmatpush1.bf16.msra.mxu0 0
        %1689 = vmatprep.subr.bf16.mxu0 0
        %1690 = vmatpush1.bf16.msra.mxu0 0
        %1691 = vmatprep.subr.bf16.mxu0 0
        %1692 = vmatpush1.bf16.msra.mxu0 0
        %1693 = vmatprep.subr.bf16.mxu0 0
        %1694 = vmatpush1.bf16.msra.mxu0 0
        %1695 = vmatprep.subr.bf16.mxu0 0
        %1696 = vmatpush1.bf16.msra.mxu0 0
        %1697 = vmatprep.subr.bf16.mxu0 0
        %1698 = vmatpush1.bf16.msra.mxu0 0
        %1699 = vmatprep.subr.bf16.mxu0 0
        %1700 = vmatpush1.bf16.msra.mxu0 0
        %1701 = vmatprep.subr.bf16.mxu0 0
        %1702 = vmatpush1.bf16.msra.mxu0 0
        %1703 = vmatprep.subr.bf16.mxu0 0
        %1704 = vmatpush1.bf16.msra.mxu0 0
        %1705 = vmatprep.subr.bf16.mxu0 0
        %1706 = vmatpush1.bf16.msra.mxu0 0
        %1707 = vmatprep.mubr.bf16.mxu0 0
        %1708 = vmatmul.mubr.bf16.gmra.mrb[0].mxu0 %v1664
        %v1709 = vpop.f32.mrb[0].mxu0
        %v1710 = vadd.f32 0.0, %v1709
        %v1711 = vpop.f32.mrb[0].mxu0
        %v1712 = vpop.f32.mrb[0].mxu0
        %v1713 = vadd.f32 0.0, %v1712
        %v1714 = vpop.f32.mrb[0].mxu0
        %1715 = vmatprep.mubr.bf16.mxu0 0
        %1716 = vmatmul.mubr.bf16.gmra.mrb[0].mxu0 %v1667
        %v1717 = vpop.f32.mrb[0].mxu0
        %v1718 = vadd.f32 0.0, %v1717
        %v1719 = vpop.f32.mrb[0].mxu0
        %v1720 = vpop.f32.mrb[0].mxu0
        %v1721 = vadd.f32 0.0, %v1720
        %v1722 = vpop.f32.mrb[0].mxu0
        %1723 = vmatprep.mubr.bf16.mxu0 0
        %1724 = vmatmul.mubr.bf16.gmra.mrb[0].mxu0 %v1670
        %v1725 = vpop.f32.mrb[0].mxu0
        %v1726 = vadd.f32 0.0, %v1725
        %v1727 = vpop.f32.mrb[0].mxu0
        %v1728 = vpop.f32.mrb[0].mxu0
        %v1729 = vpop.f32.mrb[0].mxu0
        %1730 = vdwg.mxu0
        %v1731 = vpack.c.bf16 %v1713, %v1710
        %v1732 = vpack.c.bf16 %v1721, %v1718
        %v1733 = vpack.c.bf16 %v1726, %v1726
        %v1737 = vunpack.c.l.b16 %v1731
        %v1738 = vunpack.c.h.b16 %v1731
        %v1739 = vunpack.c.l.b16 %v1732
        %v1740 = vunpack.c.h.b16 %v1732
        %v1741 = vunpack.c.l.b16 %v1733
        %v1742 = vpack.c.b16 %v1737, %v1737
        %v1743 = vpack.c.b16 %v1738, %v1738
        %v1744 = vpack.c.b16 %v1739, %v1739
        %v1745 = vpack.c.b16 %v1740, %v1740
        %v1746 = vpack.c.b16 %v1741, %v1741
        %1747 = vrot.lane.b32.xlu0 %v1742, 32
        %v1748 = vpop.permute.xlu0 %1747
        %1749 = vrot.lane.b32.xlu0 %v1743, 32
        %v1750 = vpop.permute.xlu0 %1749
        %1751 = vrot.lane.b32.xlu0 %v1744, 32
        %v1752 = vpop.permute.xlu0 %1751
        %1753 = vrot.lane.b32.xlu0 %v1745, 32
        %v1754 = vpop.permute.xlu0 %1753
        %1755 = vrot.lane.b32.xlu0 %v1746, 32
        %v1756 = vpop.permute.xlu0 %1755
        %vm1762 = vcmask 519424
        %1763 = vst.msk [vmem:[#allocation4] sm:$0xf] %vm1762, %v1748
        %1764 = vst.msk [vmem:[#allocation4 + $0x4] sm:$0xf] %vm1762, %v1750
        %1765 = vst.msk [vmem:[#allocation4 + $0x8] sm:$0xf] %vm1762, %v1752
        %1766 = vst.msk [vmem:[#allocation4 + $0xc] sm:$0xf] %vm1762, %v1754
        %vm1767 = vcmask 516352
        %vm1768 = vmand %vm1767, %vm1153
        %v1769 = vld [vmem:[#allocation4 + $0x10] sm:$0x1]
        %v1770 = vsel %vm1768, %v1756, %v1769
        %1771 = vst [vmem:[#allocation4 + $0x10] sm:$0x1] %v1770
        %v1772 = vld [vmem:[#allocation3] sm:$0xf]
        %v1773 = vld [vmem:[#allocation3 + $0xc] sm:$0xf]
        %v1774 = vld [vmem:[#allocation3 + $0x18] sm:$0xf]
        %v1775 = vld [vmem:[#allocation3 + $0x24] sm:$0xf]
        %v1776 = vld [vmem:[#allocation3 + $0x30] sm:$0x1]
        %v1777 = vld [vmem:[#allocation3 + $0x4] sm:$0xf]
        %v1778 = vld [vmem:[#allocation3 + $0x10] sm:$0xf]
        %v1779 = vld [vmem:[#allocation3 + $0x1c] sm:$0xf]
        %v1780 = vld [vmem:[#allocation3 + $0x28] sm:$0xf]
        %v1781 = vld [vmem:[#allocation3 + $0x34] sm:$0x1]
        %v1782 = vld [vmem:[#allocation3 + $0x8] sm:$0xf]
        %v1783 = vld [vmem:[#allocation3 + $0x14] sm:$0xf]
        %v1784 = vld [vmem:[#allocation3 + $0x20] sm:$0xf]
        %v1785 = vld [vmem:[#allocation3 + $0x2c] sm:$0xf]
        %v1786 = vld [vmem:[#allocation3 + $0x38] sm:$0x1]
        %v1792 = vunpack.c.l.b16 %v1772
        %v1793 = vunpack.c.l.b16 %v1773
        %v1794 = vunpack.c.l.b16 %v1774
        %v1795 = vunpack.c.l.b16 %v1775
        %v1796 = vunpack.c.l.b16 %v1776
        %v1797 = vpack.c.b16 %v1793, %v1792
        %v1798 = vpack.c.b16 %v1795, %v1794
        %v1799 = vpack.c.b16 %v1796, %v1796
        %1800 = vrot.lane.b32.xlu0 %v1797, 64
        %v1801 = vpop.permute.xlu0 %1800
        %1802 = vrot.lane.b32.xlu0 %v1798, 64
        %v1803 = vpop.permute.xlu0 %1802
        %1804 = vrot.lane.b32.xlu0 %v1799, 64
        %v1805 = vpop.permute.xlu0 %1804
        %v1811 = vunpack.c.l.b16 %v1777
        %v1812 = vunpack.c.l.b16 %v1778
        %v1813 = vunpack.c.l.b16 %v1779
        %v1814 = vunpack.c.l.b16 %v1780
        %v1815 = vunpack.c.l.b16 %v1781
        %v1816 = vpack.c.b16 %v1812, %v1811
        %v1817 = vpack.c.b16 %v1814, %v1813
        %v1818 = vpack.c.b16 %v1815, %v1815
        %1819 = vrot.lane.b32.xlu0 %v1816, 64
        %v1820 = vpop.permute.xlu0 %1819
        %1821 = vrot.lane.b32.xlu0 %v1817, 64
        %v1822 = vpop.permute.xlu0 %1821
        %1823 = vrot.lane.b32.xlu0 %v1818, 64
        %v1824 = vpop.permute.xlu0 %1823
        %v1826 = vsel %vm1206, %v1801, 0
        %v1829 = vsel %vm1206, %v1803, 0
        %v1832 = vsel %vm1206, %v1805, 0
        %v1835 = vsel %vm1206, %v1820, 0
        %v1838 = vsel %vm1206, %v1822, 0
        %v1841 = vsel %vm1206, %v1824, 0
        %1843 = vmatprep.subr.bf16.mxu0 0
        %1844 = vmatpush1.bf16.xpose.msra.mxu0 %v1835
        %1845 = vmatprep.subr.bf16.mxu0 0
        %1846 = vmatpush1.bf16.xpose.msra.mxu0 %v1838
        %1847 = vmatprep.subr.bf16.mxu0 0
        %1848 = vmatpush1.bf16.xpose.msra.mxu0 %v1841
        %1849 = vmatprep.subr.bf16.mxu0 0
        %1850 = vmatpush1.bf16.xpose.msra.mxu0 0
        %1851 = vmatprep.subr.bf16.mxu0 0
        %1852 = vmatpush1.bf16.xpose.msra.mxu0 0
        %1853 = vmatprep.subr.bf16.mxu0 0
        %1854 = vmatpush1.bf16.xpose.msra.mxu0 0
        %1855 = vmatprep.subr.bf16.mxu0 0
        %1856 = vmatpush1.bf16.xpose.msra.mxu0 0
        %1857 = vmatprep.subr.bf16.mxu0 0
        %1858 = vmatpush1.bf16.xpose.msra.mxu0 0
        %1859 = vmatprep.subr.bf16.mxu0 0
        %1860 = vmatpush1.bf16.xpose.msra.mxu0 0
        %1861 = vmatprep.subr.bf16.mxu0 0
        %1862 = vmatpush1.bf16.xpose.msra.mxu0 0
        %1863 = vmatprep.subr.bf16.mxu0 0
        %1864 = vmatpush1.bf16.xpose.msra.mxu0 0
        %1865 = vmatprep.subr.bf16.mxu0 0
        %1866 = vmatpush1.bf16.xpose.msra.mxu0 0
        %1867 = vmatprep.subr.bf16.mxu0 0
        %1868 = vmatpush1.bf16.xpose.msra.mxu0 0
        %1869 = vmatprep.subr.bf16.mxu0 0
        %1870 = vmatpush1.bf16.xpose.msra.mxu0 0
        %1871 = vmatprep.subr.bf16.mxu0 0
        %1872 = vmatpush1.bf16.xpose.msra.mxu0 0
        %1873 = vmatprep.subr.bf16.mxu0 0
        %1874 = vmatpush1.bf16.xpose.msra.mxu0 0
        %1875 = vmatprep.mubr.bf16.mxu0 0
        %1876 = vmatmul.mubr.bf16.gmra.mrb[0].mxu0 %v1826
        %v1877 = vpop.f32.mrb[0].mxu0
        %v1878 = vadd.f32 0.0, %v1877
        %v1879 = vpop.f32.mrb[0].mxu0
        %v1880 = vpop.f32.mrb[0].mxu0
        %v1881 = vadd.f32 0.0, %v1880
        %v1882 = vpop.f32.mrb[0].mxu0
        %1883 = vmatprep.mubr.bf16.mxu0 0
        %1884 = vmatmul.mubr.bf16.gmra.mrb[0].mxu0 %v1829
        %v1885 = vpop.f32.mrb[0].mxu0
        %v1886 = vadd.f32 0.0, %v1885
        %v1887 = vpop.f32.mrb[0].mxu0
        %v1888 = vpop.f32.mrb[0].mxu0
        %v1889 = vadd.f32 0.0, %v1888
        %v1890 = vpop.f32.mrb[0].mxu0
        %1891 = vmatprep.mubr.bf16.mxu0 0
        %1892 = vmatmul.mubr.bf16.gmra.mrb[0].mxu0 %v1832
        %v1893 = vpop.f32.mrb[0].mxu0
        %v1894 = vadd.f32 0.0, %v1893
        %v1895 = vpop.f32.mrb[0].mxu0
        %v1896 = vpop.f32.mrb[0].mxu0
        %v1897 = vpop.f32.mrb[0].mxu0
        %1898 = vdwg.mxu0
        %v1899 = vsel %vm1281, %v1878, -inf
        %1900 = vmax.xlane.f32.xlu0 %v1899
        %v1901 = vpop.xlane.xlu0 %1900
        %v1902 = vsel %vm1281, %v1881, -inf
        %1903 = vmax.xlane.f32.xlu0 %v1902
        %v1904 = vpop.xlane.xlu0 %1903
        %v1905 = vsel %vm1281, %v1886, -inf
        %1906 = vmax.xlane.f32.xlu0 %v1905
        %v1907 = vpop.xlane.xlu0 %1906
        %v1908 = vsel %vm1281, %v1889, -inf
        %1909 = vmax.xlane.f32.xlu0 %v1908
        %v1910 = vpop.xlane.xlu0 %1909
        %v1911 = vsel %vm1294, %v1894, -inf
        %1912 = vmax.xlane.f32.xlu0 %v1911
        %v1913 = vpop.xlane.xlu0 %1912
        %v1914 = vsub.f32 %v1878, %v1901
        %v1915 = vsub.f32 %v1881, %v1904
        %v1916 = vsub.f32 %v1886, %v1907
        %v1917 = vsub.f32 %v1889, %v1910
        %v1918 = vsub.f32 %v1894, %v1913
        %v1919 = vmul.f32 %v1914, 1.442695
        %v1920 = vpow.pop %v1919
        %v1921 = vmul.f32 %v1915, 1.442695
        %v1922 = vpow.pop %v1921
        %v1923 = vmul.f32 %v1916, 1.442695
        %v1924 = vpow.pop %v1923
        %v1925 = vmul.f32 %v1917, 1.442695
        %v1926 = vpow.pop %v1925
        %v1927 = vmul.f32 %v1918, 1.442695
        %v1928 = vpow.pop %v1927
        %v1929 = vsel %vm1281, %v1920, 0.0
        %1930 = vadd.xlane.f32.xlu0 %v1929
        %v1931 = vpop.xlane.xlu0 %1930
        %v1932 = vsel %vm1281, %v1922, 0.0
        %1933 = vadd.xlane.f32.xlu0 %v1932
        %v1934 = vpop.xlane.xlu0 %1933
        %v1935 = vsel %vm1281, %v1924, 0.0
        %1936 = vadd.xlane.f32.xlu0 %v1935
        %v1937 = vpop.xlane.xlu0 %1936
        %v1938 = vsel %vm1281, %v1926, 0.0
        %1939 = vadd.xlane.f32.xlu0 %v1938
        %v1940 = vpop.xlane.xlu0 %1939
        %v1941 = vsel %vm1294, %v1928, 0.0
        %1942 = vadd.xlane.f32.xlu0 %v1941
        %v1943 = vpop.xlane.xlu0 %1942
        %v1944 = vrcp.pop %v1931
        %v1945 = vrcp.pop %v1934
        %v1946 = vrcp.pop %v1937
        %v1947 = vrcp.pop %v1940
        %v1948 = vrcp.pop %v1943
        %v1949 = vmul.f32 %v1920, %v1944
        %v1950 = vmul.f32 %v1922, %v1945
        %v1951 = vmul.f32 %v1924, %v1946
        %v1952 = vmul.f32 %v1926, %v1947
        %v1953 = vmul.f32 %v1928, %v1948
        %v1954 = vpack.c.bf16 %v1950, %v1949
        %v1955 = vpack.c.bf16 %v1952, %v1951
        %v1956 = vpack.c.bf16 %v1953, %v1953
        %v1962 = vunpack.c.l.b16 %v1782
        %v1963 = vunpack.c.l.b16 %v1783
        %v1964 = vunpack.c.l.b16 %v1784
        %v1965 = vunpack.c.l.b16 %v1785
        %v1966 = vunpack.c.l.b16 %v1786
        %v1967 = vpack.c.b16 %v1963, %v1962
        %v1968 = vpack.c.b16 %v1965, %v1964
        %v1969 = vpack.c.b16 %v1966, %v1966
        %1970 = vrot.lane.b32.xlu0 %v1967, 64
        %v1971 = vpop.permute.xlu0 %1970
        %1972 = vrot.lane.b32.xlu0 %v1968, 64
        %v1973 = vpop.permute.xlu0 %1972
        %1974 = vrot.lane.b32.xlu0 %v1969, 64
        %v1975 = vpop.permute.xlu0 %1974
        %v1979 = vsel %vm1281, %v1954, 0
        %v1982 = vsel %vm1281, %v1955, 0
        %v1985 = vsel %vm1281, %v1956, 0
        %v1988 = vand.u32 %v1975, %v1366
        %1990 = vmatprep.subr.bf16.mxu0 0
        %1991 = vmatpush1.bf16.msra.mxu0 %v1971
        %1992 = vmatprep.subr.bf16.mxu0 0
        %1993 = vmatpush1.bf16.msra.mxu0 %v1973
        %1994 = vmatprep.subr.bf16.mxu0 0
        %1995 = vmatpush1.bf16.msra.mxu0 %v1988
        %1996 = vmatprep.subr.bf16.mxu0 0
        %1997 = vmatpush1.bf16.msra.mxu0 0
        %1998 = vmatprep.subr.bf16.mxu0 0
        %1999 = vmatpush1.bf16.msra.mxu0 0
        %2000 = vmatprep.subr.bf16.mxu0 0
        %2001 = vmatpush1.bf16.msra.mxu0 0
        %2002 = vmatprep.subr.bf16.mxu0 0
        %2003 = vmatpush1.bf16.msra.mxu0 0
        %2004 = vmatprep.subr.bf16.mxu0 0
        %2005 = vmatpush1.bf16.msra.mxu0 0
        %2006 = vmatprep.subr.bf16.mxu0 0
        %2007 = vmatpush1.bf16.msra.mxu0 0
        %2008 = vmatprep.subr.bf16.mxu0 0
        %2009 = vmatpush1.bf16.msra.mxu0 0
        %2010 = vmatprep.subr.bf16.mxu0 0
        %2011 = vmatpush1.bf16.msra.mxu0 0
        %2012 = vmatprep.subr.bf16.mxu0 0
        %2013 = vmatpush1.bf16.msra.mxu0 0
        %2014 = vmatprep.subr.bf16.mxu0 0
        %2015 = vmatpush1.bf16.msra.mxu0 0
        %2016 = vmatprep.subr.bf16.mxu0 0
        %2017 = vmatpush1.bf16.msra.mxu0 0
        %2018 = vmatprep.subr.bf16.mxu0 0
        %2019 = vmatpush1.bf16.msra.mxu0 0
        %2020 = vmatprep.subr.bf16.mxu0 0
        %2021 = vmatpush1.bf16.msra.mxu0 0
        %2022 = vmatprep.mubr.bf16.mxu0 0
        %2023 = vmatmul.mubr.bf16.gmra.mrb[0].mxu0 %v1979
        %v2024 = vpop.f32.mrb[0].mxu0
        %v2025 = vadd.f32 0.0, %v2024
        %v2026 = vpop.f32.mrb[0].mxu0
        %v2027 = vpop.f32.mrb[0].mxu0
        %v2028 = vadd.f32 0.0, %v2027
        %v2029 = vpop.f32.mrb[0].mxu0
        %2030 = vmatprep.mubr.bf16.mxu0 0
        %2031 = vmatmul.mubr.bf16.gmra.mrb[0].mxu0 %v1982
        %v2032 = vpop.f32.mrb[0].mxu0
        %v2033 = vadd.f32 0.0, %v2032
        %v2034 = vpop.f32.mrb[0].mxu0
        %v2035 = vpop.f32.mrb[0].mxu0
        %v2036 = vadd.f32 0.0, %v2035
        %v2037 = vpop.f32.mrb[0].mxu0
        %2038 = vmatprep.mubr.bf16.mxu0 0
        %2039 = vmatmul.mubr.bf16.gmra.mrb[0].mxu0 %v1985
        %v2040 = vpop.f32.mrb[0].mxu0
        %v2041 = vadd.f32 0.0, %v2040
        %v2042 = vpop.f32.mrb[0].mxu0
        %v2043 = vpop.f32.mrb[0].mxu0
        %v2044 = vpop.f32.mrb[0].mxu0
        %2045 = vdwg.mxu0
        %v2046 = vpack.c.bf16 %v2028, %v2025
        %v2047 = vpack.c.bf16 %v2036, %v2033
        %v2048 = vpack.c.bf16 %v2041, %v2041
        %v2052 = vunpack.c.l.b16 %v2046
        %v2053 = vunpack.c.h.b16 %v2046
        %v2054 = vunpack.c.l.b16 %v2047
        %v2055 = vunpack.c.h.b16 %v2047
        %v2056 = vunpack.c.l.b16 %v2048
        %v2057 = vpack.c.b16 %v2052, %v2052
        %v2058 = vpack.c.b16 %v2053, %v2053
        %v2059 = vpack.c.b16 %v2054, %v2054
        %v2060 = vpack.c.b16 %v2055, %v2055
        %v2061 = vpack.c.b16 %v2056, %v2056
        %2062 = vrot.lane.b32.xlu0 %v2057, 64
        %v2063 = vpop.permute.xlu0 %2062
        %2064 = vrot.lane.b32.xlu0 %v2058, 64
        %v2065 = vpop.permute.xlu0 %2064
        %2066 = vrot.lane.b32.xlu0 %v2059, 64
        %v2067 = vpop.permute.xlu0 %2066
        %2068 = vrot.lane.b32.xlu0 %v2060, 64
        %v2069 = vpop.permute.xlu0 %2068
        %2070 = vrot.lane.b32.xlu0 %v2061, 64
        %v2071 = vpop.permute.xlu0 %2070
        %vm2077 = vcmask 781824
        %2078 = vst.msk [vmem:[#allocation4] sm:$0xf] %vm2077, %v2063
        %2079 = vst.msk [vmem:[#allocation4 + $0x4] sm:$0xf] %vm2077, %v2065
        %2080 = vst.msk [vmem:[#allocation4 + $0x8] sm:$0xf] %vm2077, %v2067
        %2081 = vst.msk [vmem:[#allocation4 + $0xc] sm:$0xf] %vm2077, %v2069
        %vm2082 = vcmask 778752
        %vm2083 = vmand %vm2082, %vm1153
        %v2084 = vld [vmem:[#allocation4 + $0x10] sm:$0x1]
        %v2085 = vsel %vm2083, %v2071, %v2084
        %2086 = vst [vmem:[#allocation4 + $0x10] sm:$0x1] %v2085
        %v2087 = vld [vmem:[#allocation3] sm:$0xf]
        %v2088 = vld [vmem:[#allocation3 + $0xc] sm:$0xf]
        %v2089 = vld [vmem:[#allocation3 + $0x18] sm:$0xf]
        %v2090 = vld [vmem:[#allocation3 + $0x24] sm:$0xf]
        %v2091 = vld [vmem:[#allocation3 + $0x30] sm:$0x1]
        %v2092 = vld [vmem:[#allocation3 + $0x4] sm:$0xf]
        %v2093 = vld [vmem:[#allocation3 + $0x10] sm:$0xf]
        %v2094 = vld [vmem:[#allocation3 + $0x1c] sm:$0xf]
        %v2095 = vld [vmem:[#allocation3 + $0x28] sm:$0xf]
        %v2096 = vld [vmem:[#allocation3 + $0x34] sm:$0x1]
        %v2097 = vld [vmem:[#allocation3 + $0x8] sm:$0xf]
        %v2098 = vld [vmem:[#allocation3 + $0x14] sm:$0xf]
        %v2099 = vld [vmem:[#allocation3 + $0x20] sm:$0xf]
        %v2100 = vld [vmem:[#allocation3 + $0x2c] sm:$0xf]
        %v2101 = vld [vmem:[#allocation3 + $0x38] sm:$0x1]
        %v2107 = vunpack.c.l.b16 %v2087
        %v2108 = vunpack.c.l.b16 %v2088
        %v2109 = vunpack.c.l.b16 %v2089
        %v2110 = vunpack.c.l.b16 %v2090
        %v2111 = vunpack.c.l.b16 %v2091
        %v2112 = vpack.c.b16 %v2108, %v2107
        %v2113 = vpack.c.b16 %v2110, %v2109
        %v2114 = vpack.c.b16 %v2111, %v2111
        %2115 = vrot.lane.b32.xlu0 %v2112, 32
        %v2116 = vpop.permute.xlu0 %2115
        %2117 = vrot.lane.b32.xlu0 %v2113, 32
        %v2118 = vpop.permute.xlu0 %2117
        %2119 = vrot.lane.b32.xlu0 %v2114, 32
        %v2120 = vpop.permute.xlu0 %2119
        %v2126 = vunpack.c.l.b16 %v2092
        %v2127 = vunpack.c.l.b16 %v2093
        %v2128 = vunpack.c.l.b16 %v2094
        %v2129 = vunpack.c.l.b16 %v2095
        %v2130 = vunpack.c.l.b16 %v2096
        %v2131 = vpack.c.b16 %v2127, %v2126
        %v2132 = vpack.c.b16 %v2129, %v2128
        %v2133 = vpack.c.b16 %v2130, %v2130
        %2134 = vrot.lane.b32.xlu0 %v2131, 32
        %v2135 = vpop.permute.xlu0 %2134
        %2136 = vrot.lane.b32.xlu0 %v2132, 32
        %v2137 = vpop.permute.xlu0 %2136
        %2138 = vrot.lane.b32.xlu0 %v2133, 32
        %v2139 = vpop.permute.xlu0 %2138
        %v2141 = vsel %vm1206, %v2116, 0
        %v2144 = vsel %vm1206, %v2118, 0
        %v2147 = vsel %vm1206, %v2120, 0
        %v2150 = vsel %vm1206, %v2135, 0
        %v2153 = vsel %vm1206, %v2137, 0
        %v2156 = vsel %vm1206, %v2139, 0
        %2158 = vmatprep.subr.bf16.mxu0 0
        %2159 = vmatpush1.bf16.xpose.msra.mxu0 %v2150
        %2160 = vmatprep.subr.bf16.mxu0 0
        %2161 = vmatpush1.bf16.xpose.msra.mxu0 %v2153
        %2162 = vmatprep.subr.bf16.mxu0 0
        %2163 = vmatpush1.bf16.xpose.msra.mxu0 %v2156
        %2164 = vmatprep.subr.bf16.mxu0 0
        %2165 = vmatpush1.bf16.xpose.msra.mxu0 0
        %2166 = vmatprep.subr.bf16.mxu0 0
        %2167 = vmatpush1.bf16.xpose.msra.mxu0 0
        %2168 = vmatprep.subr.bf16.mxu0 0
        %2169 = vmatpush1.bf16.xpose.msra.mxu0 0
        %2170 = vmatprep.subr.bf16.mxu0 0
        %2171 = vmatpush1.bf16.xpose.msra.mxu0 0
        %2172 = vmatprep.subr.bf16.mxu0 0
        %2173 = vmatpush1.bf16.xpose.msra.mxu0 0
        %2174 = vmatprep.subr.bf16.mxu0 0
        %2175 = vmatpush1.bf16.xpose.msra.mxu0 0
        %2176 = vmatprep.subr.bf16.mxu0 0
        %2177 = vmatpush1.bf16.xpose.msra.mxu0 0
        %2178 = vmatprep.subr.bf16.mxu0 0
        %2179 = vmatpush1.bf16.xpose.msra.mxu0 0
        %2180 = vmatprep.subr.bf16.mxu0 0
        %2181 = vmatpush1.bf16.xpose.msra.mxu0 0
        %2182 = vmatprep.subr.bf16.mxu0 0
        %2183 = vmatpush1.bf16.xpose.msra.mxu0 0
        %2184 = vmatprep.subr.bf16.mxu0 0
        %2185 = vmatpush1.bf16.xpose.msra.mxu0 0
        %2186 = vmatprep.subr.bf16.mxu0 0
        %2187 = vmatpush1.bf16.xpose.msra.mxu0 0
        %2188 = vmatprep.subr.bf16.mxu0 0
        %2189 = vmatpush1.bf16.xpose.msra.mxu0 0
        %2190 = vmatprep.mubr.bf16.mxu0 0
        %2191 = vmatmul.mubr.bf16.gmra.mrb[0].mxu0 %v2141
        %v2192 = vpop.f32.mrb[0].mxu0
        %v2193 = vadd.f32 0.0, %v2192
        %v2194 = vpop.f32.mrb[0].mxu0
        %v2195 = vpop.f32.mrb[0].mxu0
        %v2196 = vadd.f32 0.0, %v2195
        %v2197 = vpop.f32.mrb[0].mxu0
        %2198 = vmatprep.mubr.bf16.mxu0 0
        %2199 = vmatmul.mubr.bf16.gmra.mrb[0].mxu0 %v2144
        %v2200 = vpop.f32.mrb[0].mxu0
        %v2201 = vadd.f32 0.0, %v2200
        %v2202 = vpop.f32.mrb[0].mxu0
        %v2203 = vpop.f32.mrb[0].mxu0
        %v2204 = vadd.f32 0.0, %v2203
        %v2205 = vpop.f32.mrb[0].mxu0
        %2206 = vmatprep.mubr.bf16.mxu0 0
        %2207 = vmatmul.mubr.bf16.gmra.mrb[0].mxu0 %v2147
        %v2208 = vpop.f32.mrb[0].mxu0
        %v2209 = vadd.f32 0.0, %v2208
        %v2210 = vpop.f32.mrb[0].mxu0
        %v2211 = vpop.f32.mrb[0].mxu0
        %v2212 = vpop.f32.mrb[0].mxu0
        %2213 = vdwg.mxu0
        %v2214 = vsel %vm1281, %v2193, -inf
        %2215 = vmax.xlane.f32.xlu0 %v2214
        %v2216 = vpop.xlane.xlu0 %2215
        %v2217 = vsel %vm1281, %v2196, -inf
        %2218 = vmax.xlane.f32.xlu0 %v2217
        %v2219 = vpop.xlane.xlu0 %2218
        %v2220 = vsel %vm1281, %v2201, -inf
        %2221 = vmax.xlane.f32.xlu0 %v2220
        %v2222 = vpop.xlane.xlu0 %2221
        %v2223 = vsel %vm1281, %v2204, -inf
        %2224 = vmax.xlane.f32.xlu0 %v2223
        %v2225 = vpop.xlane.xlu0 %2224
        %v2226 = vsel %vm1294, %v2209, -inf
        %2227 = vmax.xlane.f32.xlu0 %v2226
        %v2228 = vpop.xlane.xlu0 %2227
        %v2229 = vsub.f32 %v2193, %v2216
        %v2230 = vsub.f32 %v2196, %v2219
        %v2231 = vsub.f32 %v2201, %v2222
        %v2232 = vsub.f32 %v2204, %v2225
        %v2233 = vsub.f32 %v2209, %v2228
        %v2234 = vmul.f32 %v2229, 1.442695
        %v2235 = vpow.pop %v2234
        %v2236 = vmul.f32 %v2230, 1.442695
        %v2237 = vpow.pop %v2236
        %v2238 = vmul.f32 %v2231, 1.442695
        %v2239 = vpow.pop %v2238
        %v2240 = vmul.f32 %v2232, 1.442695
        %v2241 = vpow.pop %v2240
        %v2242 = vmul.f32 %v2233, 1.442695
        %v2243 = vpow.pop %v2242
        %v2244 = vsel %vm1281, %v2235, 0.0
        %2245 = vadd.xlane.f32.xlu0 %v2244
        %v2246 = vpop.xlane.xlu0 %2245
        %v2247 = vsel %vm1281, %v2237, 0.0
        %2248 = vadd.xlane.f32.xlu0 %v2247
        %v2249 = vpop.xlane.xlu0 %2248
        %v2250 = vsel %vm1281, %v2239, 0.0
        %2251 = vadd.xlane.f32.xlu0 %v2250
        %v2252 = vpop.xlane.xlu0 %2251
        %v2253 = vsel %vm1281, %v2241, 0.0
        %2254 = vadd.xlane.f32.xlu0 %v2253
        %v2255 = vpop.xlane.xlu0 %2254
        %v2256 = vsel %vm1294, %v2243, 0.0
        %2257 = vadd.xlane.f32.xlu0 %v2256
        %v2258 = vpop.xlane.xlu0 %2257
        %v2259 = vrcp.pop %v2246
        %v2260 = vrcp.pop %v2249
        %v2261 = vrcp.pop %v2252
        %v2262 = vrcp.pop %v2255
        %v2263 = vrcp.pop %v2258
        %v2264 = vmul.f32 %v2235, %v2259
        %v2265 = vmul.f32 %v2237, %v2260
        %v2266 = vmul.f32 %v2239, %v2261
        %v2267 = vmul.f32 %v2241, %v2262
        %v2268 = vmul.f32 %v2243, %v2263
        %v2269 = vpack.c.bf16 %v2265, %v2264
        %v2270 = vpack.c.bf16 %v2267, %v2266
        %v2271 = vpack.c.bf16 %v2268, %v2268
        %v2277 = vunpack.c.l.b16 %v2097
        %v2278 = vunpack.c.l.b16 %v2098
        %v2279 = vunpack.c.l.b16 %v2099
        %v2280 = vunpack.c.l.b16 %v2100
        %v2281 = vunpack.c.l.b16 %v2101
        %v2282 = vpack.c.b16 %v2278, %v2277
        %v2283 = vpack.c.b16 %v2280, %v2279
        %v2284 = vpack.c.b16 %v2281, %v2281
        %2285 = vrot.lane.b32.xlu0 %v2282, 32
        %v2286 = vpop.permute.xlu0 %2285
        %2287 = vrot.lane.b32.xlu0 %v2283, 32
        %v2288 = vpop.permute.xlu0 %2287
        %2289 = vrot.lane.b32.xlu0 %v2284, 32
        %v2290 = vpop.permute.xlu0 %2289
        %v2294 = vsel %vm1281, %v2269, 0
        %v2297 = vsel %vm1281, %v2270, 0
        %v2300 = vsel %vm1281, %v2271, 0
        %v2303 = vand.u32 %v2290, %v1366
        %2305 = vmatprep.subr.bf16.mxu0 0
        %2306 = vmatpush1.bf16.msra.mxu0 %v2286
        %2307 = vmatprep.subr.bf16.mxu0 0
        %2308 = vmatpush1.bf16.msra.mxu0 %v2288
        %2309 = vmatprep.subr.bf16.mxu0 0
        %2310 = vmatpush1.bf16.msra.mxu0 %v2303
        %2311 = vmatprep.subr.bf16.mxu0 0
        %2312 = vmatpush1.bf16.msra.mxu0 0
        %2313 = vmatprep.subr.bf16.mxu0 0
        %2314 = vmatpush1.bf16.msra.mxu0 0
        %2315 = vmatprep.subr.bf16.mxu0 0
        %2316 = vmatpush1.bf16.msra.mxu0 0
        %2317 = vmatprep.subr.bf16.mxu0 0
        %2318 = vmatpush1.bf16.msra.mxu0 0
        %2319 = vmatprep.subr.bf16.mxu0 0
        %2320 = vmatpush1.bf16.msra.mxu0 0
        %2321 = vmatprep.subr.bf16.mxu0 0
        %2322 = vmatpush1.bf16.msra.mxu0 0
        %2323 = vmatprep.subr.bf16.mxu0 0
        %2324 = vmatpush1.bf16.msra.mxu0 0
        %2325 = vmatprep.subr.bf16.mxu0 0
        %2326 = vmatpush1.bf16.msra.mxu0 0
        %2327 = vmatprep.subr.bf16.mxu0 0
        %2328 = vmatpush1.bf16.msra.mxu0 0
        %2329 = vmatprep.subr.bf16.mxu0 0
        %2330 = vmatpush1.bf16.msra.mxu0 0
        %2331 = vmatprep.subr.bf16.mxu0 0
        %2332 = vmatpush1.bf16.msra.mxu0 0
        %2333 = vmatprep.subr.bf16.mxu0 0
        %2334 = vmatpush1.bf16.msra.mxu0 0
        %2335 = vmatprep.subr.bf16.mxu0 0
        %2336 = vmatpush1.bf16.msra.mxu0 0
        %2337 = vmatprep.mubr.bf16.mxu0 0
        %2338 = vmatmul.mubr.bf16.gmra.mrb[0].mxu0 %v2294
        %v2339 = vpop.f32.mrb[0].mxu0
        %v2340 = vadd.f32 0.0, %v2339
        %v2341 = vpop.f32.mrb[0].mxu0
        %v2342 = vpop.f32.mrb[0].mxu0
        %v2343 = vadd.f32 0.0, %v2342
        %v2344 = vpop.f32.mrb[0].mxu0
        %2345 = vmatprep.mubr.bf16.mxu0 0
        %2346 = vmatmul.mubr.bf16.gmra.mrb[0].mxu0 %v2297
        %v2347 = vpop.f32.mrb[0].mxu0
        %v2348 = vadd.f32 0.0, %v2347
        %v2349 = vpop.f32.mrb[0].mxu0
        %v2350 = vpop.f32.mrb[0].mxu0
        %v2351 = vadd.f32 0.0, %v2350
        %v2352 = vpop.f32.mrb[0].mxu0
        %2353 = vmatprep.mubr.bf16.mxu0 0
        %2354 = vmatmul.mubr.bf16.gmra.mrb[0].mxu0 %v2300
        %v2355 = vpop.f32.mrb[0].mxu0
        %v2356 = vadd.f32 0.0, %v2355
        %v2357 = vpop.f32.mrb[0].mxu0
        %v2358 = vpop.f32.mrb[0].mxu0
        %v2359 = vpop.f32.mrb[0].mxu0
        %2360 = vdwg.mxu0
        %v2361 = vpack.c.bf16 %v2343, %v2340
        %v2362 = vpack.c.bf16 %v2351, %v2348
        %v2363 = vpack.c.bf16 %v2356, %v2356
        %v2367 = vunpack.c.l.b16 %v2361
        %v2368 = vunpack.c.h.b16 %v2361
        %v2369 = vunpack.c.l.b16 %v2362
        %v2370 = vunpack.c.h.b16 %v2362
        %v2371 = vunpack.c.l.b16 %v2363
        %v2372 = vpack.c.b16 %v2367, %v2367
        %v2373 = vpack.c.b16 %v2368, %v2368
        %v2374 = vpack.c.b16 %v2369, %v2369
        %v2375 = vpack.c.b16 %v2370, %v2370
        %v2376 = vpack.c.b16 %v2371, %v2371
        %2377 = vrot.lane.b32.xlu0 %v2372, 96
        %v2378 = vpop.permute.xlu0 %2377
        %2379 = vrot.lane.b32.xlu0 %v2373, 96
        %v2380 = vpop.permute.xlu0 %2379
        %2381 = vrot.lane.b32.xlu0 %v2374, 96
        %v2382 = vpop.permute.xlu0 %2381
        %2383 = vrot.lane.b32.xlu0 %v2375, 96
        %v2384 = vpop.permute.xlu0 %2383
        %2385 = vrot.lane.b32.xlu0 %v2376, 96
        %v2386 = vpop.permute.xlu0 %2385
        %vm2392 = vcmask 1044224
        %2393 = vst.msk [vmem:[#allocation4] sm:$0xf] %vm2392, %v2378
        %2394 = vst.msk [vmem:[#allocation4 + $0x4] sm:$0xf] %vm2392, %v2380
        %2395 = vst.msk [vmem:[#allocation4 + $0x8] sm:$0xf] %vm2392, %v2382
        %2396 = vst.msk [vmem:[#allocation4 + $0xc] sm:$0xf] %vm2392, %v2384
        %vm2397 = vcmask 1041152
        %vm2398 = vmand %vm2397, %vm1153
        %v2399 = vld [vmem:[#allocation4 + $0x10] sm:$0x1]
        %v2400 = vsel %vm2398, %v2386, %v2399
        %2401 = vst [vmem:[#allocation4 + $0x10] sm:$0x1] %v2400
        %v2402 = vld [vmem:[#allocation4] sm:$0xf]
        %v2403 = vld [vmem:[#allocation4 + $0x4] sm:$0xf]
        %v2404 = vld [vmem:[#allocation4 + $0x8] sm:$0xf]
        %v2405 = vld [vmem:[#allocation4 + $0xc] sm:$0xf]
        %v2406 = vld [vmem:[#allocation4 + $0x10] sm:$0x1]
        %v2407 = vld [vmem:[%s547] sm:$0xf]
        %v2408 = vld [vmem:[%s547 + $0x4] sm:$0xf]
        %v2409 = vld [vmem:[%s547 + $0x8] sm:$0xf]
        %v2410 = vld [vmem:[%s547 + $0xc] sm:$0xf]
        %v2411 = vld [vmem:[%s547 + $0x10] sm:$0xf]
        %v2412 = vld [vmem:[%s547 + $0x14] sm:$0xf]
        %v2413 = vld [vmem:[%s547 + $0x18] sm:$0xf]
        %v2414 = vld [vmem:[%s547 + $0x1c] sm:$0xf]
        %v2415 = vld [vmem:[%s547 + $0x20] sm:$0xf]
        %v2416 = vld [vmem:[%s547 + $0x24] sm:$0xf]
        %v2417 = vld [vmem:[%s547 + $0x28] sm:$0xf]
        %v2418 = vld [vmem:[%s547 + $0x2c] sm:$0xf]
        %v2419 = vld [vmem:[%s547 + $0x30] sm:$0xf]
        %v2420 = vld [vmem:[%s547 + $0x34] sm:$0xf]
        %v2421 = vld [vmem:[%s547 + $0x38] sm:$0xf]
        %v2422 = vld [vmem:[%s547 + $0x3c] sm:$0xf]
        %v2428 = vunpack.c.l.b16 %v2402
        %v2429 = vunpack.c.l.b16 %v2403
        %v2430 = vunpack.c.l.b16 %v2404
        %v2431 = vunpack.c.l.b16 %v2405
        %v2432 = vunpack.c.l.b16 %v2406
        %v2433 = vpack.c.b16 %v2429, %v2428
        %v2434 = vpack.c.b16 %v2431, %v2430
        %v2435 = vpack.c.b16 %v2432, %v2432
        %v2455 = vunpack.c.l.b16 %v2407
        %v2456 = vunpack.c.l.b16 %v2408
        %v2457 = vunpack.c.l.b16 %v2409
        %v2458 = vunpack.c.l.b16 %v2410
        %v2459 = vunpack.c.l.b16 %v2411
        %v2460 = vunpack.c.l.b16 %v2412
        %v2461 = vunpack.c.l.b16 %v2413
        %v2462 = vunpack.c.l.b16 %v2414
        %v2463 = vunpack.c.l.b16 %v2415
        %v2464 = vunpack.c.l.b16 %v2416
        %v2465 = vunpack.c.l.b16 %v2417
        %v2466 = vunpack.c.l.b16 %v2418
        %v2467 = vunpack.c.l.b16 %v2419
        %v2468 = vunpack.c.l.b16 %v2420
        %v2469 = vunpack.c.l.b16 %v2421
        %v2470 = vunpack.c.l.b16 %v2422
        %v2471 = vpack.c.b16 %v2456, %v2455
        %v2472 = vpack.c.b16 %v2458, %v2457
        %v2473 = vpack.c.b16 %v2460, %v2459
        %v2474 = vpack.c.b16 %v2462, %v2461
        %v2475 = vpack.c.b16 %v2464, %v2463
        %v2476 = vpack.c.b16 %v2466, %v2465
        %v2477 = vpack.c.b16 %v2468, %v2467
        %v2478 = vpack.c.b16 %v2470, %v2469
        %2487 = vmatprep.subr.bf16.mxu0 0
        %2488 = vmatpush1.bf16.msra.mxu0 %v2471
        %2489 = vmatprep.subr.bf16.mxu0 0
        %2490 = vmatpush1.bf16.msra.mxu0 %v2472
        %2491 = vmatprep.subr.bf16.mxu0 0
        %2492 = vmatpush1.bf16.msra.mxu0 %v2473
        %2493 = vmatprep.subr.bf16.mxu0 0
        %2494 = vmatpush1.bf16.msra.mxu0 %v2474
        %2495 = vmatprep.subr.bf16.mxu0 0
        %2496 = vmatpush1.bf16.msra.mxu0 %v2475
        %2497 = vmatprep.subr.bf16.mxu0 0
        %2498 = vmatpush1.bf16.msra.mxu0 %v2476
        %2499 = vmatprep.subr.bf16.mxu0 0
        %2500 = vmatpush1.bf16.msra.mxu0 %v2477
        %2501 = vmatprep.subr.bf16.mxu0 0
        %2502 = vmatpush1.bf16.msra.mxu0 %v2478
        %2503 = vmatprep.subr.bf16.mxu0 0
        %2504 = vmatpush1.bf16.msra.mxu0 0
        %2505 = vmatprep.subr.bf16.mxu0 0
        %2506 = vmatpush1.bf16.msra.mxu0 0
        %2507 = vmatprep.subr.bf16.mxu0 0
        %2508 = vmatpush1.bf16.msra.mxu0 0
        %2509 = vmatprep.subr.bf16.mxu0 0
        %2510 = vmatpush1.bf16.msra.mxu0 0
        %2511 = vmatprep.subr.bf16.mxu0 0
        %2512 = vmatpush1.bf16.msra.mxu0 0
        %2513 = vmatprep.subr.bf16.mxu0 0
        %2514 = vmatpush1.bf16.msra.mxu0 0
        %2515 = vmatprep.subr.bf16.mxu0 0
        %2516 = vmatpush1.bf16.msra.mxu0 0
        %2517 = vmatprep.subr.bf16.mxu0 0
        %2518 = vmatpush1.bf16.msra.mxu0 0
        %2519 = vmatprep.mubr.bf16.mxu0 0
        %2520 = vmatmul.mubr.bf16.gmra.mrb[0].mxu0 %v2433
        %v2521 = vpop.f32.mrb[0].mxu0
        %v2522 = vadd.f32 0.0, %v2521
        %v2523 = vpop.f32.mrb[0].mxu0
        %v2524 = vpop.f32.mrb[0].mxu0
        %v2525 = vadd.f32 0.0, %v2524
        %v2526 = vpop.f32.mrb[0].mxu0
        %2527 = vmatprep.mubr.bf16.mxu0 0
        %2528 = vmatmul.mubr.bf16.gmra.mrb[0].mxu0 %v2434
        %v2529 = vpop.f32.mrb[0].mxu0
        %v2530 = vadd.f32 0.0, %v2529
        %v2531 = vpop.f32.mrb[0].mxu0
        %v2532 = vpop.f32.mrb[0].mxu0
        %v2533 = vadd.f32 0.0, %v2532
        %v2534 = vpop.f32.mrb[0].mxu0
        %2535 = vmatprep.mubr.bf16.mxu0 0
        %2536 = vmatmul.mubr.bf16.gmra.mrb[0].mxu0 %v2435
        %v2537 = vpop.f32.mrb[0].mxu0
        %v2538 = vadd.f32 0.0, %v2537
        %v2539 = vpop.f32.mrb[0].mxu0
        %v2540 = vpop.f32.mrb[0].mxu0
        %v2541 = vpop.f32.mrb[0].mxu0
        %2542 = vdwg.mxu0
        %v2543 = vadd.f32 %v706, %v2522
        %v2544 = vadd.f32 %v707, %v2525
        %v2545 = vadd.f32 %v708, %v2530
        %v2546 = vadd.f32 %v709, %v2533
        %v2547 = vadd.f32 %v710, %v2538
        %v2548 = vld [vmem:[%s667] sm:$0x1]
        %v2550 = vlaneseq
        %v2551 = vshrl.u32 %v2550, 7
        %v2552 = vsub.s32 0, %v2551
        %v2553 = vrot.slane %v2548, %v2552
        %v2555 = vadd.f32 %v2543, %v2553
        %v2556 = vadd.f32 %v2544, %v2553
        %v2557 = vadd.f32 %v2545, %v2553
        %v2558 = vadd.f32 %v2546, %v2553
        %v2559 = vadd.f32 %v2547, %v2553
        %v2560 = vld [vmem:[%s670] sm:$0x1]
        %v2561 = vld [vmem:[%s673] sm:$0x1]
        %2562 = vadd.xlane.f32.xlu0 %v2555
        %v2563 = vpop.xlane.xlu0 %2562
        %2564 = vadd.xlane.f32.xlu0 %v2556
        %v2565 = vpop.xlane.xlu0 %2564
        %2566 = vadd.xlane.f32.xlu0 %v2557
        %v2567 = vpop.xlane.xlu0 %2566
        %2568 = vadd.xlane.f32.xlu0 %v2558
        %v2569 = vpop.xlane.xlu0 %2568
        %v2570 = vsel %vm721, %v2559, 0.0
        %2571 = vadd.xlane.f32.xlu0 %v2570
        %v2572 = vpop.xlane.xlu0 %2571
        %v2573 = vmul.f32 %v2563, %v725
        %v2574 = vmul.f32 %v2565, %v725
        %v2575 = vmul.f32 %v2567, %v725
        %v2576 = vmul.f32 %v2569, %v725
        %v2577 = vmul.f32 %v2572, %v725
        %v2578 = vsub.f32 %v2555, %v2573
        %v2579 = vsub.f32 %v2556, %v2574
        %v2580 = vsub.f32 %v2557, %v2575
        %v2581 = vsub.f32 %v2558, %v2576
        %v2582 = vsub.f32 %v2559, %v2577
        %v2583 = vmul.f32 %v2578, %v2578
        %v2584 = vmul.f32 %v2579, %v2579
        %v2585 = vmul.f32 %v2580, %v2580
        %v2586 = vmul.f32 %v2581, %v2581
        %v2587 = vmul.f32 %v2582, %v2582
        %2588 = vadd.xlane.f32.xlu0 %v2583
        %v2589 = vpop.xlane.xlu0 %2588
        %2590 = vadd.xlane.f32.xlu0 %v2584
        %v2591 = vpop.xlane.xlu0 %2590
        %2592 = vadd.xlane.f32.xlu0 %v2585
        %v2593 = vpop.xlane.xlu0 %2592
        %2594 = vadd.xlane.f32.xlu0 %v2586
        %v2595 = vpop.xlane.xlu0 %2594
        %v2596 = vsel %vm721, %v2587, 0.0
        %2597 = vadd.xlane.f32.xlu0 %v2596
        %v2598 = vpop.xlane.xlu0 %2597
        %v2599 = vmul.f32 %v2589, %v725
        %v2600 = vmul.f32 %v2591, %v725
        %v2601 = vmul.f32 %v2593, %v725
        %v2602 = vmul.f32 %v2595, %v725
        %v2603 = vmul.f32 %v2598, %v725
        %v2604 = vadd.f32 %v2599, 1e-05
        %v2605 = vadd.f32 %v2600, 1e-05
        %v2606 = vadd.f32 %v2601, 1e-05
        %v2607 = vadd.f32 %v2602, 1e-05
        %v2608 = vadd.f32 %v2603, 1e-05
        %v2609 = vrsqrt.pop %v2604
        %v2610 = vrsqrt.pop %v2605
        %v2611 = vrsqrt.pop %v2606
        %v2612 = vrsqrt.pop %v2607
        %v2613 = vrsqrt.pop %v2608
        %v2614 = vmul.f32 %v2578, %v2609
        %v2615 = vmul.f32 %v2579, %v2610
        %v2616 = vmul.f32 %v2580, %v2611
        %v2617 = vmul.f32 %v2581, %v2612
        %v2618 = vmul.f32 %v2582, %v2613
        %v2620 = vlaneseq
        %v2621 = vshrl.u32 %v2620, 7
        %v2622 = vsub.s32 0, %v2621
        %v2623 = vrot.slane %v2560, %v2622
        %v2625 = vmul.f32 %v2614, %v2623
        %v2626 = vmul.f32 %v2615, %v2623
        %v2627 = vmul.f32 %v2616, %v2623
        %v2628 = vmul.f32 %v2617, %v2623
        %v2629 = vmul.f32 %v2618, %v2623
        %v2631 = vlaneseq
        %v2632 = vshrl.u32 %v2631, 7
        %v2633 = vsub.s32 0, %v2632
        %v2634 = vrot.slane %v2561, %v2633
        %v2636 = vadd.f32 %v2625, %v2634
        %v2637 = vadd.f32 %v2626, %v2634
        %v2638 = vadd.f32 %v2627, %v2634
        %v2639 = vadd.f32 %v2628, %v2634
        %v2640 = vadd.f32 %v2629, %v2634
        %v2641 = vpack.c.bf16 %v2637, %v2636
        %v2642 = vpack.c.bf16 %v2639, %v2638
        %v2643 = vpack.c.bf16 %v2640, %v2640
        %v2644 = vld [vmem:[%s678] sm:$0xff]
        %v2645 = vld [vmem:[%s678 + $0x8] sm:$0xff]
        %v2646 = vld [vmem:[%s678 + $0x10] sm:$0xff]
        %v2647 = vld [vmem:[%s678 + $0x18] sm:$0xff]
        %v2648 = vld [vmem:[%s678 + $0x20] sm:$0xff]
        %v2649 = vld [vmem:[%s678 + $0x28] sm:$0xff]
        %v2650 = vld [vmem:[%s678 + $0x30] sm:$0xff]
        %v2651 = vld [vmem:[%s678 + $0x38] sm:$0xff]
        %v2652 = vld [vmem:[%s678 + $0x40] sm:$0xff]
        %v2653 = vld [vmem:[%s678 + $0x48] sm:$0xff]
        %v2654 = vld [vmem:[%s678 + $0x50] sm:$0xff]
        %v2655 = vld [vmem:[%s678 + $0x58] sm:$0xff]
        %v2656 = vld [vmem:[%s678 + $0x60] sm:$0xff]
        %v2657 = vld [vmem:[%s678 + $0x68] sm:$0xff]
        %v2658 = vld [vmem:[%s678 + $0x70] sm:$0xff]
        %v2659 = vld [vmem:[%s678 + $0x78] sm:$0xff]
        %v2660 = vld [vmem:[%s678 + $0x80] sm:$0xff]
        %v2661 = vld [vmem:[%s678 + $0x88] sm:$0xff]
        %v2662 = vld [vmem:[%s678 + $0x90] sm:$0xff]
        %v2663 = vld [vmem:[%s678 + $0x98] sm:$0xff]
        %v2664 = vld [vmem:[%s678 + $0xa0] sm:$0xff]
        %v2665 = vld [vmem:[%s678 + $0xa8] sm:$0xff]
        %v2666 = vld [vmem:[%s678 + $0xb0] sm:$0xff]
        %v2667 = vld [vmem:[%s678 + $0xb8] sm:$0xff]
        %v2668 = vld [vmem:[%s678 + $0xc0] sm:$0xff]
        %v2669 = vld [vmem:[%s678 + $0xc8] sm:$0xff]
        %v2670 = vld [vmem:[%s678 + $0xd0] sm:$0xff]
        %v2671 = vld [vmem:[%s678 + $0xd8] sm:$0xff]
        %v2672 = vld [vmem:[%s678 + $0xe0] sm:$0xff]
        %v2673 = vld [vmem:[%s678 + $0xe8] sm:$0xff]
        %v2674 = vld [vmem:[%s678 + $0xf0] sm:$0xff]
        %v2675 = vld [vmem:[%s678 + $0xf8] sm:$0xff]
        %v2676 = vld [vmem:[%s682] sm:$0xf]
        %v2678 = vlaneseq
        %v2679 = vshrl.u32 %v2678, 7
        %v2680 = vsub.s32 0, %v2679
        %v2681 = vrot.slane %v2676, %v2680
        %v2682 = vlaneseq
        %v2683 = vshrl.u32 %v2682, 7
        %v2684 = vsub.s32 1, %v2683
        %v2685 = vrot.slane %v2676, %v2684
        %v2686 = vlaneseq
        %v2687 = vshrl.u32 %v2686, 7
        %v2688 = vsub.s32 2, %v2687
        %v2689 = vrot.slane %v2676, %v2688
        %v2690 = vlaneseq
        %v2691 = vshrl.u32 %v2690, 7
        %v2692 = vsub.s32 3, %v2691
        %v2693 = vrot.slane %v2676, %v2692
        %v2730 = vunpack.c.l.b16 %v2644
        %v2731 = vunpack.c.h.b16 %v2644
        %v2732 = vunpack.c.l.b16 %v2645
        %v2733 = vunpack.c.h.b16 %v2645
        %v2734 = vunpack.c.l.b16 %v2646
        %v2735 = vunpack.c.h.b16 %v2646
        %v2736 = vunpack.c.l.b16 %v2647
        %v2737 = vunpack.c.h.b16 %v2647
        %v2738 = vunpack.c.l.b16 %v2648
        %v2739 = vunpack.c.h.b16 %v2648
        %v2740 = vunpack.c.l.b16 %v2649
        %v2741 = vunpack.c.h.b16 %v2649
        %v2742 = vunpack.c.l.b16 %v2650
        %v2743 = vunpack.c.h.b16 %v2650
        %v2744 = vunpack.c.l.b16 %v2651
        %v2745 = vunpack.c.h.b16 %v2651
        %v2746 = vunpack.c.l.b16 %v2652
        %v2747 = vunpack.c.h.b16 %v2652
        %v2748 = vunpack.c.l.b16 %v2653
        %v2749 = vunpack.c.h.b16 %v2653
        %v2750 = vunpack.c.l.b16 %v2654
        %v2751 = vunpack.c.h.b16 %v2654
        %v2752 = vunpack.c.l.b16 %v2655
        %v2753 = vunpack.c.h.b16 %v2655
        %v2754 = vunpack.c.l.b16 %v2656
        %v2755 = vunpack.c.h.b16 %v2656
        %v2756 = vunpack.c.l.b16 %v2657
        %v2757 = vunpack.c.h.b16 %v2657
        %v2758 = vunpack.c.l.b16 %v2658
        %v2759 = vunpack.c.h.b16 %v2658
        %v2760 = vunpack.c.l.b16 %v2659
        %v2761 = vunpack.c.h.b16 %v2659
        %v2762 = vunpack.c.l.b16 %v2660
        %v2763 = vunpack.c.h.b16 %v2660
        %v2764 = vunpack.c.l.b16 %v2661
        %v2765 = vunpack.c.h.b16 %v2661
        %v2766 = vunpack.c.l.b16 %v2662
        %v2767 = vunpack.c.h.b16 %v2662
        %v2768 = vunpack.c.l.b16 %v2663
        %v2769 = vunpack.c.h.b16 %v2663
        %v2770 = vunpack.c.l.b16 %v2664
        %v2771 = vunpack.c.h.b16 %v2664
        %v2772 = vunpack.c.l.b16 %v2665
        %v2773 = vunpack.c.h.b16 %v2665
        %v2774 = vunpack.c.l.b16 %v2666
        %v2775 = vunpack.c.h.b16 %v2666
        %v2776 = vunpack.c.l.b16 %v2667
        %v2777 = vunpack.c.h.b16 %v2667
        %v2778 = vunpack.c.l.b16 %v2668
        %v2779 = vunpack.c.h.b16 %v2668
        %v2780 = vunpack.c.l.b16 %v2669
        %v2781 = vunpack.c.h.b16 %v2669
        %v2782 = vunpack.c.l.b16 %v2670
        %v2783 = vunpack.c.h.b16 %v2670
        %v2784 = vunpack.c.l.b16 %v2671
        %v2785 = vunpack.c.h.b16 %v2671
        %v2786 = vunpack.c.l.b16 %v2672
        %v2787 = vunpack.c.h.b16 %v2672
        %v2788 = vunpack.c.l.b16 %v2673
        %v2789 = vunpack.c.h.b16 %v2673
        %v2790 = vunpack.c.l.b16 %v2674
        %v2791 = vunpack.c.h.b16 %v2674
        %v2792 = vunpack.c.l.b16 %v2675
        %v2793 = vunpack.c.h.b16 %v2675
        %v2794 = vpack.c.b16 %v2734, %v2730
        %v2795 = vpack.c.b16 %v2735, %v2731
        %v2796 = vpack.c.b16 %v2736, %v2732
        %v2797 = vpack.c.b16 %v2737, %v2733
        %v2798 = vpack.c.b16 %v2742, %v2738
        %v2799 = vpack.c.b16 %v2743, %v2739
        %v2800 = vpack.c.b16 %v2744, %v2740
        %v2801 = vpack.c.b16 %v2745, %v2741
        %v2802 = vpack.c.b16 %v2750, %v2746
        %v2803 = vpack.c.b16 %v2751, %v2747
        %v2804 = vpack.c.b16 %v2752, %v2748
        %v2805 = vpack.c.b16 %v2753, %v2749
        %v2806 = vpack.c.b16 %v2758, %v2754
        %v2807 = vpack.c.b16 %v2759, %v2755
        %v2808 = vpack.c.b16 %v2760, %v2756
        %v2809 = vpack.c.b16 %v2761, %v2757
        %v2810 = vpack.c.b16 %v2766, %v2762
        %v2811 = vpack.c.b16 %v2767, %v2763
        %v2812 = vpack.c.b16 %v2768, %v2764
        %v2813 = vpack.c.b16 %v2769, %v2765
        %v2814 = vpack.c.b16 %v2774, %v2770
        %v2815 = vpack.c.b16 %v2775, %v2771
        %v2816 = vpack.c.b16 %v2776, %v2772
        %v2817 = vpack.c.b16 %v2777, %v2773
        %v2818 = vpack.c.b16 %v2782, %v2778
        %v2819 = vpack.c.b16 %v2783, %v2779
        %v2820 = vpack.c.b16 %v2784, %v2780
        %v2821 = vpack.c.b16 %v2785, %v2781
        %v2822 = vpack.c.b16 %v2790, %v2786
        %v2823 = vpack.c.b16 %v2791, %v2787
        %v2824 = vpack.c.b16 %v2792, %v2788
        %v2825 = vpack.c.b16 %v2793, %v2789
        %2858 = vmatprep.subr.bf16.mxu0 %v2795
        %2859 = vmatpush1.bf16.msra.mxu0 %v2794
        %2860 = vmatprep.subr.bf16.mxu0 %v2799
        %2861 = vmatpush1.bf16.msra.mxu0 %v2798
        %2862 = vmatprep.subr.bf16.mxu0 %v2803
        %2863 = vmatpush1.bf16.msra.mxu0 %v2802
        %2864 = vmatprep.subr.bf16.mxu0 %v2807
        %2865 = vmatpush1.bf16.msra.mxu0 %v2806
        %2866 = vmatprep.subr.bf16.mxu0 %v2811
        %2867 = vmatpush1.bf16.msra.mxu0 %v2810
        %2868 = vmatprep.subr.bf16.mxu0 %v2815
        %2869 = vmatpush1.bf16.msra.mxu0 %v2814
        %2870 = vmatprep.subr.bf16.mxu0 %v2819
        %2871 = vmatpush1.bf16.msra.mxu0 %v2818
        %2872 = vmatprep.subr.bf16.mxu0 %v2823
        %2873 = vmatpush1.bf16.msra.mxu0 %v2822
        %2874 = vmatprep.subr.bf16.mxu0 0
        %2875 = vmatpush1.bf16.msra.mxu0 0
        %2876 = vmatprep.subr.bf16.mxu0 0
        %2877 = vmatpush1.bf16.msra.mxu0 0
        %2878 = vmatprep.subr.bf16.mxu0 0
        %2879 = vmatpush1.bf16.msra.mxu0 0
        %2880 = vmatprep.subr.bf16.mxu0 0
        %2881 = vmatpush1.bf16.msra.mxu0 0
        %2882 = vmatprep.subr.bf16.mxu0 0
        %2883 = vmatpush1.bf16.msra.mxu0 0
        %2884 = vmatprep.subr.bf16.mxu0 0
        %2885 = vmatpush1.bf16.msra.mxu0 0
        %2886 = vmatprep.subr.bf16.mxu0 0
        %2887 = vmatpush1.bf16.msra.mxu0 0
        %2888 = vmatprep.subr.bf16.mxu0 0
        %2889 = vmatpush1.bf16.msra.mxu0 0
        %2890 = vmatprep.mubr.bf16.mxu0 0
        %2891 = vmatmul.mubr.bf16.gmra.mrb[0].mxu0 %v2641
        %v2892 = vpop.f32.mrb[0].mxu0
        %v2893 = vadd.f32 %v2681, %v2892
        %v2894 = vpop.f32.mrb[0].mxu0
        %v2895 = vadd.f32 %v2685, %v2894
        %v2896 = vpop.f32.mrb[0].mxu0
        %v2897 = vadd.f32 %v2681, %v2896
        %v2898 = vpop.f32.mrb[0].mxu0
        %v2899 = vadd.f32 %v2685, %v2898
        %2900 = vmatprep.mubr.bf16.mxu0 0
        %2901 = vmatmul.mubr.bf16.gmra.mrb[0].mxu0 %v2642
        %v2902 = vpop.f32.mrb[0].mxu0
        %v2903 = vadd.f32 %v2681, %v2902
        %v2904 = vpop.f32.mrb[0].mxu0
        %v2905 = vadd.f32 %v2685, %v2904
        %v2906 = vpop.f32.mrb[0].mxu0
        %v2907 = vadd.f32 %v2681, %v2906
        %v2908 = vpop.f32.mrb[0].mxu0
        %v2909 = vadd.f32 %v2685, %v2908
        %2910 = vmatprep.mubr.bf16.mxu0 0
        %2911 = vmatmul.mubr.bf16.gmra.mrb[0].mxu0 %v2643
        %v2912 = vpop.f32.mrb[0].mxu0
        %v2913 = vadd.f32 %v2681, %v2912
        %v2914 = vpop.f32.mrb[0].mxu0
        %v2915 = vadd.f32 %v2685, %v2914
        %v2916 = vpop.f32.mrb[0].mxu0
        %v2917 = vpop.f32.mrb[0].mxu0
        %2918 = vdwg.mxu0
        %2919 = vmatprep.subr.bf16.mxu0 %v2797
        %2920 = vmatpush1.bf16.msra.mxu0 %v2796
        %2921 = vmatprep.subr.bf16.mxu0 %v2801
        %2922 = vmatpush1.bf16.msra.mxu0 %v2800
        %2923 = vmatprep.subr.bf16.mxu0 %v2805
        %2924 = vmatpush1.bf16.msra.mxu0 %v2804
        %2925 = vmatprep.subr.bf16.mxu0 %v2809
        %2926 = vmatpush1.bf16.msra.mxu0 %v2808
        %2927 = vmatprep.subr.bf16.mxu0 %v2813
        %2928 = vmatpush1.bf16.msra.mxu0 %v2812
        %2929 = vmatprep.subr.bf16.mxu0 %v2817
        %2930 = vmatpush1.bf16.msra.mxu0 %v2816
        %2931 = vmatprep.subr.bf16.mxu0 %v2821
        %2932 = vmatpush1.bf16.msra.mxu0 %v2820
        %2933 = vmatprep.subr.bf16.mxu0 %v2825
        %2934 = vmatpush1.bf16.msra.mxu0 %v2824
        %2935 = vmatprep.subr.bf16.mxu0 0
        %2936 = vmatpush1.bf16.msra.mxu0 0
        %2937 = vmatprep.subr.bf16.mxu0 0
        %2938 = vmatpush1.bf16.msra.mxu0 0
        %2939 = vmatprep.subr.bf16.mxu0 0
        %2940 = vmatpush1.bf16.msra.mxu0 0
        %2941 = vmatprep.subr.bf16.mxu0 0
        %2942 = vmatpush1.bf16.msra.mxu0 0
        %2943 = vmatprep.subr.bf16.mxu0 0
        %2944 = vmatpush1.bf16.msra.mxu0 0
        %2945 = vmatprep.subr.bf16.mxu0 0
        %2946 = vmatpush1.bf16.msra.mxu0 0
        %2947 = vmatprep.subr.bf16.mxu0 0
        %2948 = vmatpush1.bf16.msra.mxu0 0
        %2949 = vmatprep.subr.bf16.mxu0 0
        %2950 = vmatpush1.bf16.msra.mxu0 0
        %2951 = vmatprep.mubr.bf16.mxu0 0
        %2952 = vmatmul.mubr.bf16.gmra.mrb[0].mxu0 %v2641
        %v2953 = vpop.f32.mrb[0].mxu0
        %v2954 = vadd.f32 %v2689, %v2953
        %v2955 = vpop.f32.mrb[0].mxu0
        %v2956 = vadd.f32 %v2693, %v2955
        %v2957 = vpop.f32.mrb[0].mxu0
        %v2958 = vadd.f32 %v2689, %v2957
        %v2959 = vpop.f32.mrb[0].mxu0
        %v2960 = vadd.f32 %v2693, %v2959
        %2961 = vmatprep.mubr.bf16.mxu0 0
        %2962 = vmatmul.mubr.bf16.gmra.mrb[0].mxu0 %v2642
        %v2963 = vpop.f32.mrb[0].mxu0
        %v2964 = vadd.f32 %v2689, %v2963
        %v2965 = vpop.f32.mrb[0].mxu0
        %v2966 = vadd.f32 %v2693, %v2965
        %v2967 = vpop.f32.mrb[0].mxu0
        %v2968 = vadd.f32 %v2689, %v2967
        %v2969 = vpop.f32.mrb[0].mxu0
        %v2970 = vadd.f32 %v2693, %v2969
        %2971 = vmatprep.mubr.bf16.mxu0 0
        %2972 = vmatmul.mubr.bf16.gmra.mrb[0].mxu0 %v2643
        %v2973 = vpop.f32.mrb[0].mxu0
        %v2974 = vadd.f32 %v2689, %v2973
        %v2975 = vpop.f32.mrb[0].mxu0
        %v2976 = vadd.f32 %v2693, %v2975
        %v2977 = vpop.f32.mrb[0].mxu0
        %v2978 = vpop.f32.mrb[0].mxu0
        %2979 = vdwg.mxu0
        %v2980 = vmul.f32 %v2893, 0.5
        %v2981 = vmul.f32 %v2895, 0.5
        %v2982 = vmul.f32 %v2954, 0.5
        %v2983 = vmul.f32 %v2956, 0.5
        %v2984 = vmul.f32 %v2897, 0.5
        %v2985 = vmul.f32 %v2899, 0.5
        %v2986 = vmul.f32 %v2958, 0.5
        %v2987 = vmul.f32 %v2960, 0.5
        %v2988 = vmul.f32 %v2903, 0.5
        %v2989 = vmul.f32 %v2905, 0.5
        %v2990 = vmul.f32 %v2964, 0.5
        %v2991 = vmul.f32 %v2966, 0.5
        %v2992 = vmul.f32 %v2907, 0.5
        %v2993 = vmul.f32 %v2909, 0.5
        %v2994 = vmul.f32 %v2968, 0.5
        %v2995 = vmul.f32 %v2970, 0.5
        %v2996 = vmul.f32 %v2913, 0.5
        %v2997 = vmul.f32 %v2915, 0.5
        %v2998 = vmul.f32 %v2974, 0.5
        %v2999 = vmul.f32 %v2976, 0.5
        %v3000 = vmul.f32 %v2893, 0.70710677
        %v3001 = vmul.f32 %v2895, 0.70710677
        %v3002 = vmul.f32 %v2954, 0.70710677
        %v3003 = vmul.f32 %v2956, 0.70710677
        %v3004 = vmul.f32 %v2897, 0.70710677
        %v3005 = vmul.f32 %v2899, 0.70710677
        %v3006 = vmul.f32 %v2958, 0.70710677
        %v3007 = vmul.f32 %v2960, 0.70710677
        %v3008 = vmul.f32 %v2903, 0.70710677
        %v3009 = vmul.f32 %v2905, 0.70710677
        %v3010 = vmul.f32 %v2964, 0.70710677
        %v3011 = vmul.f32 %v2966, 0.70710677
        %v3012 = vmul.f32 %v2907, 0.70710677
        %v3013 = vmul.f32 %v2909, 0.70710677
        %v3014 = vmul.f32 %v2968, 0.70710677
        %v3015 = vmul.f32 %v2970, 0.70710677
        %v3016 = vmul.f32 %v2913, 0.70710677
        %v3017 = vmul.f32 %v2915, 0.70710677
        %v3018 = vmul.f32 %v2974, 0.70710677
        %v3019 = vmul.f32 %v2976, 0.70710677
        %v3020 = vand.u32 2147483647, %v3000
        %v3021 = vand.u32 2147483647, %v3001
        %v3022 = vand.u32 2147483647, %v3002
        %v3023 = vand.u32 2147483647, %v3003
        %v3024 = vand.u32 2147483647, %v3004
        %v3025 = vand.u32 2147483647, %v3005
        %v3026 = vand.u32 2147483647, %v3006
        %v3027 = vand.u32 2147483647, %v3007
        %v3028 = vand.u32 2147483647, %v3008
        %v3029 = vand.u32 2147483647, %v3009
        %v3030 = vand.u32 2147483647, %v3010
        %v3031 = vand.u32 2147483647, %v3011
        %v3032 = vand.u32 2147483647, %v3012
        %v3033 = vand.u32 2147483647, %v3013
        %v3034 = vand.u32 2147483647, %v3014
        %v3035 = vand.u32 2147483647, %v3015
        %v3036 = vand.u32 2147483647, %v3016
        %v3037 = vand.u32 2147483647, %v3017
        %v3038 = vand.u32 2147483647, %v3018
        %v3039 = vand.u32 2147483647, %v3019
        %v3040 = vmul.f32 %v3020, 0.3275911
        %v3041 = vmul.f32 %v3021, 0.3275911
        %v3042 = vmul.f32 %v3022, 0.3275911
        %v3043 = vmul.f32 %v3023, 0.3275911
        %v3044 = vmul.f32 %v3024, 0.3275911
        %v3045 = vmul.f32 %v3025, 0.3275911
        %v3046 = vmul.f32 %v3026, 0.3275911
        %v3047 = vmul.f32 %v3027, 0.3275911
        %v3048 = vmul.f32 %v3028, 0.3275911
        %v3049 = vmul.f32 %v3029, 0.3275911
        %v3050 = vmul.f32 %v3030, 0.3275911
        %v3051 = vmul.f32 %v3031, 0.3275911
        %v3052 = vmul.f32 %v3032, 0.3275911
        %v3053 = vmul.f32 %v3033, 0.3275911
        %v3054 = vmul.f32 %v3034, 0.3275911
        %v3055 = vmul.f32 %v3035, 0.3275911
        %v3056 = vmul.f32 %v3036, 0.3275911
        %v3057 = vmul.f32 %v3037, 0.3275911
        %v3058 = vmul.f32 %v3038, 0.3275911
        %v3059 = vmul.f32 %v3039, 0.3275911
        %v3060 = vadd.f32 %v3040, 1.0
        %v3061 = vadd.f32 %v3041, 1.0
        %v3062 = vadd.f32 %v3042, 1.0
        %v3063 = vadd.f32 %v3043, 1.0
        %v3064 = vadd.f32 %v3044, 1.0
        %v3065 = vadd.f32 %v3045, 1.0
        %v3066 = vadd.f32 %v3046, 1.0
        %v3067 = vadd.f32 %v3047, 1.0
        %v3068 = vadd.f32 %v3048, 1.0
        %v3069 = vadd.f32 %v3049, 1.0
        %v3070 = vadd.f32 %v3050, 1.0
        %v3071 = vadd.f32 %v3051, 1.0
        %v3072 = vadd.f32 %v3052, 1.0
        %v3073 = vadd.f32 %v3053, 1.0
        %v3074 = vadd.f32 %v3054, 1.0
        %v3075 = vadd.f32 %v3055, 1.0
        %v3076 = vadd.f32 %v3056, 1.0
        %v3077 = vadd.f32 %v3057, 1.0
        %v3078 = vadd.f32 %v3058, 1.0
        %v3079 = vadd.f32 %v3059, 1.0
        %v3080 = vrcp.pop %v3060
        %v3081 = vmul.f32 1.0, %v3080
        %v3082 = vrcp.pop %v3061
        %v3083 = vmul.f32 1.0, %v3082
        %v3084 = vrcp.pop %v3062
        %v3085 = vmul.f32 1.0, %v3084
        %v3086 = vrcp.pop %v3063
        %v3087 = vmul.f32 1.0, %v3086
        %v3088 = vrcp.pop %v3064
        %v3089 = vmul.f32 1.0, %v3088
        %v3090 = vrcp.pop %v3065
        %v3091 = vmul.f32 1.0, %v3090
        %v3092 = vrcp.pop %v3066
        %v3093 = vmul.f32 1.0, %v3092
        %v3094 = vrcp.pop %v3067
        %v3095 = vmul.f32 1.0, %v3094
        %v3096 = vrcp.pop %v3068
        %v3097 = vmul.f32 1.0, %v3096
        %v3098 = vrcp.pop %v3069
        %v3099 = vmul.f32 1.0, %v3098
        %v3100 = vrcp.pop %v3070
        %v3101 = vmul.f32 1.0, %v3100
        %v3102 = vrcp.pop %v3071
        %v3103 = vmul.f32 1.0, %v3102
        %v3104 = vrcp.pop %v3072
        %v3105 = vmul.f32 1.0, %v3104
        %v3106 = vrcp.pop %v3073
        %v3107 = vmul.f32 1.0, %v3106
        %v3108 = vrcp.pop %v3074
        %v3109 = vmul.f32 1.0, %v3108
        %v3110 = vrcp.pop %v3075
        %v3111 = vmul.f32 1.0, %v3110
        %v3112 = vrcp.pop %v3076
        %v3113 = vmul.f32 1.0, %v3112
        %v3114 = vrcp.pop %v3077
        %v3115 = vmul.f32 1.0, %v3114
        %v3116 = vrcp.pop %v3078
        %v3117 = vmul.f32 1.0, %v3116
        %v3118 = vrcp.pop %v3079
        %v3119 = vmul.f32 1.0, %v3118
        %v3120 = vmul.f32 %v3081, 1.0614054
        %v3121 = vmul.f32 %v3083, 1.0614054
        %v3122 = vmul.f32 %v3085, 1.0614054
        %v3123 = vmul.f32 %v3087, 1.0614054
        %v3124 = vmul.f32 %v3089, 1.0614054
        %v3125 = vmul.f32 %v3091, 1.0614054
        %v3126 = vmul.f32 %v3093, 1.0614054
        %v3127 = vmul.f32 %v3095, 1.0614054
        %v3128 = vmul.f32 %v3097, 1.0614054
        %v3129 = vmul.f32 %v3099, 1.0614054
        %v3130 = vmul.f32 %v3101, 1.0614054
        %v3131 = vmul.f32 %v3103, 1.0614054
        %v3132 = vmul.f32 %v3105, 1.0614054
        %v3133 = vmul.f32 %v3107, 1.0614054
        %v3134 = vmul.f32 %v3109, 1.0614054
        %v3135 = vmul.f32 %v3111, 1.0614054
        %v3136 = vmul.f32 %v3113, 1.0614054
        %v3137 = vmul.f32 %v3115, 1.0614054
        %v3138 = vmul.f32 %v3117, 1.0614054
        %v3139 = vmul.f32 %v3119, 1.0614054
        %v3140 = vadd.f32 %v3120, -1.4531521
        %v3141 = vadd.f32 %v3121, -1.4531521
        %v3142 = vadd.f32 %v3122, -1.4531521
        %v3143 = vadd.f32 %v3123, -1.4531521
        %v3144 = vadd.f32 %v3124, -1.4531521
        %v3145 = vadd.f32 %v3125, -1.4531521
        %v3146 = vadd.f32 %v3126, -1.4531521
        %v3147 = vadd.f32 %v3127, -1.4531521
        %v3148 = vadd.f32 %v3128, -1.4531521
        %v3149 = vadd.f32 %v3129, -1.4531521
        %v3150 = vadd.f32 %v3130, -1.4531521
        %v3151 = vadd.f32 %v3131, -1.4531521
        %v3152 = vadd.f32 %v3132, -1.4531521
        %v3153 = vadd.f32 %v3133, -1.4531521
        %v3154 = vadd.f32 %v3134, -1.4531521
        %v3155 = vadd.f32 %v3135, -1.4531521
        %v3156 = vadd.f32 %v3136, -1.4531521
        %v3157 = vadd.f32 %v3137, -1.4531521
        %v3158 = vadd.f32 %v3138, -1.4531521
        %v3159 = vadd.f32 %v3139, -1.4531521
        %v3160 = vmul.f32 %v3140, %v3081
        %v3161 = vmul.f32 %v3141, %v3083
        %v3162 = vmul.f32 %v3142, %v3085
        %v3163 = vmul.f32 %v3143, %v3087
        %v3164 = vmul.f32 %v3144, %v3089
        %v3165 = vmul.f32 %v3145, %v3091
        %v3166 = vmul.f32 %v3146, %v3093
        %v3167 = vmul.f32 %v3147, %v3095
        %v3168 = vmul.f32 %v3148, %v3097
        %v3169 = vmul.f32 %v3149, %v3099
        %v3170 = vmul.f32 %v3150, %v3101
        %v3171 = vmul.f32 %v3151, %v3103
        %v3172 = vmul.f32 %v3152, %v3105
        %v3173 = vmul.f32 %v3153, %v3107
        %v3174 = vmul.f32 %v3154, %v3109
        %v3175 = vmul.f32 %v3155, %v3111
        %v3176 = vmul.f32 %v3156, %v3113
        %v3177 = vmul.f32 %v3157, %v3115
        %v3178 = vmul.f32 %v3158, %v3117
        %v3179 = vmul.f32 %v3159, %v3119
        %v3180 = vadd.f32 %v3160, 1.4214138
        %v3181 = vadd.f32 %v3161, 1.4214138
        %v3182 = vadd.f32 %v3162, 1.4214138
        %v3183 = vadd.f32 %v3163, 1.4214138
        %v3184 = vadd.f32 %v3164, 1.4214138
        %v3185 = vadd.f32 %v3165, 1.4214138
        %v3186 = vadd.f32 %v3166, 1.4214138
        %v3187 = vadd.f32 %v3167, 1.4214138
        %v3188 = vadd.f32 %v3168, 1.4214138
        %v3189 = vadd.f32 %v3169, 1.4214138
        %v3190 = vadd.f32 %v3170, 1.4214138
        %v3191 = vadd.f32 %v3171, 1.4214138
        %v3192 = vadd.f32 %v3172, 1.4214138
        %v3193 = vadd.f32 %v3173, 1.4214138
        %v3194 = vadd.f32 %v3174, 1.4214138
        %v3195 = vadd.f32 %v3175, 1.4214138
        %v3196 = vadd.f32 %v3176, 1.4214138
        %v3197 = vadd.f32 %v3177, 1.4214138
        %v3198 = vadd.f32 %v3178, 1.4214138
        %v3199 = vadd.f32 %v3179, 1.4214138
        %v3200 = vmul.f32 %v3180, %v3081
        %v3201 = vmul.f32 %v3181, %v3083
        %v3202 = vmul.f32 %v3182, %v3085
        %v3203 = vmul.f32 %v3183, %v3087
        %v3204 = vmul.f32 %v3184, %v3089
        %v3205 = vmul.f32 %v3185, %v3091
        %v3206 = vmul.f32 %v3186, %v3093
        %v3207 = vmul.f32 %v3187, %v3095
        %v3208 = vmul.f32 %v3188, %v3097
        %v3209 = vmul.f32 %v3189, %v3099
        %v3210 = vmul.f32 %v3190, %v3101
        %v3211 = vmul.f32 %v3191, %v3103
        %v3212 = vmul.f32 %v3192, %v3105
        %v3213 = vmul.f32 %v3193, %v3107
        %v3214 = vmul.f32 %v3194, %v3109
        %v3215 = vmul.f32 %v3195, %v3111
        %v3216 = vmul.f32 %v3196, %v3113
        %v3217 = vmul.f32 %v3197, %v3115
        %v3218 = vmul.f32 %v3198, %v3117
        %v3219 = vmul.f32 %v3199, %v3119
        %v3220 = vadd.f32 %v3200, -0.28449672
        %v3221 = vadd.f32 %v3201, -0.28449672
        %v3222 = vadd.f32 %v3202, -0.28449672
        %v3223 = vadd.f32 %v3203, -0.28449672
        %v3224 = vadd.f32 %v3204, -0.28449672
        %v3225 = vadd.f32 %v3205, -0.28449672
        %v3226 = vadd.f32 %v3206, -0.28449672
        %v3227 = vadd.f32 %v3207, -0.28449672
        %v3228 = vadd.f32 %v3208, -0.28449672
        %v3229 = vadd.f32 %v3209, -0.28449672
        %v3230 = vadd.f32 %v3210, -0.28449672
        %v3231 = vadd.f32 %v3211, -0.28449672
        %v3232 = vadd.f32 %v3212, -0.28449672
        %v3233 = vadd.f32 %v3213, -0.28449672
        %v3234 = vadd.f32 %v3214, -0.28449672
        %v3235 = vadd.f32 %v3215, -0.28449672
        %v3236 = vadd.f32 %v3216, -0.28449672
        %v3237 = vadd.f32 %v3217, -0.28449672
        %v3238 = vadd.f32 %v3218, -0.28449672
        %v3239 = vadd.f32 %v3219, -0.28449672
        %v3240 = vmul.f32 %v3220, %v3081
        %v3241 = vmul.f32 %v3221, %v3083
        %v3242 = vmul.f32 %v3222, %v3085
        %v3243 = vmul.f32 %v3223, %v3087
        %v3244 = vmul.f32 %v3224, %v3089
        %v3245 = vmul.f32 %v3225, %v3091
        %v3246 = vmul.f32 %v3226, %v3093
        %v3247 = vmul.f32 %v3227, %v3095
        %v3248 = vmul.f32 %v3228, %v3097
        %v3249 = vmul.f32 %v3229, %v3099
        %v3250 = vmul.f32 %v3230, %v3101
        %v3251 = vmul.f32 %v3231, %v3103
        %v3252 = vmul.f32 %v3232, %v3105
        %v3253 = vmul.f32 %v3233, %v3107
        %v3254 = vmul.f32 %v3234, %v3109
        %v3255 = vmul.f32 %v3235, %v3111
        %v3256 = vmul.f32 %v3236, %v3113
        %v3257 = vmul.f32 %v3237, %v3115
        %v3258 = vmul.f32 %v3238, %v3117
        %v3259 = vmul.f32 %v3239, %v3119
        %v3260 = vadd.f32 %v3240, 0.2548296
        %v3261 = vadd.f32 %v3241, 0.2548296
        %v3262 = vadd.f32 %v3242, 0.2548296
        %v3263 = vadd.f32 %v3243, 0.2548296
        %v3264 = vadd.f32 %v3244, 0.2548296
        %v3265 = vadd.f32 %v3245, 0.2548296
        %v3266 = vadd.f32 %v3246, 0.2548296
        %v3267 = vadd.f32 %v3247, 0.2548296
        %v3268 = vadd.f32 %v3248, 0.2548296
        %v3269 = vadd.f32 %v3249, 0.2548296
        %v3270 = vadd.f32 %v3250, 0.2548296
        %v3271 = vadd.f32 %v3251, 0.2548296
        %v3272 = vadd.f32 %v3252, 0.2548296
        %v3273 = vadd.f32 %v3253, 0.2548296
        %v3274 = vadd.f32 %v3254, 0.2548296
        %v3275 = vadd.f32 %v3255, 0.2548296
        %v3276 = vadd.f32 %v3256, 0.2548296
        %v3277 = vadd.f32 %v3257, 0.2548296
        %v3278 = vadd.f32 %v3258, 0.2548296
        %v3279 = vadd.f32 %v3259, 0.2548296
        %v3280 = vmul.f32 %v3260, %v3081
        %v3281 = vmul.f32 %v3261, %v3083
        %v3282 = vmul.f32 %v3262, %v3085
        %v3283 = vmul.f32 %v3263, %v3087
        %v3284 = vmul.f32 %v3264, %v3089
        %v3285 = vmul.f32 %v3265, %v3091
        %v3286 = vmul.f32 %v3266, %v3093
        %v3287 = vmul.f32 %v3267, %v3095
        %v3288 = vmul.f32 %v3268, %v3097
        %v3289 = vmul.f32 %v3269, %v3099
        %v3290 = vmul.f32 %v3270, %v3101
        %v3291 = vmul.f32 %v3271, %v3103
        %v3292 = vmul.f32 %v3272, %v3105
        %v3293 = vmul.f32 %v3273, %v3107
        %v3294 = vmul.f32 %v3274, %v3109
        %v3295 = vmul.f32 %v3275, %v3111
        %v3296 = vmul.f32 %v3276, %v3113
        %v3297 = vmul.f32 %v3277, %v3115
        %v3298 = vmul.f32 %v3278, %v3117
        %v3299 = vmul.f32 %v3279, %v3119
        %v3300 = vsub.f32 0.0, %v3020
        %v3301 = vsub.f32 0.0, %v3021
        %v3302 = vsub.f32 0.0, %v3022
        %v3303 = vsub.f32 0.0, %v3023
        %v3304 = vsub.f32 0.0, %v3024
        %v3305 = vsub.f32 0.0, %v3025
        %v3306 = vsub.f32 0.0, %v3026
        %v3307 = vsub.f32 0.0, %v3027
        %v3308 = vsub.f32 0.0, %v3028
        %v3309 = vsub.f32 0.0, %v3029
        %v3310 = vsub.f32 0.0, %v3030
        %v3311 = vsub.f32 0.0, %v3031
        %v3312 = vsub.f32 0.0, %v3032
        %v3313 = vsub.f32 0.0, %v3033
        %v3314 = vsub.f32 0.0, %v3034
        %v3315 = vsub.f32 0.0, %v3035
        %v3316 = vsub.f32 0.0, %v3036
        %v3317 = vsub.f32 0.0, %v3037
        %v3318 = vsub.f32 0.0, %v3038
        %v3319 = vsub.f32 0.0, %v3039
        %v3320 = vmul.f32 %v3300, %v3020
        %v3321 = vmul.f32 %v3301, %v3021
        %v3322 = vmul.f32 %v3302, %v3022
        %v3323 = vmul.f32 %v3303, %v3023
        %v3324 = vmul.f32 %v3304, %v3024
        %v3325 = vmul.f32 %v3305, %v3025
        %v3326 = vmul.f32 %v3306, %v3026
        %v3327 = vmul.f32 %v3307, %v3027
        %v3328 = vmul.f32 %v3308, %v3028
        %v3329 = vmul.f32 %v3309, %v3029
        %v3330 = vmul.f32 %v3310, %v3030
        %v3331 = vmul.f32 %v3311, %v3031
        %v3332 = vmul.f32 %v3312, %v3032
        %v3333 = vmul.f32 %v3313, %v3033
        %v3334 = vmul.f32 %v3314, %v3034
        %v3335 = vmul.f32 %v3315, %v3035
        %v3336 = vmul.f32 %v3316, %v3036
        %v3337 = vmul.f32 %v3317, %v3037
        %v3338 = vmul.f32 %v3318, %v3038
        %v3339 = vmul.f32 %v3319, %v3039
        %v3340 = vmul.f32 %v3320, 1.442695
        %v3341 = vpow.pop %v3340
        %v3342 = vmul.f32 %v3321, 1.442695
        %v3343 = vpow.pop %v3342
        %v3344 = vmul.f32 %v3322, 1.442695
        %v3345 = vpow.pop %v3344
        %v3346 = vmul.f32 %v3323, 1.442695
        %v3347 = vpow.pop %v3346
        %v3348 = vmul.f32 %v3324, 1.442695
        %v3349 = vpow.pop %v3348
        %v3350 = vmul.f32 %v3325, 1.442695
        %v3351 = vpow.pop %v3350
        %v3352 = vmul.f32 %v3326, 1.442695
        %v3353 = vpow.pop %v3352
        %v3354 = vmul.f32 %v3327, 1.442695
        %v3355 = vpow.pop %v3354
        %v3356 = vmul.f32 %v3328, 1.442695
        %v3357 = vpow.pop %v3356
        %v3358 = vmul.f32 %v3329, 1.442695
        %v3359 = vpow.pop %v3358
        %v3360 = vmul.f32 %v3330, 1.442695
        %v3361 = vpow.pop %v3360
        %v3362 = vmul.f32 %v3331, 1.442695
        %v3363 = vpow.pop %v3362
        %v3364 = vmul.f32 %v3332, 1.442695
        %v3365 = vpow.pop %v3364
        %v3366 = vmul.f32 %v3333, 1.442695
        %v3367 = vpow.pop %v3366
        %v3368 = vmul.f32 %v3334, 1.442695
        %v3369 = vpow.pop %v3368
        %v3370 = vmul.f32 %v3335, 1.442695
        %v3371 = vpow.pop %v3370
        %v3372 = vmul.f32 %v3336, 1.442695
        %v3373 = vpow.pop %v3372
        %v3374 = vmul.f32 %v3337, 1.442695
        %v3375 = vpow.pop %v3374
        %v3376 = vmul.f32 %v3338, 1.442695
        %v3377 = vpow.pop %v3376
        %v3378 = vmul.f32 %v3339, 1.442695
        %v3379 = vpow.pop %v3378
        %v3380 = vmul.f32 %v3280, %v3341
        %v3381 = vmul.f32 %v3281, %v3343
        %v3382 = vmul.f32 %v3282, %v3345
        %v3383 = vmul.f32 %v3283, %v3347
        %v3384 = vmul.f32 %v3284, %v3349
        %v3385 = vmul.f32 %v3285, %v3351
        %v3386 = vmul.f32 %v3286, %v3353
        %v3387 = vmul.f32 %v3287, %v3355
        %v3388 = vmul.f32 %v3288, %v3357
        %v3389 = vmul.f32 %v3289, %v3359
        %v3390 = vmul.f32 %v3290, %v3361
        %v3391 = vmul.f32 %v3291, %v3363
        %v3392 = vmul.f32 %v3292, %v3365
        %v3393 = vmul.f32 %v3293, %v3367
        %v3394 = vmul.f32 %v3294, %v3369
        %v3395 = vmul.f32 %v3295, %v3371
        %v3396 = vmul.f32 %v3296, %v3373
        %v3397 = vmul.f32 %v3297, %v3375
        %v3398 = vmul.f32 %v3298, %v3377
        %v3399 = vmul.f32 %v3299, %v3379
        %v3400 = vsub.f32 1.0, %v3380
        %v3401 = vsub.f32 1.0, %v3381
        %v3402 = vsub.f32 1.0, %v3382
        %v3403 = vsub.f32 1.0, %v3383
        %v3404 = vsub.f32 1.0, %v3384
        %v3405 = vsub.f32 1.0, %v3385
        %v3406 = vsub.f32 1.0, %v3386
        %v3407 = vsub.f32 1.0, %v3387
        %v3408 = vsub.f32 1.0, %v3388
        %v3409 = vsub.f32 1.0, %v3389
        %v3410 = vsub.f32 1.0, %v3390
        %v3411 = vsub.f32 1.0, %v3391
        %v3412 = vsub.f32 1.0, %v3392
        %v3413 = vsub.f32 1.0, %v3393
        %v3414 = vsub.f32 1.0, %v3394
        %v3415 = vsub.f32 1.0, %v3395
        %v3416 = vsub.f32 1.0, %v3396
        %v3417 = vsub.f32 1.0, %v3397
        %v3418 = vsub.f32 1.0, %v3398
        %v3419 = vsub.f32 1.0, %v3399
        %vm3420 = vcmp.ge.f32.partialorder %v3000, 0.0
        %vm3421 = vcmp.ge.f32.partialorder %v3001, 0.0
        %vm3422 = vcmp.ge.f32.partialorder %v3002, 0.0
        %vm3423 = vcmp.ge.f32.partialorder %v3003, 0.0
        %vm3424 = vcmp.ge.f32.partialorder %v3004, 0.0
        %vm3425 = vcmp.ge.f32.partialorder %v3005, 0.0
        %vm3426 = vcmp.ge.f32.partialorder %v3006, 0.0
        %vm3427 = vcmp.ge.f32.partialorder %v3007, 0.0
        %vm3428 = vcmp.ge.f32.partialorder %v3008, 0.0
        %vm3429 = vcmp.ge.f32.partialorder %v3009, 0.0
        %vm3430 = vcmp.ge.f32.partialorder %v3010, 0.0
        %vm3431 = vcmp.ge.f32.partialorder %v3011, 0.0
        %vm3432 = vcmp.ge.f32.partialorder %v3012, 0.0
        %vm3433 = vcmp.ge.f32.partialorder %v3013, 0.0
        %vm3434 = vcmp.ge.f32.partialorder %v3014, 0.0
        %vm3435 = vcmp.ge.f32.partialorder %v3015, 0.0
        %vm3436 = vcmp.ge.f32.partialorder %v3016, 0.0
        %vm3437 = vcmp.ge.f32.partialorder %v3017, 0.0
        %vm3438 = vcmp.ge.f32.partialorder %v3018, 0.0
        %vm3439 = vcmp.ge.f32.partialorder %v3019, 0.0
        %v3440 = vsub.f32 0.0, %v3400
        %v3441 = vsub.f32 0.0, %v3401
        %v3442 = vsub.f32 0.0, %v3402
        %v3443 = vsub.f32 0.0, %v3403
        %v3444 = vsub.f32 0.0, %v3404
        %v3445 = vsub.f32 0.0, %v3405
        %v3446 = vsub.f32 0.0, %v3406
        %v3447 = vsub.f32 0.0, %v3407
        %v3448 = vsub.f32 0.0, %v3408
        %v3449 = vsub.f32 0.0, %v3409
        %v3450 = vsub.f32 0.0, %v3410
        %v3451 = vsub.f32 0.0, %v3411
        %v3452 = vsub.f32 0.0, %v3412
        %v3453 = vsub.f32 0.0, %v3413
        %v3454 = vsub.f32 0.0, %v3414
        %v3455 = vsub.f32 0.0, %v3415
        %v3456 = vsub.f32 0.0, %v3416
        %v3457 = vsub.f32 0.0, %v3417
        %v3458 = vsub.f32 0.0, %v3418
        %v3459 = vsub.f32 0.0, %v3419
        %v3460 = vsel %vm3420, %v3400, %v3440
        %v3461 = vsel %vm3421, %v3401, %v3441
        %v3462 = vsel %vm3422, %v3402, %v3442
        %v3463 = vsel %vm3423, %v3403, %v3443
        %v3464 = vsel %vm3424, %v3404, %v3444
        %v3465 = vsel %vm3425, %v3405, %v3445
        %v3466 = vsel %vm3426, %v3406, %v3446
        %v3467 = vsel %vm3427, %v3407, %v3447
        %v3468 = vsel %vm3428, %v3408, %v3448
        %v3469 = vsel %vm3429, %v3409, %v3449
        %v3470 = vsel %vm3430, %v3410, %v3450
        %v3471 = vsel %vm3431, %v3411, %v3451
        %v3472 = vsel %vm3432, %v3412, %v3452
        %v3473 = vsel %vm3433, %v3413, %v3453
        %v3474 = vsel %vm3434, %v3414, %v3454
        %v3475 = vsel %vm3435, %v3415, %v3455
        %v3476 = vsel %vm3436, %v3416, %v3456
        %v3477 = vsel %vm3437, %v3417, %v3457
        %v3478 = vsel %vm3438, %v3418, %v3458
        %v3479 = vsel %vm3439, %v3419, %v3459
        %v3480 = vadd.f32 %v3460, 1.0
        %v3481 = vadd.f32 %v3461, 1.0
        %v3482 = vadd.f32 %v3462, 1.0
        %v3483 = vadd.f32 %v3463, 1.0
        %v3484 = vadd.f32 %v3464, 1.0
        %v3485 = vadd.f32 %v3465, 1.0
        %v3486 = vadd.f32 %v3466, 1.0
        %v3487 = vadd.f32 %v3467, 1.0
        %v3488 = vadd.f32 %v3468, 1.0
        %v3489 = vadd.f32 %v3469, 1.0
        %v3490 = vadd.f32 %v3470, 1.0
        %v3491 = vadd.f32 %v3471, 1.0
        %v3492 = vadd.f32 %v3472, 1.0
        %v3493 = vadd.f32 %v3473, 1.0
        %v3494 = vadd.f32 %v3474, 1.0
        %v3495 = vadd.f32 %v3475, 1.0
        %v3496 = vadd.f32 %v3476, 1.0
        %v3497 = vadd.f32 %v3477, 1.0
        %v3498 = vadd.f32 %v3478, 1.0
        %v3499 = vadd.f32 %v3479, 1.0
        %v3500 = vmul.f32 %v2980, %v3480
        %v3501 = vmul.f32 %v2981, %v3481
        %v3502 = vmul.f32 %v2982, %v3482
        %v3503 = vmul.f32 %v2983, %v3483
        %v3504 = vmul.f32 %v2984, %v3484
        %v3505 = vmul.f32 %v2985, %v3485
        %v3506 = vmul.f32 %v2986, %v3486
        %v3507 = vmul.f32 %v2987, %v3487
        %v3508 = vmul.f32 %v2988, %v3488
        %v3509 = vmul.f32 %v2989, %v3489
        %v3510 = vmul.f32 %v2990, %v3490
        %v3511 = vmul.f32 %v2991, %v3491
        %v3512 = vmul.f32 %v2992, %v3492
        %v3513 = vmul.f32 %v2993, %v3493
        %v3514 = vmul.f32 %v2994, %v3494
        %v3515 = vmul.f32 %v2995, %v3495
        %v3516 = vmul.f32 %v2996, %v3496
        %v3517 = vmul.f32 %v2997, %v3497
        %v3518 = vmul.f32 %v2998, %v3498
        %v3519 = vmul.f32 %v2999, %v3499
        %v3520 = vpack.c.bf16 %v3504, %v3500
        %v3521 = vpack.c.bf16 %v3505, %v3501
        %v3522 = vpack.c.bf16 %v3506, %v3502
        %v3523 = vpack.c.bf16 %v3507, %v3503
        %v3524 = vpack.c.bf16 %v3512, %v3508
        %v3525 = vpack.c.bf16 %v3513, %v3509
        %v3526 = vpack.c.bf16 %v3514, %v3510
        %v3527 = vpack.c.bf16 %v3515, %v3511
        %v3528 = vpack.c.bf16 %v3516, %v3516
        %v3529 = vpack.c.bf16 %v3517, %v3517
        %v3530 = vpack.c.bf16 %v3518, %v3518
        %v3531 = vpack.c.bf16 %v3519, %v3519
        %v3532 = vld [vmem:[%s556] sm:$0xf]
        %v3533 = vld [vmem:[%s556 + $0x4] sm:$0xf]
        %v3534 = vld [vmem:[%s556 + $0x8] sm:$0xf]
        %v3535 = vld [vmem:[%s556 + $0xc] sm:$0xf]
        %v3536 = vld [vmem:[%s556 + $0x10] sm:$0xf]
        %v3537 = vld [vmem:[%s556 + $0x14] sm:$0xf]
        %v3538 = vld [vmem:[%s556 + $0x18] sm:$0xf]
        %v3539 = vld [vmem:[%s556 + $0x1c] sm:$0xf]
        %v3540 = vld [vmem:[%s556 + $0x20] sm:$0xf]
        %v3541 = vld [vmem:[%s556 + $0x24] sm:$0xf]
        %v3542 = vld [vmem:[%s556 + $0x28] sm:$0xf]
        %v3543 = vld [vmem:[%s556 + $0x2c] sm:$0xf]
        %v3544 = vld [vmem:[%s556 + $0x30] sm:$0xf]
        %v3545 = vld [vmem:[%s556 + $0x34] sm:$0xf]
        %v3546 = vld [vmem:[%s556 + $0x38] sm:$0xf]
        %v3547 = vld [vmem:[%s556 + $0x3c] sm:$0xf]
        %v3548 = vld [vmem:[%s556 + $0x40] sm:$0xf]
        %v3549 = vld [vmem:[%s556 + $0x44] sm:$0xf]
        %v3550 = vld [vmem:[%s556 + $0x48] sm:$0xf]
        %v3551 = vld [vmem:[%s556 + $0x4c] sm:$0xf]
        %v3552 = vld [vmem:[%s556 + $0x50] sm:$0xf]
        %v3553 = vld [vmem:[%s556 + $0x54] sm:$0xf]
        %v3554 = vld [vmem:[%s556 + $0x58] sm:$0xf]
        %v3555 = vld [vmem:[%s556 + $0x5c] sm:$0xf]
        %v3556 = vld [vmem:[%s556 + $0x60] sm:$0xf]
        %v3557 = vld [vmem:[%s556 + $0x64] sm:$0xf]
        %v3558 = vld [vmem:[%s556 + $0x68] sm:$0xf]
        %v3559 = vld [vmem:[%s556 + $0x6c] sm:$0xf]
        %v3560 = vld [vmem:[%s556 + $0x70] sm:$0xf]
        %v3561 = vld [vmem:[%s556 + $0x74] sm:$0xf]
        %v3562 = vld [vmem:[%s556 + $0x78] sm:$0xf]
        %v3563 = vld [vmem:[%s556 + $0x7c] sm:$0xf]
        %v3564 = vld [vmem:[%s556 + $0x80] sm:$0xf]
        %v3565 = vld [vmem:[%s556 + $0x84] sm:$0xf]
        %v3566 = vld [vmem:[%s556 + $0x88] sm:$0xf]
        %v3567 = vld [vmem:[%s556 + $0x8c] sm:$0xf]
        %v3568 = vld [vmem:[%s556 + $0x90] sm:$0xf]
        %v3569 = vld [vmem:[%s556 + $0x94] sm:$0xf]
        %v3570 = vld [vmem:[%s556 + $0x98] sm:$0xf]
        %v3571 = vld [vmem:[%s556 + $0x9c] sm:$0xf]
        %v3572 = vld [vmem:[%s556 + $0xa0] sm:$0xf]
        %v3573 = vld [vmem:[%s556 + $0xa4] sm:$0xf]
        %v3574 = vld [vmem:[%s556 + $0xa8] sm:$0xf]
        %v3575 = vld [vmem:[%s556 + $0xac] sm:$0xf]
        %v3576 = vld [vmem:[%s556 + $0xb0] sm:$0xf]
        %v3577 = vld [vmem:[%s556 + $0xb4] sm:$0xf]
        %v3578 = vld [vmem:[%s556 + $0xb8] sm:$0xf]
        %v3579 = vld [vmem:[%s556 + $0xbc] sm:$0xf]
        %v3580 = vld [vmem:[%s556 + $0xc0] sm:$0xf]
        %v3581 = vld [vmem:[%s556 + $0xc4] sm:$0xf]
        %v3582 = vld [vmem:[%s556 + $0xc8] sm:$0xf]
        %v3583 = vld [vmem:[%s556 + $0xcc] sm:$0xf]
        %v3584 = vld [vmem:[%s556 + $0xd0] sm:$0xf]
        %v3585 = vld [vmem:[%s556 + $0xd4] sm:$0xf]
        %v3586 = vld [vmem:[%s556 + $0xd8] sm:$0xf]
        %v3587 = vld [vmem:[%s556 + $0xdc] sm:$0xf]
        %v3588 = vld [vmem:[%s556 + $0xe0] sm:$0xf]
        %v3589 = vld [vmem:[%s556 + $0xe4] sm:$0xf]
        %v3590 = vld [vmem:[%s556 + $0xe8] sm:$0xf]
        %v3591 = vld [vmem:[%s556 + $0xec] sm:$0xf]
        %v3592 = vld [vmem:[%s556 + $0xf0] sm:$0xf]
        %v3593 = vld [vmem:[%s556 + $0xf4] sm:$0xf]
        %v3594 = vld [vmem:[%s556 + $0xf8] sm:$0xf]
        %v3595 = vld [vmem:[%s556 + $0xfc] sm:$0xf]
        %v3660 = vunpack.c.l.b16 %v3532
        %v3661 = vunpack.c.l.b16 %v3533
        %v3662 = vunpack.c.l.b16 %v3534
        %v3663 = vunpack.c.l.b16 %v3535
        %v3664 = vunpack.c.l.b16 %v3536
        %v3665 = vunpack.c.l.b16 %v3537
        %v3666 = vunpack.c.l.b16 %v3538
        %v3667 = vunpack.c.l.b16 %v3539
        %v3668 = vunpack.c.l.b16 %v3540
        %v3669 = vunpack.c.l.b16 %v3541
        %v3670 = vunpack.c.l.b16 %v3542
        %v3671 = vunpack.c.l.b16 %v3543
        %v3672 = vunpack.c.l.b16 %v3544
        %v3673 = vunpack.c.l.b16 %v3545
        %v3674 = vunpack.c.l.b16 %v3546
        %v3675 = vunpack.c.l.b16 %v3547
        %v3676 = vunpack.c.l.b16 %v3548
        %v3677 = vunpack.c.l.b16 %v3549
        %v3678 = vunpack.c.l.b16 %v3550
        %v3679 = vunpack.c.l.b16 %v3551
        %v3680 = vunpack.c.l.b16 %v3552
        %v3681 = vunpack.c.l.b16 %v3553
        %v3682 = vunpack.c.l.b16 %v3554
        %v3683 = vunpack.c.l.b16 %v3555
        %v3684 = vunpack.c.l.b16 %v3556
        %v3685 = vunpack.c.l.b16 %v3557
        %v3686 = vunpack.c.l.b16 %v3558
        %v3687 = vunpack.c.l.b16 %v3559
        %v3688 = vunpack.c.l.b16 %v3560
        %v3689 = vunpack.c.l.b16 %v3561
        %v3690 = vunpack.c.l.b16 %v3562
        %v3691 = vunpack.c.l.b16 %v3563
        %v3692 = vunpack.c.l.b16 %v3564
        %v3693 = vunpack.c.l.b16 %v3565
        %v3694 = vunpack.c.l.b16 %v3566
        %v3695 = vunpack.c.l.b16 %v3567
        %v3696 = vunpack.c.l.b16 %v3568
        %v3697 = vunpack.c.l.b16 %v3569
        %v3698 = vunpack.c.l.b16 %v3570
        %v3699 = vunpack.c.l.b16 %v3571
        %v3700 = vunpack.c.l.b16 %v3572
        %v3701 = vunpack.c.l.b16 %v3573
        %v3702 = vunpack.c.l.b16 %v3574
        %v3703 = vunpack.c.l.b16 %v3575
        %v3704 = vunpack.c.l.b16 %v3576
        %v3705 = vunpack.c.l.b16 %v3577
        %v3706 = vunpack.c.l.b16 %v3578
        %v3707 = vunpack.c.l.b16 %v3579
        %v3708 = vunpack.c.l.b16 %v3580
        %v3709 = vunpack.c.l.b16 %v3581
        %v3710 = vunpack.c.l.b16 %v3582
        %v3711 = vunpack.c.l.b16 %v3583
        %v3712 = vunpack.c.l.b16 %v3584
        %v3713 = vunpack.c.l.b16 %v3585
        %v3714 = vunpack.c.l.b16 %v3586
        %v3715 = vunpack.c.l.b16 %v3587
        %v3716 = vunpack.c.l.b16 %v3588
        %v3717 = vunpack.c.l.b16 %v3589
        %v3718 = vunpack.c.l.b16 %v3590
        %v3719 = vunpack.c.l.b16 %v3591
        %v3720 = vunpack.c.l.b16 %v3592
        %v3721 = vunpack.c.l.b16 %v3593
        %v3722 = vunpack.c.l.b16 %v3594
        %v3723 = vunpack.c.l.b16 %v3595
        %v3724 = vpack.c.b16 %v3661, %v3660
        %v3725 = vpack.c.b16 %v3663, %v3662
        %v3726 = vpack.c.b16 %v3665, %v3664
        %v3727 = vpack.c.b16 %v3667, %v3666
        %v3728 = vpack.c.b16 %v3669, %v3668
        %v3729 = vpack.c.b16 %v3671, %v3670
        %v3730 = vpack.c.b16 %v3673, %v3672
        %v3731 = vpack.c.b16 %v3675, %v3674
        %v3732 = vpack.c.b16 %v3677, %v3676
        %v3733 = vpack.c.b16 %v3679, %v3678
        %v3734 = vpack.c.b16 %v3681, %v3680
        %v3735 = vpack.c.b16 %v3683, %v3682
        %v3736 = vpack.c.b16 %v3685, %v3684
        %v3737 = vpack.c.b16 %v3687, %v3686
        %v3738 = vpack.c.b16 %v3689, %v3688
        %v3739 = vpack.c.b16 %v3691, %v3690
        %v3740 = vpack.c.b16 %v3693, %v3692
        %v3741 = vpack.c.b16 %v3695, %v3694
        %v3742 = vpack.c.b16 %v3697, %v3696
        %v3743 = vpack.c.b16 %v3699, %v3698
        %v3744 = vpack.c.b16 %v3701, %v3700
        %v3745 = vpack.c.b16 %v3703, %v3702
        %v3746 = vpack.c.b16 %v3705, %v3704
        %v3747 = vpack.c.b16 %v3707, %v3706
        %v3748 = vpack.c.b16 %v3709, %v3708
        %v3749 = vpack.c.b16 %v3711, %v3710
        %v3750 = vpack.c.b16 %v3713, %v3712
        %v3751 = vpack.c.b16 %v3715, %v3714
        %v3752 = vpack.c.b16 %v3717, %v3716
        %v3753 = vpack.c.b16 %v3719, %v3718
        %v3754 = vpack.c.b16 %v3721, %v3720
        %v3755 = vpack.c.b16 %v3723, %v3722
        %3788 = vmatprep.subr.bf16.mxu0 0
        %3789 = vmatpush1.bf16.msra.mxu0 %v3724
        %3790 = vmatprep.subr.bf16.mxu0 0
        %3791 = vmatpush1.bf16.msra.mxu0 %v3725
        %3792 = vmatprep.subr.bf16.mxu0 0
        %3793 = vmatpush1.bf16.msra.mxu0 %v3726
        %3794 = vmatprep.subr.bf16.mxu0 0
        %3795 = vmatpush1.bf16.msra.mxu0 %v3727
        %3796 = vmatprep.subr.bf16.mxu0 0
        %3797 = vmatpush1.bf16.msra.mxu0 %v3728
        %3798 = vmatprep.subr.bf16.mxu0 0
        %3799 = vmatpush1.bf16.msra.mxu0 %v3729
        %3800 = vmatprep.subr.bf16.mxu0 0
        %3801 = vmatpush1.bf16.msra.mxu0 %v3730
        %3802 = vmatprep.subr.bf16.mxu0 0
        %3803 = vmatpush1.bf16.msra.mxu0 %v3731
        %3804 = vmatprep.subr.bf16.mxu0 0
        %3805 = vmatpush1.bf16.msra.mxu0 %v3732
        %3806 = vmatprep.subr.bf16.mxu0 0
        %3807 = vmatpush1.bf16.msra.mxu0 %v3733
        %3808 = vmatprep.subr.bf16.mxu0 0
        %3809 = vmatpush1.bf16.msra.mxu0 %v3734
        %3810 = vmatprep.subr.bf16.mxu0 0
        %3811 = vmatpush1.bf16.msra.mxu0 %v3735
        %3812 = vmatprep.subr.bf16.mxu0 0
        %3813 = vmatpush1.bf16.msra.mxu0 %v3736
        %3814 = vmatprep.subr.bf16.mxu0 0
        %3815 = vmatpush1.bf16.msra.mxu0 %v3737
        %3816 = vmatprep.subr.bf16.mxu0 0
        %3817 = vmatpush1.bf16.msra.mxu0 %v3738
        %3818 = vmatprep.subr.bf16.mxu0 0
        %3819 = vmatpush1.bf16.msra.mxu0 %v3739
        %3820 = vmatprep.mubr.bf16.mxu0 %v3521
        %3821 = vmatmul.mubr.bf16.gmra.mrb[0].mxu0 %v3520
        %v3822 = vpop.f32.mrb[0].mxu0
        %v3823 = vadd.f32 0.0, %v3822
        %v3824 = vpop.f32.mrb[0].mxu0
        %v3825 = vpop.f32.mrb[0].mxu0
        %v3826 = vadd.f32 0.0, %v3825
        %v3827 = vpop.f32.mrb[0].mxu0
        %3828 = vmatprep.mubr.bf16.mxu0 %v3525
        %3829 = vmatmul.mubr.bf16.gmra.mrb[0].mxu0 %v3524
        %v3830 = vpop.f32.mrb[0].mxu0
        %v3831 = vadd.f32 0.0, %v3830
        %v3832 = vpop.f32.mrb[0].mxu0
        %v3833 = vpop.f32.mrb[0].mxu0
        %v3834 = vadd.f32 0.0, %v3833
        %v3835 = vpop.f32.mrb[0].mxu0
        %3836 = vmatprep.mubr.bf16.mxu0 %v3529
        %3837 = vmatmul.mubr.bf16.gmra.mrb[0].mxu0 %v3528
        %v3838 = vpop.f32.mrb[0].mxu0
        %v3839 = vadd.f32 0.0, %v3838
        %v3840 = vpop.f32.mrb[0].mxu0
        %v3841 = vpop.f32.mrb[0].mxu0
        %v3842 = vpop.f32.mrb[0].mxu0
        %3843 = vdwg.mxu0
        %3844 = vmatprep.subr.bf16.mxu0 0
        %3845 = vmatpush1.bf16.msra.mxu0 %v3740
        %3846 = vmatprep.subr.bf16.mxu0 0
        %3847 = vmatpush1.bf16.msra.mxu0 %v3741
        %3848 = vmatprep.subr.bf16.mxu0 0
        %3849 = vmatpush1.bf16.msra.mxu0 %v3742
        %3850 = vmatprep.subr.bf16.mxu0 0
        %3851 = vmatpush1.bf16.msra.mxu0 %v3743
        %3852 = vmatprep.subr.bf16.mxu0 0
        %3853 = vmatpush1.bf16.msra.mxu0 %v3744
        %3854 = vmatprep.subr.bf16.mxu0 0
        %3855 = vmatpush1.bf16.msra.mxu0 %v3745
        %3856 = vmatprep.subr.bf16.mxu0 0
        %3857 = vmatpush1.bf16.msra.mxu0 %v3746
        %3858 = vmatprep.subr.bf16.mxu0 0
        %3859 = vmatpush1.bf16.msra.mxu0 %v3747
        %3860 = vmatprep.subr.bf16.mxu0 0
        %3861 = vmatpush1.bf16.msra.mxu0 %v3748
        %3862 = vmatprep.subr.bf16.mxu0 0
        %3863 = vmatpush1.bf16.msra.mxu0 %v3749
        %3864 = vmatprep.subr.bf16.mxu0 0
        %3865 = vmatpush1.bf16.msra.mxu0 %v3750
        %3866 = vmatprep.subr.bf16.mxu0 0
        %3867 = vmatpush1.bf16.msra.mxu0 %v3751
        %3868 = vmatprep.subr.bf16.mxu0 0
        %3869 = vmatpush1.bf16.msra.mxu0 %v3752
        %3870 = vmatprep.subr.bf16.mxu0 0
        %3871 = vmatpush1.bf16.msra.mxu0 %v3753
        %3872 = vmatprep.subr.bf16.mxu0 0
        %3873 = vmatpush1.bf16.msra.mxu0 %v3754
        %3874 = vmatprep.subr.bf16.mxu0 0
        %3875 = vmatpush1.bf16.msra.mxu0 %v3755
        %3876 = vmatprep.mubr.bf16.mxu0 %v3523
        %3877 = vmatmul.mubr.bf16.gmra.mrb[0].mxu0 %v3522
        %v3878 = vpop.f32.mrb[0].mxu0
        %v3879 = vadd.f32 %v3823, %v3878
        %v3880 = vpop.f32.mrb[0].mxu0
        %v3881 = vpop.f32.mrb[0].mxu0
        %v3882 = vadd.f32 %v3826, %v3881
        %v3883 = vpop.f32.mrb[0].mxu0
        %3884 = vmatprep.mubr.bf16.mxu0 %v3527
        %3885 = vmatmul.mubr.bf16.gmra.mrb[0].mxu0 %v3526
        %v3886 = vpop.f32.mrb[0].mxu0
        %v3887 = vadd.f32 %v3831, %v3886
        %v3888 = vpop.f32.mrb[0].mxu0
        %v3889 = vpop.f32.mrb[0].mxu0
        %v3890 = vadd.f32 %v3834, %v3889
        %v3891 = vpop.f32.mrb[0].mxu0
        %3892 = vmatprep.mubr.bf16.mxu0 %v3531
        %3893 = vmatmul.mubr.bf16.gmra.mrb[0].mxu0 %v3530
        %v3894 = vpop.f32.mrb[0].mxu0
        %v3895 = vadd.f32 %v3839, %v3894
        %v3896 = vpop.f32.mrb[0].mxu0
        %v3897 = vpop.f32.mrb[0].mxu0
        %v3898 = vpop.f32.mrb[0].mxu0
        %3899 = vdwg.mxu0
        %v3900 = vadd.f32 %v2555, %v3879
        %v3901 = vadd.f32 %v2556, %v3882
        %v3902 = vadd.f32 %v2557, %v3887
        %v3903 = vadd.f32 %v2558, %v3890
        %v3904 = vadd.f32 %v2559, %v3895
        %v3905 = vld [vmem:[%s685] sm:$0x1]
        %v3907 = vlaneseq
        %v3908 = vshrl.u32 %v3907, 7
        %v3909 = vsub.s32 0, %v3908
        %v3910 = vrot.slane %v3905, %v3909
        %v3912 = vadd.f32 %v3900, %v3910
        %v3913 = vadd.f32 %v3901, %v3910
        %v3914 = vadd.f32 %v3902, %v3910
        %v3915 = vadd.f32 %v3903, %v3910
        %v3916 = vadd.f32 %v3904, %v3910
        %3917 = vst [vmem:[#allocation2] sm:$0xff] %v3912
        %3918 = vst [vmem:[#allocation2 + $0x8] sm:$0xff] %v3913
        %3919 = vst [vmem:[#allocation2 + $0x10] sm:$0xff] %v3914
        %3920 = vst [vmem:[#allocation2 + $0x18] sm:$0xff] %v3915
        %3921 = vst [vmem:[#allocation2 + $0x20] sm:$0x1] %v3916
        %p3922 = scmp.eq.s32.totalorder %s35, 1
        // Predicated region
        $region85: #{_lambda_.4} parent=71 // pred_check
          %p3923 = pneg %p3922
        $region86: #{_lambda_.4} parent=71 // pred_check_branch
          %3925 = sbr.rel (%p3923) target = $region88
        $region87: #{_lambda_.4} parent=71 // pred_region
          %3926 = vst [vmem:[%s690] sm:$0xff] %v3912
          %3927 = vst [vmem:[%s690 + $0x8] sm:$0xff] %v3913
          %3928 = vst [vmem:[%s690 + $0x10] sm:$0xff] %v3914
          %3929 = vst [vmem:[%s690 + $0x18] sm:$0xff] %v3915
          %3930 = vst [vmem:[%s690 + $0x20] sm:$0x1] %v3916
        $region88: #{_lambda_.4} parent=71 // pred_fallthru
          _
        %p3931 = scmp.lt.s32.totalorder %s34, 1
        %s3932 = scalar_select %p3931, %s34, 1
        %s3933 = smul.addr %s3932, 5
        %s3934 = smul.addr %s3933, 8
        %s3935 = scalar_lea.vmem %s13, %s3934
        // Predicated region
        $region89: #{_lambda_.4} parent=71 // pred_check
          %p3936 = pneg %p398
        $region90: #{_lambda_.4} parent=71 // pred_check_branch
          %3938 = sbr.rel (%p3936) target = $region92
        $region91: #{_lambda_.4} parent=71 // pred_region
          _
        $region92: #{_lambda_.4} parent=71 // pred_fallthru
          _
      $region72: #{_lambda_.4} parent=5 // pred_fallthru
        _
      %p3939 = scmp.le.s32.totalorder 2, %s25
      // Predicated region
      $region93: #{_lambda_.4} parent=5 // pred_check
        %p3940 = pneg %p3939
      $region94: #{_lambda_.4} parent=5 // pred_check_branch
        %3942 = sbr.rel (%p3940) target = $region96
      $region95: #{_lambda_.4} parent=5 // pred_region
        %s3943 = ssub.s32 %s25, 2
        // Predicated region
        $region97: #{_lambda_.4} parent=95 // pred_check
          %p3944 = pneg %p404
        $region98: #{_lambda_.4} parent=95 // pred_check_branch
          %3946 = sbr.rel (%p3944) target = $region100
        $region99: #{_lambda_.4} parent=95 // pred_region
          %p3947 = scmp.lt.s32.totalorder %s36, 1
          %s3948 = scalar_select %p3947, %s36, 1
          %s3949 = smul.addr %s3948, 5
          %s3950 = smul.addr %s3949, 8
          %s3951 = scalar_lea.vmem %s13, %s3950
        $region100: #{_lambda_.4} parent=95 // pred_fallthru
          _
      $region96: #{_lambda_.4} parent=5 // pred_fallthru
        _
    $region6: #{_lambda_.4} parent=1 // loop_footer
      %s29 = sadd.s32 1, %s25
    $region7: #{_lambda_.4} parent=1 // loop_footer_branch
      %24 = sbr.rel target = $region3
    $region8: #{_lambda_.4} parent=1 // loop_exit
      _
    %3952 = vsyncpa [#allocation6], 1
    %s3953 = scalar_lea.sflag [#allocation6], 1
    %3954 = vsyncpa %s3953, 1
    %3955 = vsyncpa [#allocation8], 1
    %s3956 = scalar_lea.sflag [#allocation8], 1
    %3957 = vsyncpa %s3956, 1

</llo_original>
